<compile_context>
chip_gen: v5e
topology: v5e:2x2
jax: 0.10.0
libtpu: 0.0.40
codegen_flags: <defaults>
</compile_context>

<pallas_src>
import functools
import math

import jax
import jax.numpy as jnp
import numpy as np
from jax import lax
from jax.experimental import pallas as pl
from jax.experimental.pallas import tpu as pltpu

EPS = 1e-5
NEG_INF = -1.0e30  # finite "minus infinity" -> no NaN for fully padded rows


# ------------------------------ in-kernel helpers -----------------------------
def _layernorm(x, g, b):
    m = jnp.mean(x, axis=-1, keepdims=True)
    v = jnp.mean((x - m) ** 2, axis=-1, keepdims=True)
    return (x - m) * lax.rsqrt(v + EPS) * g + b


def _silu(x):
    return x * jax.nn.sigmoid(x)


def _rel_shift(bd_raw, T, row):
    """Transformer-XL relative shift.

    bd_raw: [T, L] with L = 2T-1.  Returns bd with bd[i, j] = bd_raw[i, j-i+T-1]
    for 0 <= i, j < T.  One static base roll plus ceil(log2(T)) masked static
    circular rolls along the lane axis -- O(T*L*log T) VPU/XLU work, constant
    (log T) unroll, no gather.
    """
    x = jnp.roll(bd_raw, 1 - T, axis=1)                    # base shift -(T-1)
    nbits = max(1, int(T - 1).bit_length())
    for b in range(nbits):
        rolled = jnp.roll(x, 1 << b, axis=1)
        take = ((row >> b) & 1) == 1                       # [T, 1] bool
        x = jnp.where(take, rolled, x)
    return x[:, :T]


def _ff_module(x, lng, lnb, w1_ref, b1_ref, w2_ref, b2_ref):
    xn = _layernorm(x, lng, lnb)
    h = jnp.dot(xn.astype(jnp.bfloat16), w1_ref[...],
                preferred_element_type=jnp.float32) + b1_ref[...]
    h = _silu(h)
    return jnp.dot(h.astype(jnp.bfloat16), w2_ref[...],
                   preferred_element_type=jnp.float32) + b2_ref[...]


def _mhsa_module(x, mask_row, lng, lnb, wqkv_ref, bqkv_ref, pbu_ref, pbv_ref,
                 rel_ref, wout_ref, bout_ref, num_heads):
    T, F = x.shape
    Fh = F // num_heads
    xn = _layernorm(x, lng, lnb)

    # Single lane-dense QKV projection: [T,F] x [F,3F]
    qkv = jnp.dot(xn.astype(jnp.bfloat16), wqkv_ref[...],
                  preferred_element_type=jnp.float32) + bqkv_ref[...]

    mask_add = jnp.where(mask_row > 0.0, 0.0, NEG_INF).astype(jnp.float32)  # [1,T]
    att_scale = 1.0 / math.sqrt(float(Fh))
    row = lax.broadcasted_iota(jnp.int32, (T, 1), 0)

    ctx_heads = []
    for h in range(num_heads):
        q = qkv[:, h * Fh:(h + 1) * Fh]
        k = qkv[:, F + h * Fh:F + (h + 1) * Fh]
        v = qkv[:, 2 * F + h * Fh:2 * F + (h + 1) * Fh]
        q_u = (q + pbu_ref[h]).astype(jnp.bfloat16)
        q_v = (q + pbv_ref[h]).astype(jnp.bfloat16)

        # (a + c) term:  q_u . k^T        -> [T, T]
        ac = lax.dot_general(q_u, k.astype(jnp.bfloat16),
                             (((1,), (1,)), ((), ())),
                             preferred_element_type=jnp.float32)
        # (b + d) term (unshifted):  q_v . rel^T  -> [T, 2T-1]
        bd_raw = lax.dot_general(q_v, rel_ref[h],
                                 (((1,), (1,)), ((), ())),
                                 preferred_element_type=jnp.float32)
        bd = _rel_shift(bd_raw, T, row)                    # [T, T]

        attn = (ac + bd) * att_scale + mask_add
        amax = jnp.max(attn, axis=-1, keepdims=True)
        p = jnp.exp(attn - amax)
        p = p * pl.reciprocal(jnp.sum(p, axis=-1, keepdims=True), approx=True)
        ctx_heads.append(jnp.dot(p.astype(jnp.bfloat16), v.astype(jnp.bfloat16),
                                 preferred_element_type=jnp.float32))  # [T, Fh]

    ctx = jnp.concatenate(ctx_heads, axis=-1)              # [T, F]
    return jnp.dot(ctx.astype(jnp.bfloat16), wout_ref[...],
                   preferred_element_type=jnp.float32) + bout_ref[...]


def _conv_module(x, lng, lnb, w1_ref, b1_ref, wdw_ref, bdw_ref,
                 w2_ref, b2_ref, kernel_size):
    T, F = x.shape
    pad = (kernel_size - 1) // 2

    xn = _layernorm(x, lng, lnb)
    h = jnp.dot(xn.astype(jnp.bfloat16), w1_ref[...],
                preferred_element_type=jnp.float32) + b1_ref[...]   # [T, 2F]
    g = h[:, :F] * jax.nn.sigmoid(h[:, F:])                # GLU -> [T, F]

    # Depthwise conv over time ("same" zero padding) as K shifted slices of a
    # zero-padded activation, each scaled per-channel on the VPU.  BatchNorm
    # (eval) is pre-folded into wdw / bdw by the wrapper.
    zeros = jnp.zeros((pad, F), jnp.float32)
    gp = jnp.concatenate([zeros, g, zeros], axis=0)        # [T + 2*pad, F]
    y = jnp.zeros((T, F), jnp.float32)
    for k in range(kernel_size):
        y = y + gp[k:k + T, :] * wdw_ref[k]
    y = y + bdw_ref[...]

    y = _silu(y)
    return jnp.dot(y.astype(jnp.bfloat16), w2_ref[...],
                   preferred_element_type=jnp.float32) + b2_ref[...]


# ------------------------------- fused kernel ----------------------------------
def _conformer_block_kernel(
        x_ref, mask_ref,
        ff1_lng, ff1_lnb, ff1_w1, ff1_b1, ff1_w2, ff1_b2,
        mh_lng, mh_lnb, mh_wqkv, mh_bqkv, mh_pbu, mh_pbv, mh_rel, mh_wout, mh_bout,
        cv_lng, cv_lnb, cv_w1, cv_b1, cv_wdw, cv_bdw, cv_w2, cv_b2,
        ff2_lng, ff2_lnb, ff2_w1, ff2_b1, ff2_w2, ff2_b2,
        fin_g, fin_b,
        o_ref, *, num_heads, kernel_size):
    x = x_ref[0]                                           # [T, F] f32

    # FF module #1  (scale 0.5)
    x = 0.5 * _ff_module(x, ff1_lng[...], ff1_lnb[...],
                         ff1_w1, ff1_b1, ff1_w2, ff1_b2) + x
    # MHSA rel-pos  (scale 1.0)
    x = _mhsa_module(x, mask_ref[0], mh_lng[...], mh_lnb[...],
                     mh_wqkv, mh_bqkv, mh_pbu, mh_pbv, mh_rel,
                     mh_wout, mh_bout, num_heads) + x
    # Conv module   (scale 1.0)
    x = _conv_module(x, cv_lng[...], cv_lnb[...], cv_w1, cv_b1,
                     cv_wdw, cv_bdw, cv_w2, cv_b2, kernel_size) + x
    # FF module #2  (scale 0.5)
    x = 0.5 * _ff_module(x, ff2_lng[...], ff2_lnb[...],
                         ff2_w1, ff2_b1, ff2_w2, ff2_b2) + x
    # final LayerNorm
    o_ref[0] = _layernorm(x, fin_g[...], fin_b[...])


# ---------------------------------- wrapper ------------------------------------
def _bf16(a):
    return a.astype(jnp.bfloat16)


def _sinusoidal_pe(pos_seq, dim):
    positions = pos_seq[:, None]
    dim_idx = jnp.arange(0, dim, 2, dtype=jnp.float32)
    inv_freq = 1.0 / (10000.0 ** (dim_idx / dim))
    sinp = positions * inv_freq
    pe = jnp.zeros((pos_seq.shape[0], dim), jnp.float32)
    pe = pe.at[:, 0::2].set(jnp.sin(sinp))
    pe = pe.at[:, 1::2].set(jnp.cos(sinp))
    return pe


def _build_rel_emb(T, F, H, w_pos):
    # sinusoidal PE over positions [T-1 .. -(T-1)] -> linear_pos -> per-head split
    pos_seq = jnp.arange(T - 1, -T, -1, dtype=jnp.float32)
    pe = _sinusoidal_pe(pos_seq, F)                        # [2T-1, F]
    rel = jnp.dot(pe, w_pos)                               # [2T-1, F]
    rel = rel.reshape(2 * T - 1, H, F // H)
    return jnp.transpose(rel, (1, 0, 2))                   # [H, 2T-1, Fh]


def conformer_rel_pos_block(x, sequence_mask, params, *, num_heads, conv_kernel):
    """x: [B, T, F] float32, sequence_mask: [B, T] bool (True inside sequence)."""
    B, T, F = x.shape
    H, K = num_heads, conv_kernel
    assert F % H == 0 and F % 2 == 0 and K % 2 == 1
    Fh = F // H
    L = 2 * T - 1
    FF1_HID = params["ff1"]["w1"].shape[1]
    FF2_HID = params["ff2"]["w1"].shape[1]

    mask3 = sequence_mask.astype(jnp.float32).reshape(B, 1, T)
    rel = _build_rel_emb(T, F, H, params["mhsa"]["w_pos"])  # [H, L, Fh]

    # Fold eval-mode BatchNorm into the depthwise conv weights / bias.
    pc = params["conv"]
    s = pc["bn_g"] * lax.rsqrt(pc["bn_rv"] + EPS)           # [1, F]
    wdw_f = (pc["wdw"] * s)[:, None, :]                     # [K, 1, F]
    bdw_f = (pc["bdw"] - pc["bn_rm"]) * s + pc["bn_b"]      # [1, F]

    rs = pl.BlockSpec((1, T, F), lambda b: (b, 0, 0))

    def cs(shape):
        nd = len(shape)
        return pl.BlockSpec(shape, lambda b: (0,) * nd)

    in_specs = [
        rs,                                                 # x
        pl.BlockSpec((1, 1, T), lambda b: (b, 0, 0)),       # mask
        # ff1
        cs((1, F)), cs((1, F)),
        cs((F, FF1_HID)), cs((1, FF1_HID)), cs((FF1_HID, F)), cs((1, F)),
        # mhsa
        cs((1, F)), cs((1, F)),
        cs((F, 3 * F)), cs((1, 3 * F)),
        cs((H, 1, Fh)), cs((H, 1, Fh)), cs((H, L, Fh)),
        cs((F, F)), cs((1, F)),
        # conv
        cs((1, F)), cs((1, F)),
        cs((F, 2 * F)), cs((1, 2 * F)),
        cs((K, 1, F)), cs((1, F)),
        cs((F, F)), cs((1, F)),
        # ff2
        cs((1, F)), cs((1, F)),
        cs((F, FF2_HID)), cs((1, FF2_HID)), cs((FF2_HID, F)), cs((1, F)),
        # final LN
        cs((1, F)), cs((1, F)),
    ]

    p1, pm, p2, pf = params["ff1"], params["mhsa"], params["ff2"], params["final"]
    args = [
        x, mask3,
        p1["ln_g"], p1["ln_b"], _bf16(p1["w1"]), p1["b1"], _bf16(p1["w2"]), p1["b2"],
        pm["ln_g"], pm["ln_b"], _bf16(pm["wqkv"]), pm["bqkv"],
        pm["pos_u"][:, None, :], pm["pos_v"][:, None, :], _bf16(rel),
        _bf16(pm["wout"]), pm["bout"],
        pc["ln_g"], pc["ln_b"], _bf16(pc["w1"]), pc["b1"],
        wdw_f, bdw_f, _bf16(pc["w2"]), pc["b2"],
        p2["ln_g"], p2["ln_b"], _bf16(p2["w1"]), p2["b1"], _bf16(p2["w2"]), p2["b2"],
        pf["ln_g"], pf["ln_b"],
    ]

    # TODO(synk): attention / conv keep whole-sequence [T,F] blocks per batch
    # element (not flash-style KV-tiled, no time-halo tiling); fine for typical
    # ASR lengths.  For very long T raise vmem_limit_bytes / revisit tiling.
    kernel = functools.partial(_conformer_block_kernel, num_heads=H, kernel_size=K)
    return pl.pallas_call(
        kernel,
        out_shape=jax.ShapeDtypeStruct((B, T, F), jnp.float32),
        grid=(B,),
        in_specs=in_specs,
        out_specs=rs,
        compiler_params=pltpu.CompilerParams(dimension_semantics=("parallel",)),
    )(*args)


# ----------------------------- deterministic params ----------------------------
def init_params(key, F, H, ff_hid, K):
    ks = jax.random.split(key, 24)
    d = lambda k, shp: 0.02 * jax.random.normal(k, shp, jnp.float32)
    params = {}
    for name, i in (("ff1", 0), ("ff2", 4)):
        params[name] = dict(ln_g=jnp.ones((1, F)), ln_b=jnp.zeros((1, F)),
                            w1=d(ks[i], (F, ff_hid)), b1=d(ks[i + 1], (1, ff_hid)),
                            w2=d(ks[i + 2], (ff_hid, F)), b2=d(ks[i + 3], (1, F)))
    params["mhsa"] = dict(ln_g=jnp.ones((1, F)), ln_b=jnp.zeros((1, F)),
                          wqkv=d(ks[8], (F, 3 * F)), bqkv=d(ks[9], (1, 3 * F)),
                          w_pos=d(ks[10], (F, F)),
                          pos_u=d(ks[11], (H, F // H)), pos_v=d(ks[12], (H, F // H)),
                          wout=d(ks[13], (F, F)), bout=d(ks[14], (1, F)))
    params["conv"] = dict(ln_g=jnp.ones((1, F)), ln_b=jnp.zeros((1, F)),
                          w1=d(ks[15], (F, 2 * F)), b1=d(ks[16], (1, 2 * F)),
                          wdw=d(ks[17], (K, F)), bdw=d(ks[18], (1, F)),
                          bn_g=jnp.ones((1, F)), bn_b=jnp.zeros((1, F)),
                          bn_rm=jnp.zeros((1, F)), bn_rv=jnp.ones((1, F)),
                          w2=d(ks[19], (F, F)), b2=d(ks[20], (1, F)))
    params["final"] = dict(ln_g=jnp.ones((1, F)), ln_b=jnp.zeros((1, F)))
    return params


# ---------------------------- pure-JAX reference --------------------------------
def ref_layernorm(x, g, b):
    m = x.mean(-1, keepdims=True)
    v = ((x - m) ** 2).mean(-1, keepdims=True)
    return (x - m) / jnp.sqrt(v + EPS) * g + b


def ref_ff(x, p):
    h = ref_layernorm(x, p["ln_g"], p["ln_b"]) @ p["w1"] + p["b1"]
    h = h * jax.nn.sigmoid(h)
    return h @ p["w2"] + p["b2"]


def ref_rel_shift(x, k_len):
    B, H, T, L = x.shape
    x = jnp.pad(x, ((0, 0), (0, 0), (0, 0), (1, 0)))
    x = x.reshape(B, H, L + 1, T)[:, :, 1:, :].reshape(B, H, T, L)
    return x[:, :, :, :k_len]


def ref_mhsa(x, seq_mask, p, H):
    B, T, F = x.shape
    Fh = F // H
    xn = ref_layernorm(x, p["ln_g"], p["ln_b"])
    qkv = xn @ p["wqkv"] + p["bqkv"]
    q, k, v = jnp.split(qkv, 3, axis=-1)
    q = q.reshape(B, T, H, Fh); k = k.reshape(B, T, H, Fh); v = v.reshape(B, T, H, Fh)
    pe = _sinusoidal_pe(jnp.arange(T - 1, -T, -1, dtype=jnp.float32), F)
    rel = (pe @ p["w_pos"]).reshape(2 * T - 1, H, Fh)
    q_u = q + p["pos_u"][None, None]
    q_v = q + p["pos_v"][None, None]
    attn_ac = jnp.einsum("bihf,bjhf->bhij", q_u, k)
    attn_bd = ref_rel_shift(jnp.einsum("bihf,jhf->bhij", q_v, rel), T)
    mask_add = jnp.where(seq_mask[:, None, None, :], 0.0, -jnp.inf)
    attn = (attn_ac + attn_bd + mask_add) * math.sqrt(1.0 / float(Fh))
    w = jax.nn.softmax(attn, axis=-1)
    ctx = jnp.einsum("bhij,bjhf->bihf", w, v).reshape(B, T, F)
    return ctx @ p["wout"] + p["bout"]


def ref_conv(x, p, K):
    B, T, F = x.shape
    pad = (K - 1) // 2
    xn = ref_layernorm(x, p["ln_g"], p["ln_b"])
    a = xn @ p["w1"] + p["b1"]
    g = a[..., :F] * jax.nn.sigmoid(a[..., F:])
    gp = jnp.pad(g, ((0, 0), (pad, pad), (0, 0)))
    y = jnp.zeros_like(g)
    for k in range(K):
        y = y + gp[:, k:k + T, :] * p["wdw"][k][None, None, :]
    y = y + p["bdw"]
    y = (y - p["bn_rm"]) / jnp.sqrt(p["bn_rv"] + EPS) * p["bn_g"] + p["bn_b"]
    y = y * jax.nn.sigmoid(y)
    return y @ p["w2"] + p["b2"]


def ref_block(x, seq_mask, params, H, K):
    x = 0.5 * ref_ff(x, params["ff1"]) + x
    x = 1.0 * ref_mhsa(x, seq_mask, params["mhsa"], H) + x
    x = 1.0 * ref_conv(x, params["conv"], K) + x
    x = 0.5 * ref_ff(x, params["ff2"]) + x
    return ref_layernorm(x, params["final"]["ln_g"], params["final"]["ln_b"])


# ------------------------------------ main --------------------------------------
if __name__ == "__main__":
    B, T, F, H, FF_HID, K = 2, 8, 32, 4, 64, 5
    key = jax.random.PRNGKey(0)
    kx, kp = jax.random.split(key)
    x = jax.random.normal(kx, (B, T, F), jnp.float32)
    lengths = jnp.array([T, 5], jnp.int32)
    sequence_mask = jnp.arange(T)[None, :] < lengths[:, None]      # [B, T] bool

    params = init_params(kp, F, H, FF_HID, K)

    out = conformer_rel_pos_block(x, sequence_mask, params, num_heads=H, conv_kernel=K)
    out = jax.block_until_ready(out)
    assert out.shape == (B, T, F) and out.dtype == jnp.float32

    ref = ref_block(x, sequence_mask, params, H, K)
    np.testing.assert_allclose(np.asarray(out), np.asarray(ref), atol=2e-2, rtol=2e-2)

    # TODO(synk): training-mode dropout / BatchNorm batch statistics are not
    # modeled (kernel implements the eval-mode forward pass).
    print("KERNEL_OK")
</pallas_src>

<mosaic_0001>
module attributes {stable_mosaic.version = 11 : i64} {
  func.func @_conformer_block_kernel(%arg0: i32, %arg1: memref<1x8x32xf32, #tpu.memory_space<vmem>>, %arg2: memref<1x1x8xf32, #tpu.memory_space<vmem>>, %arg3: memref<1x32xf32, #tpu.memory_space<vmem>>, %arg4: memref<1x32xf32, #tpu.memory_space<vmem>>, %arg5: memref<32x64xbf16, #tpu.memory_space<vmem>>, %arg6: memref<1x64xf32, #tpu.memory_space<vmem>>, %arg7: memref<64x32xbf16, #tpu.memory_space<vmem>>, %arg8: memref<1x32xf32, #tpu.memory_space<vmem>>, %arg9: memref<1x32xf32, #tpu.memory_space<vmem>>, %arg10: memref<1x32xf32, #tpu.memory_space<vmem>>, %arg11: memref<32x96xbf16, #tpu.memory_space<vmem>>, %arg12: memref<1x96xf32, #tpu.memory_space<vmem>>, %arg13: memref<4x1x8xf32, #tpu.memory_space<vmem>>, %arg14: memref<4x1x8xf32, #tpu.memory_space<vmem>>, %arg15: memref<4x15x8xbf16, #tpu.memory_space<vmem>>, %arg16: memref<32x32xbf16, #tpu.memory_space<vmem>>, %arg17: memref<1x32xf32, #tpu.memory_space<vmem>>, %arg18: memref<1x32xf32, #tpu.memory_space<vmem>>, %arg19: memref<1x32xf32, #tpu.memory_space<vmem>>, %arg20: memref<32x64xbf16, #tpu.memory_space<vmem>>, %arg21: memref<1x64xf32, #tpu.memory_space<vmem>>, %arg22: memref<5x1x32xf32, #tpu.memory_space<vmem>>, %arg23: memref<1x32xf32, #tpu.memory_space<vmem>>, %arg24: memref<32x32xbf16, #tpu.memory_space<vmem>>, %arg25: memref<1x32xf32, #tpu.memory_space<vmem>>, %arg26: memref<1x32xf32, #tpu.memory_space<vmem>>, %arg27: memref<1x32xf32, #tpu.memory_space<vmem>>, %arg28: memref<32x64xbf16, #tpu.memory_space<vmem>>, %arg29: memref<1x64xf32, #tpu.memory_space<vmem>>, %arg30: memref<64x32xbf16, #tpu.memory_space<vmem>>, %arg31: memref<1x32xf32, #tpu.memory_space<vmem>>, %arg32: memref<1x32xf32, #tpu.memory_space<vmem>>, %arg33: memref<1x32xf32, #tpu.memory_space<vmem>>, %arg34: memref<1x8x32xf32, #tpu.memory_space<vmem>>) attributes {dimension_semantics = [#tpu.dimension_semantics<parallel>], iteration_bounds = array<i64: 2>, scalar_prefetch = 0 : i64, scratch_operands = 0 : i64, tpu.core_type = #tpu.core_type<tc>, window_params = [{transform_indices = @transform_0, window_bounds = array<i64: 1, 8, 32>}, {transform_indices = @transform_1, window_bounds = array<i64: 1, 1, 8>}, {pipeline_mode = #tpu.pipeline_mode<synchronous>, transform_indices = @transform_2, window_bounds = array<i64: 1, 32>}, {pipeline_mode = #tpu.pipeline_mode<synchronous>, transform_indices = @transform_3, window_bounds = array<i64: 1, 32>}, {pipeline_mode = #tpu.pipeline_mode<synchronous>, transform_indices = @transform_4, window_bounds = array<i64: 32, 64>}, {pipeline_mode = #tpu.pipeline_mode<synchronous>, transform_indices = @transform_5, window_bounds = array<i64: 1, 64>}, {pipeline_mode = #tpu.pipeline_mode<synchronous>, transform_indices = @transform_6, window_bounds = array<i64: 64, 32>}, {pipeline_mode = #tpu.pipeline_mode<synchronous>, transform_indices = @transform_7, window_bounds = array<i64: 1, 32>}, {pipeline_mode = #tpu.pipeline_mode<synchronous>, transform_indices = @transform_8, window_bounds = array<i64: 1, 32>}, {pipeline_mode = #tpu.pipeline_mode<synchronous>, transform_indices = @transform_9, window_bounds = array<i64: 1, 32>}, {pipeline_mode = #tpu.pipeline_mode<synchronous>, transform_indices = @transform_10, window_bounds = array<i64: 32, 96>}, {pipeline_mode = #tpu.pipeline_mode<synchronous>, transform_indices = @transform_11, window_bounds = array<i64: 1, 96>}, {pipeline_mode = #tpu.pipeline_mode<synchronous>, transform_indices = @transform_12, window_bounds = array<i64: 4, 1, 8>}, {pipeline_mode = #tpu.pipeline_mode<synchronous>, transform_indices = @transform_13, window_bounds = array<i64: 4, 1, 8>}, {pipeline_mode = #tpu.pipeline_mode<synchronous>, transform_indices = @transform_14, window_bounds = array<i64: 4, 15, 8>}, {pipeline_mode = #tpu.pipeline_mode<synchronous>, transform_indices = @transform_15, window_bounds = array<i64: 32, 32>}, {pipeline_mode = #tpu.pipeline_mode<synchronous>, transform_indices = @transform_16, window_bounds = array<i64: 1, 32>}, {pipeline_mode = #tpu.pipeline_mode<synchronous>, transform_indices = @transform_17, window_bounds = array<i64: 1, 32>}, {pipeline_mode = #tpu.pipeline_mode<synchronous>, transform_indices = @transform_18, window_bounds = array<i64: 1, 32>}, {pipeline_mode = #tpu.pipeline_mode<synchronous>, transform_indices = @transform_19, window_bounds = array<i64: 32, 64>}, {pipeline_mode = #tpu.pipeline_mode<synchronous>, transform_indices = @transform_20, window_bounds = array<i64: 1, 64>}, {pipeline_mode = #tpu.pipeline_mode<synchronous>, transform_indices = @transform_21, window_bounds = array<i64: 5, 1, 32>}, {pipeline_mode = #tpu.pipeline_mode<synchronous>, transform_indices = @transform_22, window_bounds = array<i64: 1, 32>}, {pipeline_mode = #tpu.pipeline_mode<synchronous>, transform_indices = @transform_23, window_bounds = array<i64: 32, 32>}, {pipeline_mode = #tpu.pipeline_mode<synchronous>, transform_indices = @transform_24, window_bounds = array<i64: 1, 32>}, {pipeline_mode = #tpu.pipeline_mode<synchronous>, transform_indices = @transform_25, window_bounds = array<i64: 1, 32>}, {pipeline_mode = #tpu.pipeline_mode<synchronous>, transform_indices = @transform_26, window_bounds = array<i64: 1, 32>}, {pipeline_mode = #tpu.pipeline_mode<synchronous>, transform_indices = @transform_27, window_bounds = array<i64: 32, 64>}, {pipeline_mode = #tpu.pipeline_mode<synchronous>, transform_indices = @transform_28, window_bounds = array<i64: 1, 64>}, {pipeline_mode = #tpu.pipeline_mode<synchronous>, transform_indices = @transform_29, window_bounds = array<i64: 64, 32>}, {pipeline_mode = #tpu.pipeline_mode<synchronous>, transform_indices = @transform_30, window_bounds = array<i64: 1, 32>}, {pipeline_mode = #tpu.pipeline_mode<synchronous>, transform_indices = @transform_31, window_bounds = array<i64: 1, 32>}, {pipeline_mode = #tpu.pipeline_mode<synchronous>, transform_indices = @transform_32, window_bounds = array<i64: 1, 32>}, {transform_indices = @transform_33, window_bounds = array<i64: 1, 8, 32>}]} {
    %c0 = arith.constant 0 : index
    %c0_0 = arith.constant 0 : index
    %c0_1 = arith.constant 0 : index
    %0 = vector.load %arg1[%c0, %c0_0, %c0_1] : memref<1x8x32xf32, #tpu.memory_space<vmem>>, vector<1x8x32xf32>
    %1 = vector.shape_cast %0 : vector<1x8x32xf32> to vector<8x32xf32>
    %c0_2 = arith.constant 0 : index
    %c0_3 = arith.constant 0 : index
    %2 = vector.load %arg3[%c0_2, %c0_3] : memref<1x32xf32, #tpu.memory_space<vmem>>, vector<1x32xf32>
    %c0_4 = arith.constant 0 : index
    %c0_5 = arith.constant 0 : index
    %3 = vector.load %arg4[%c0_4, %c0_5] : memref<1x32xf32, #tpu.memory_space<vmem>>, vector<1x32xf32>
    %cst = arith.constant dense<0.000000e+00> : vector<8xf32>
    %4 = vector.multi_reduction <add>, %1, %cst [1] : vector<8x32xf32> to vector<8xf32>
    %5 = vector.shape_cast %4 : vector<8xf32> to vector<8x1xf32>
    %cst_6 = arith.constant 3.200000e+01 : f32
    %6 = vector.broadcast %cst_6 : f32 to vector<8x1xf32>
    %7 = arith.divf %5, %6 : vector<8x1xf32>
    %8 = vector.broadcast %7 : vector<8x1xf32> to vector<8x32xf32>
    %9 = arith.subf %1, %8 : vector<8x32xf32>
    %10 = arith.mulf %9, %9 : vector<8x32xf32>
    %cst_7 = arith.constant dense<0.000000e+00> : vector<8xf32>
    %11 = vector.multi_reduction <add>, %10, %cst_7 [1] : vector<8x32xf32> to vector<8xf32>
    %12 = vector.shape_cast %11 : vector<8xf32> to vector<8x1xf32>
    %cst_8 = arith.constant 3.200000e+01 : f32
    %13 = vector.broadcast %cst_8 : f32 to vector<8x1xf32>
    %14 = arith.divf %12, %13 : vector<8x1xf32>
    %15 = vector.broadcast %7 : vector<8x1xf32> to vector<8x32xf32>
    %16 = arith.subf %1, %15 : vector<8x32xf32>
    %cst_9 = arith.constant 9.99999974E-6 : f32
    %17 = vector.broadcast %cst_9 : f32 to vector<8x1xf32>
    %18 = arith.addf %14, %17 : vector<8x1xf32>
    %19 = math.rsqrt %18 : vector<8x1xf32>
    %20 = vector.broadcast %19 : vector<8x1xf32> to vector<8x32xf32>
    %21 = arith.mulf %16, %20 : vector<8x32xf32>
    %22 = vector.broadcast %2 : vector<1x32xf32> to vector<8x32xf32>
    %23 = arith.mulf %21, %22 : vector<8x32xf32>
    %24 = vector.broadcast %3 : vector<1x32xf32> to vector<8x32xf32>
    %25 = arith.addf %23, %24 : vector<8x32xf32>
    %26 = arith.truncf %25 : vector<8x32xf32> to vector<8x32xbf16>
    %c0_10 = arith.constant 0 : index
    %c0_11 = arith.constant 0 : index
    %27 = vector.load %arg5[%c0_10, %c0_11] : memref<32x64xbf16, #tpu.memory_space<vmem>>, vector<32x64xbf16>
    %cst_12 = arith.constant dense<0.000000e+00> : vector<8x64xf32>
    %28 = tpu.matmul %26, %27, %cst_12 {dimension_numbers = #tpu.dot_dimension_numbers<[1], [0], [0], [1], [0, 0, 1, 1], [], []>} : vector<8x32xbf16>, vector<32x64xbf16>, vector<8x64xf32> -> vector<8x64xf32>
    %c0_13 = arith.constant 0 : index
    %c0_14 = arith.constant 0 : index
    %29 = vector.load %arg6[%c0_13, %c0_14] : memref<1x64xf32, #tpu.memory_space<vmem>>, vector<1x64xf32>
    %30 = vector.broadcast %29 : vector<1x64xf32> to vector<8x64xf32>
    %31 = arith.addf %28, %30 : vector<8x64xf32>
    %32 = arith.negf %31 : vector<8x64xf32>
    %33 = math.exp %32 : vector<8x64xf32>
    %cst_15 = arith.constant 1.000000e+00 : f32
    %34 = vector.broadcast %cst_15 : f32 to vector<8x64xf32>
    %35 = arith.addf %34, %33 : vector<8x64xf32>
    %36 = arith.divf %34, %35 : vector<8x64xf32>
    %37 = arith.mulf %31, %36 : vector<8x64xf32>
    %38 = arith.truncf %37 : vector<8x64xf32> to vector<8x64xbf16>
    %c0_16 = arith.constant 0 : index
    %c0_17 = arith.constant 0 : index
    %39 = vector.load %arg7[%c0_16, %c0_17] : memref<64x32xbf16, #tpu.memory_space<vmem>>, vector<64x32xbf16>
    %cst_18 = arith.constant dense<0.000000e+00> : vector<8x32xf32>
    %40 = tpu.matmul %38, %39, %cst_18 {dimension_numbers = #tpu.dot_dimension_numbers<[1], [0], [0], [1], [0, 0, 1, 1], [], []>} : vector<8x64xbf16>, vector<64x32xbf16>, vector<8x32xf32> -> vector<8x32xf32>
    %c0_19 = arith.constant 0 : index
    %c0_20 = arith.constant 0 : index
    %41 = vector.load %arg8[%c0_19, %c0_20] : memref<1x32xf32, #tpu.memory_space<vmem>>, vector<1x32xf32>
    %42 = vector.broadcast %41 : vector<1x32xf32> to vector<8x32xf32>
    %43 = arith.addf %40, %42 : vector<8x32xf32>
    %cst_21 = arith.constant 5.000000e-01 : f32
    %44 = vector.broadcast %cst_21 : f32 to vector<8x32xf32>
    %45 = arith.mulf %44, %43 : vector<8x32xf32>
    %46 = arith.addf %45, %1 : vector<8x32xf32>
    %c0_22 = arith.constant 0 : index
    %c0_23 = arith.constant 0 : index
    %c0_24 = arith.constant 0 : index
    %47 = vector.load %arg2[%c0_22, %c0_23, %c0_24] : memref<1x1x8xf32, #tpu.memory_space<vmem>>, vector<1x1x8xf32>
    %48 = vector.shape_cast %47 : vector<1x1x8xf32> to vector<1x8xf32>
    %c0_25 = arith.constant 0 : index
    %c0_26 = arith.constant 0 : index
    %49 = vector.load %arg9[%c0_25, %c0_26] : memref<1x32xf32, #tpu.memory_space<vmem>>, vector<1x32xf32>
    %c0_27 = arith.constant 0 : index
    %c0_28 = arith.constant 0 : index
    %50 = vector.load %arg10[%c0_27, %c0_28] : memref<1x32xf32, #tpu.memory_space<vmem>>, vector<1x32xf32>
    %cst_29 = arith.constant dense<0.000000e+00> : vector<8xf32>
    %51 = vector.multi_reduction <add>, %46, %cst_29 [1] : vector<8x32xf32> to vector<8xf32>
    %52 = vector.shape_cast %51 : vector<8xf32> to vector<8x1xf32>
    %cst_30 = arith.constant 3.200000e+01 : f32
    %53 = vector.broadcast %cst_30 : f32 to vector<8x1xf32>
    %54 = arith.divf %52, %53 : vector<8x1xf32>
    %55 = vector.broadcast %54 : vector<8x1xf32> to vector<8x32xf32>
    %56 = arith.subf %46, %55 : vector<8x32xf32>
    %57 = arith.mulf %56, %56 : vector<8x32xf32>
    %cst_31 = arith.constant dense<0.000000e+00> : vector<8xf32>
    %58 = vector.multi_reduction <add>, %57, %cst_31 [1] : vector<8x32xf32> to vector<8xf32>
    %59 = vector.shape_cast %58 : vector<8xf32> to vector<8x1xf32>
    %cst_32 = arith.constant 3.200000e+01 : f32
    %60 = vector.broadcast %cst_32 : f32 to vector<8x1xf32>
    %61 = arith.divf %59, %60 : vector<8x1xf32>
    %62 = vector.broadcast %54 : vector<8x1xf32> to vector<8x32xf32>
    %63 = arith.subf %46, %62 : vector<8x32xf32>
    %cst_33 = arith.constant 9.99999974E-6 : f32
    %64 = vector.broadcast %cst_33 : f32 to vector<8x1xf32>
    %65 = arith.addf %61, %64 : vector<8x1xf32>
    %66 = math.rsqrt %65 : vector<8x1xf32>
    %67 = vector.broadcast %66 : vector<8x1xf32> to vector<8x32xf32>
    %68 = arith.mulf %63, %67 : vector<8x32xf32>
    %69 = vector.broadcast %49 : vector<1x32xf32> to vector<8x32xf32>
    %70 = arith.mulf %68, %69 : vector<8x32xf32>
    %71 = vector.broadcast %50 : vector<1x32xf32> to vector<8x32xf32>
    %72 = arith.addf %70, %71 : vector<8x32xf32>
    %73 = arith.truncf %72 : vector<8x32xf32> to vector<8x32xbf16>
    %c0_34 = arith.constant 0 : index
    %c0_35 = arith.constant 0 : index
    %74 = vector.load %arg11[%c0_34, %c0_35] : memref<32x96xbf16, #tpu.memory_space<vmem>>, vector<32x96xbf16>
    %cst_36 = arith.constant dense<0.000000e+00> : vector<8x96xf32>
    %75 = tpu.matmul %73, %74, %cst_36 {dimension_numbers = #tpu.dot_dimension_numbers<[1], [0], [0], [1], [0, 0, 1, 1], [], []>} : vector<8x32xbf16>, vector<32x96xbf16>, vector<8x96xf32> -> vector<8x96xf32>
    %c0_37 = arith.constant 0 : index
    %c0_38 = arith.constant 0 : index
    %76 = vector.load %arg12[%c0_37, %c0_38] : memref<1x96xf32, #tpu.memory_space<vmem>>, vector<1x96xf32>
    %77 = vector.broadcast %76 : vector<1x96xf32> to vector<8x96xf32>
    %78 = arith.addf %75, %77 : vector<8x96xf32>
    %cst_39 = arith.constant 0.000000e+00 : f32
    %79 = vector.broadcast %cst_39 : f32 to vector<1x8xf32>
    %80 = arith.cmpf ogt, %48, %79 : vector<1x8xf32>
    %cst_40 = arith.constant 0.000000e+00 : f32
    %cst_41 = arith.constant -1.000000e+30 : f32
    %81 = vector.broadcast %cst_40 : f32 to vector<1x8xf32>
    %82 = vector.broadcast %cst_41 : f32 to vector<1x8xf32>
    %83 = arith.select %80, %81, %82 : vector<1x8xi1>, vector<1x8xf32>
    %84 = tpu.iota {dimensions = array<i32: 0>} : vector<8x1xi32>
    %85 = vector.extract_strided_slice %78 {offsets = [0, 0], sizes = [8, 8], strides = [1, 1]} : vector<8x96xf32> to vector<8x8xf32>
    %86 = vector.extract_strided_slice %78 {offsets = [0, 32], sizes = [8, 8], strides = [1, 1]} : vector<8x96xf32> to vector<8x8xf32>
    %87 = vector.extract_strided_slice %78 {offsets = [0, 64], sizes = [8, 8], strides = [1, 1]} : vector<8x96xf32> to vector<8x8xf32>
    %c0_42 = arith.constant 0 : index
    %c0_43 = arith.constant 0 : index
    %c0_44 = arith.constant 0 : index
    %88 = vector.load %arg13[%c0_42, %c0_43, %c0_44] : memref<4x1x8xf32, #tpu.memory_space<vmem>>, vector<1x1x8xf32>
    %89 = vector.shape_cast %88 : vector<1x1x8xf32> to vector<1x8xf32>
    %90 = vector.broadcast %89 : vector<1x8xf32> to vector<8x8xf32>
    %91 = arith.addf %85, %90 : vector<8x8xf32>
    %92 = arith.truncf %91 : vector<8x8xf32> to vector<8x8xbf16>
    %c0_45 = arith.constant 0 : index
    %c0_46 = arith.constant 0 : index
    %c0_47 = arith.constant 0 : index
    %93 = vector.load %arg14[%c0_45, %c0_46, %c0_47] : memref<4x1x8xf32, #tpu.memory_space<vmem>>, vector<1x1x8xf32>
    %94 = vector.shape_cast %93 : vector<1x1x8xf32> to vector<1x8xf32>
    %95 = vector.broadcast %94 : vector<1x8xf32> to vector<8x8xf32>
    %96 = arith.addf %85, %95 : vector<8x8xf32>
    %97 = arith.truncf %96 : vector<8x8xf32> to vector<8x8xbf16>
    %98 = arith.truncf %86 : vector<8x8xf32> to vector<8x8xbf16>
    %cst_48 = arith.constant dense<0.000000e+00> : vector<8x8xf32>
    %99 = tpu.matmul %92, %98, %cst_48 {dimension_numbers = #tpu.dot_dimension_numbers<[1], [1], [0], [0], [0, 0, 1, 0], [], []>} : vector<8x8xbf16>, vector<8x8xbf16>, vector<8x8xf32> -> vector<8x8xf32>
    %c0_49 = arith.constant 0 : index
    %c0_50 = arith.constant 0 : index
    %c0_51 = arith.constant 0 : index
    %100 = vector.load %arg15[%c0_49, %c0_50, %c0_51] : memref<4x15x8xbf16, #tpu.memory_space<vmem>>, vector<1x15x8xbf16>
    %101 = vector.shape_cast %100 : vector<1x15x8xbf16> to vector<15x8xbf16>
    %cst_52 = arith.constant dense<0.000000e+00> : vector<8x15xf32>
    %102 = tpu.matmul %97, %101, %cst_52 {dimension_numbers = #tpu.dot_dimension_numbers<[1], [1], [0], [0], [0, 0, 1, 0], [], []>} : vector<8x8xbf16>, vector<15x8xbf16>, vector<8x15xf32> -> vector<8x15xf32>
    %103 = vector.extract_strided_slice %102 {offsets = [0, 7], sizes = [8, 8], strides = [1, 1]} : vector<8x15xf32> to vector<8x8xf32>
    %104 = vector.extract_strided_slice %102 {offsets = [0, 0], sizes = [8, 7], strides = [1, 1]} : vector<8x15xf32> to vector<8x7xf32>
    %105 = tpu.concatenate %103, %104 in 1 : vector<8x8xf32>, vector<8x7xf32> -> vector<8x15xf32>
    %106 = vector.extract_strided_slice %105 {offsets = [0, 14], sizes = [8, 1], strides = [1, 1]} : vector<8x15xf32> to vector<8x1xf32>
    %107 = vector.extract_strided_slice %105 {offsets = [0, 0], sizes = [8, 14], strides = [1, 1]} : vector<8x15xf32> to vector<8x14xf32>
    %108 = tpu.concatenate %106, %107 in 1 : vector<8x1xf32>, vector<8x14xf32> -> vector<8x15xf32>
    %c0_i32 = arith.constant 0 : i32
    %109 = vector.broadcast %c0_i32 : i32 to vector<8x1xi32>
    %110 = arith.shrsi %84, %109 : vector<8x1xi32>
    %c1_i32 = arith.constant 1 : i32
    %111 = vector.broadcast %c1_i32 : i32 to vector<8x1xi32>
    %112 = arith.andi %110, %111 : vector<8x1xi32>
    %c1_i32_53 = arith.constant 1 : i32
    %113 = vector.broadcast %c1_i32_53 : i32 to vector<8x1xi32>
    %114 = arith.cmpi eq, %112, %113 : vector<8x1xi32>
    %115 = vector.shape_cast %114 : vector<8x1xi1> to vector<8x1xi1>
    %116 = vector.broadcast %115 : vector<8x1xi1> to vector<8x15xi1>
    %117 = arith.select %116, %108, %105 : vector<8x15xi1>, vector<8x15xf32>
    %118 = vector.extract_strided_slice %117 {offsets = [0, 13], sizes = [8, 2], strides = [1, 1]} : vector<8x15xf32> to vector<8x2xf32>
    %119 = vector.extract_strided_slice %117 {offsets = [0, 0], sizes = [8, 13], strides = [1, 1]} : vector<8x15xf32> to vector<8x13xf32>
    %120 = tpu.concatenate %118, %119 in 1 : vector<8x2xf32>, vector<8x13xf32> -> vector<8x15xf32>
    %c1_i32_54 = arith.constant 1 : i32
    %121 = vector.broadcast %c1_i32_54 : i32 to vector<8x1xi32>
    %122 = arith.shrsi %84, %121 : vector<8x1xi32>
    %c1_i32_55 = arith.constant 1 : i32
    %123 = vector.broadcast %c1_i32_55 : i32 to vector<8x1xi32>
    %124 = arith.andi %122, %123 : vector<8x1xi32>
    %c1_i32_56 = arith.constant 1 : i32
    %125 = vector.broadcast %c1_i32_56 : i32 to vector<8x1xi32>
    %126 = arith.cmpi eq, %124, %125 : vector<8x1xi32>
    %127 = vector.shape_cast %126 : vector<8x1xi1> to vector<8x1xi1>
    %128 = vector.broadcast %127 : vector<8x1xi1> to vector<8x15xi1>
    %129 = arith.select %128, %120, %117 : vector<8x15xi1>, vector<8x15xf32>
    %130 = vector.extract_strided_slice %129 {offsets = [0, 11], sizes = [8, 4], strides = [1, 1]} : vector<8x15xf32> to vector<8x4xf32>
    %131 = vector.extract_strided_slice %129 {offsets = [0, 0], sizes = [8, 11], strides = [1, 1]} : vector<8x15xf32> to vector<8x11xf32>
    %132 = tpu.concatenate %130, %131 in 1 : vector<8x4xf32>, vector<8x11xf32> -> vector<8x15xf32>
    %c2_i32 = arith.constant 2 : i32
    %133 = vector.broadcast %c2_i32 : i32 to vector<8x1xi32>
    %134 = arith.shrsi %84, %133 : vector<8x1xi32>
    %c1_i32_57 = arith.constant 1 : i32
    %135 = vector.broadcast %c1_i32_57 : i32 to vector<8x1xi32>
    %136 = arith.andi %134, %135 : vector<8x1xi32>
    %c1_i32_58 = arith.constant 1 : i32
    %137 = vector.broadcast %c1_i32_58 : i32 to vector<8x1xi32>
    %138 = arith.cmpi eq, %136, %137 : vector<8x1xi32>
    %139 = vector.shape_cast %138 : vector<8x1xi1> to vector<8x1xi1>
    %140 = vector.broadcast %139 : vector<8x1xi1> to vector<8x15xi1>
    %141 = arith.select %140, %132, %129 : vector<8x15xi1>, vector<8x15xf32>
    %142 = vector.extract_strided_slice %141 {offsets = [0, 0], sizes = [8, 8], strides = [1, 1]} : vector<8x15xf32> to vector<8x8xf32>
    %143 = arith.addf %99, %142 : vector<8x8xf32>
    %cst_59 = arith.constant 0.353553385 : f32
    %144 = vector.broadcast %cst_59 : f32 to vector<8x8xf32>
    %145 = arith.mulf %143, %144 : vector<8x8xf32>
    %146 = vector.broadcast %83 : vector<1x8xf32> to vector<8x8xf32>
    %147 = arith.addf %145, %146 : vector<8x8xf32>
    %cst_60 = arith.constant dense<0xFF800000> : vector<8xf32>
    %148 = vector.multi_reduction <maximumf>, %147, %cst_60 [1] : vector<8x8xf32> to vector<8xf32>
    %149 = vector.shape_cast %148 : vector<8xf32> to vector<8x1xf32>
    %150 = vector.broadcast %149 : vector<8x1xf32> to vector<8x8xf32>
    %151 = arith.subf %147, %150 : vector<8x8xf32>
    %152 = math.exp %151 : vector<8x8xf32>
    %cst_61 = arith.constant dense<0.000000e+00> : vector<8xf32>
    %153 = vector.multi_reduction <add>, %152, %cst_61 [1] : vector<8x8xf32> to vector<8xf32>
    %154 = vector.shape_cast %153 : vector<8xf32> to vector<8x1xf32>
    %155 = tpu.reciprocal %154 {approx = true} : vector<8x1xf32> -> vector<8x1xf32>
    %156 = vector.broadcast %155 : vector<8x1xf32> to vector<8x8xf32>
    %157 = arith.mulf %152, %156 : vector<8x8xf32>
    %158 = arith.truncf %157 : vector<8x8xf32> to vector<8x8xbf16>
    %159 = arith.truncf %87 : vector<8x8xf32> to vector<8x8xbf16>
    %cst_62 = arith.constant dense<0.000000e+00> : vector<8x8xf32>
    %160 = tpu.matmul %158, %159, %cst_62 {dimension_numbers = #tpu.dot_dimension_numbers<[1], [0], [0], [1], [0, 0, 1, 1], [], []>} : vector<8x8xbf16>, vector<8x8xbf16>, vector<8x8xf32> -> vector<8x8xf32>
    %161 = vector.extract_strided_slice %78 {offsets = [0, 8], sizes = [8, 8], strides = [1, 1]} : vector<8x96xf32> to vector<8x8xf32>
    %162 = vector.extract_strided_slice %78 {offsets = [0, 40], sizes = [8, 8], strides = [1, 1]} : vector<8x96xf32> to vector<8x8xf32>
    %163 = vector.extract_strided_slice %78 {offsets = [0, 72], sizes = [8, 8], strides = [1, 1]} : vector<8x96xf32> to vector<8x8xf32>
    %c1 = arith.constant 1 : index
    %c0_63 = arith.constant 0 : index
    %c0_64 = arith.constant 0 : index
    %164 = vector.load %arg13[%c1, %c0_63, %c0_64] : memref<4x1x8xf32, #tpu.memory_space<vmem>>, vector<1x1x8xf32>
    %165 = vector.shape_cast %164 : vector<1x1x8xf32> to vector<1x8xf32>
    %166 = vector.broadcast %165 : vector<1x8xf32> to vector<8x8xf32>
    %167 = arith.addf %161, %166 : vector<8x8xf32>
    %168 = arith.truncf %167 : vector<8x8xf32> to vector<8x8xbf16>
    %c1_65 = arith.constant 1 : index
    %c0_66 = arith.constant 0 : index
    %c0_67 = arith.constant 0 : index
    %169 = vector.load %arg14[%c1_65, %c0_66, %c0_67] : memref<4x1x8xf32, #tpu.memory_space<vmem>>, vector<1x1x8xf32>
    %170 = vector.shape_cast %169 : vector<1x1x8xf32> to vector<1x8xf32>
    %171 = vector.broadcast %170 : vector<1x8xf32> to vector<8x8xf32>
    %172 = arith.addf %161, %171 : vector<8x8xf32>
    %173 = arith.truncf %172 : vector<8x8xf32> to vector<8x8xbf16>
    %174 = arith.truncf %162 : vector<8x8xf32> to vector<8x8xbf16>
    %cst_68 = arith.constant dense<0.000000e+00> : vector<8x8xf32>
    %175 = tpu.matmul %168, %174, %cst_68 {dimension_numbers = #tpu.dot_dimension_numbers<[1], [1], [0], [0], [0, 0, 1, 0], [], []>} : vector<8x8xbf16>, vector<8x8xbf16>, vector<8x8xf32> -> vector<8x8xf32>
    %c1_69 = arith.constant 1 : index
    %c0_70 = arith.constant 0 : index
    %c0_71 = arith.constant 0 : index
    %176 = vector.load %arg15[%c1_69, %c0_70, %c0_71] : memref<4x15x8xbf16, #tpu.memory_space<vmem>>, vector<1x15x8xbf16>
    %177 = vector.shape_cast %176 : vector<1x15x8xbf16> to vector<15x8xbf16>
    %cst_72 = arith.constant dense<0.000000e+00> : vector<8x15xf32>
    %178 = tpu.matmul %173, %177, %cst_72 {dimension_numbers = #tpu.dot_dimension_numbers<[1], [1], [0], [0], [0, 0, 1, 0], [], []>} : vector<8x8xbf16>, vector<15x8xbf16>, vector<8x15xf32> -> vector<8x15xf32>
    %179 = vector.extract_strided_slice %178 {offsets = [0, 7], sizes = [8, 8], strides = [1, 1]} : vector<8x15xf32> to vector<8x8xf32>
    %180 = vector.extract_strided_slice %178 {offsets = [0, 0], sizes = [8, 7], strides = [1, 1]} : vector<8x15xf32> to vector<8x7xf32>
    %181 = tpu.concatenate %179, %180 in 1 : vector<8x8xf32>, vector<8x7xf32> -> vector<8x15xf32>
    %182 = vector.extract_strided_slice %181 {offsets = [0, 14], sizes = [8, 1], strides = [1, 1]} : vector<8x15xf32> to vector<8x1xf32>
    %183 = vector.extract_strided_slice %181 {offsets = [0, 0], sizes = [8, 14], strides = [1, 1]} : vector<8x15xf32> to vector<8x14xf32>
    %184 = tpu.concatenate %182, %183 in 1 : vector<8x1xf32>, vector<8x14xf32> -> vector<8x15xf32>
    %c0_i32_73 = arith.constant 0 : i32
    %185 = vector.broadcast %c0_i32_73 : i32 to vector<8x1xi32>
    %186 = arith.shrsi %84, %185 : vector<8x1xi32>
    %c1_i32_74 = arith.constant 1 : i32
    %187 = vector.broadcast %c1_i32_74 : i32 to vector<8x1xi32>
    %188 = arith.andi %186, %187 : vector<8x1xi32>
    %c1_i32_75 = arith.constant 1 : i32
    %189 = vector.broadcast %c1_i32_75 : i32 to vector<8x1xi32>
    %190 = arith.cmpi eq, %188, %189 : vector<8x1xi32>
    %191 = vector.shape_cast %190 : vector<8x1xi1> to vector<8x1xi1>
    %192 = vector.broadcast %191 : vector<8x1xi1> to vector<8x15xi1>
    %193 = arith.select %192, %184, %181 : vector<8x15xi1>, vector<8x15xf32>
    %194 = vector.extract_strided_slice %193 {offsets = [0, 13], sizes = [8, 2], strides = [1, 1]} : vector<8x15xf32> to vector<8x2xf32>
    %195 = vector.extract_strided_slice %193 {offsets = [0, 0], sizes = [8, 13], strides = [1, 1]} : vector<8x15xf32> to vector<8x13xf32>
    %196 = tpu.concatenate %194, %195 in 1 : vector<8x2xf32>, vector<8x13xf32> -> vector<8x15xf32>
    %c1_i32_76 = arith.constant 1 : i32
    %197 = vector.broadcast %c1_i32_76 : i32 to vector<8x1xi32>
    %198 = arith.shrsi %84, %197 : vector<8x1xi32>
    %c1_i32_77 = arith.constant 1 : i32
    %199 = vector.broadcast %c1_i32_77 : i32 to vector<8x1xi32>
    %200 = arith.andi %198, %199 : vector<8x1xi32>
    %c1_i32_78 = arith.constant 1 : i32
    %201 = vector.broadcast %c1_i32_78 : i32 to vector<8x1xi32>
    %202 = arith.cmpi eq, %200, %201 : vector<8x1xi32>
    %203 = vector.shape_cast %202 : vector<8x1xi1> to vector<8x1xi1>
    %204 = vector.broadcast %203 : vector<8x1xi1> to vector<8x15xi1>
    %205 = arith.select %204, %196, %193 : vector<8x15xi1>, vector<8x15xf32>
    %206 = vector.extract_strided_slice %205 {offsets = [0, 11], sizes = [8, 4], strides = [1, 1]} : vector<8x15xf32> to vector<8x4xf32>
    %207 = vector.extract_strided_slice %205 {offsets = [0, 0], sizes = [8, 11], strides = [1, 1]} : vector<8x15xf32> to vector<8x11xf32>
    %208 = tpu.concatenate %206, %207 in 1 : vector<8x4xf32>, vector<8x11xf32> -> vector<8x15xf32>
    %c2_i32_79 = arith.constant 2 : i32
    %209 = vector.broadcast %c2_i32_79 : i32 to vector<8x1xi32>
    %210 = arith.shrsi %84, %209 : vector<8x1xi32>
    %c1_i32_80 = arith.constant 1 : i32
    %211 = vector.broadcast %c1_i32_80 : i32 to vector<8x1xi32>
    %212 = arith.andi %210, %211 : vector<8x1xi32>
    %c1_i32_81 = arith.constant 1 : i32
    %213 = vector.broadcast %c1_i32_81 : i32 to vector<8x1xi32>
    %214 = arith.cmpi eq, %212, %213 : vector<8x1xi32>
    %215 = vector.shape_cast %214 : vector<8x1xi1> to vector<8x1xi1>
    %216 = vector.broadcast %215 : vector<8x1xi1> to vector<8x15xi1>
    %217 = arith.select %216, %208, %205 : vector<8x15xi1>, vector<8x15xf32>
    %218 = vector.extract_strided_slice %217 {offsets = [0, 0], sizes = [8, 8], strides = [1, 1]} : vector<8x15xf32> to vector<8x8xf32>
    %219 = arith.addf %175, %218 : vector<8x8xf32>
    %cst_82 = arith.constant 0.353553385 : f32
    %220 = vector.broadcast %cst_82 : f32 to vector<8x8xf32>
    %221 = arith.mulf %219, %220 : vector<8x8xf32>
    %222 = vector.broadcast %83 : vector<1x8xf32> to vector<8x8xf32>
    %223 = arith.addf %221, %222 : vector<8x8xf32>
    %cst_83 = arith.constant dense<0xFF800000> : vector<8xf32>
    %224 = vector.multi_reduction <maximumf>, %223, %cst_83 [1] : vector<8x8xf32> to vector<8xf32>
    %225 = vector.shape_cast %224 : vector<8xf32> to vector<8x1xf32>
    %226 = vector.broadcast %225 : vector<8x1xf32> to vector<8x8xf32>
    %227 = arith.subf %223, %226 : vector<8x8xf32>
    %228 = math.exp %227 : vector<8x8xf32>
    %cst_84 = arith.constant dense<0.000000e+00> : vector<8xf32>
    %229 = vector.multi_reduction <add>, %228, %cst_84 [1] : vector<8x8xf32> to vector<8xf32>
    %230 = vector.shape_cast %229 : vector<8xf32> to vector<8x1xf32>
    %231 = tpu.reciprocal %230 {approx = true} : vector<8x1xf32> -> vector<8x1xf32>
    %232 = vector.broadcast %231 : vector<8x1xf32> to vector<8x8xf32>
    %233 = arith.mulf %228, %232 : vector<8x8xf32>
    %234 = arith.truncf %233 : vector<8x8xf32> to vector<8x8xbf16>
    %235 = arith.truncf %163 : vector<8x8xf32> to vector<8x8xbf16>
    %cst_85 = arith.constant dense<0.000000e+00> : vector<8x8xf32>
    %236 = tpu.matmul %234, %235, %cst_85 {dimension_numbers = #tpu.dot_dimension_numbers<[1], [0], [0], [1], [0, 0, 1, 1], [], []>} : vector<8x8xbf16>, vector<8x8xbf16>, vector<8x8xf32> -> vector<8x8xf32>
    %237 = vector.extract_strided_slice %78 {offsets = [0, 16], sizes = [8, 8], strides = [1, 1]} : vector<8x96xf32> to vector<8x8xf32>
    %238 = vector.extract_strided_slice %78 {offsets = [0, 48], sizes = [8, 8], strides = [1, 1]} : vector<8x96xf32> to vector<8x8xf32>
    %239 = vector.extract_strided_slice %78 {offsets = [0, 80], sizes = [8, 8], strides = [1, 1]} : vector<8x96xf32> to vector<8x8xf32>
    %c2 = arith.constant 2 : index
    %c0_86 = arith.constant 0 : index
    %c0_87 = arith.constant 0 : index
    %240 = vector.load %arg13[%c2, %c0_86, %c0_87] : memref<4x1x8xf32, #tpu.memory_space<vmem>>, vector<1x1x8xf32>
    %241 = vector.shape_cast %240 : vector<1x1x8xf32> to vector<1x8xf32>
    %242 = vector.broadcast %241 : vector<1x8xf32> to vector<8x8xf32>
    %243 = arith.addf %237, %242 : vector<8x8xf32>
    %244 = arith.truncf %243 : vector<8x8xf32> to vector<8x8xbf16>
    %c2_88 = arith.constant 2 : index
    %c0_89 = arith.constant 0 : index
    %c0_90 = arith.constant 0 : index
    %245 = vector.load %arg14[%c2_88, %c0_89, %c0_90] : memref<4x1x8xf32, #tpu.memory_space<vmem>>, vector<1x1x8xf32>
    %246 = vector.shape_cast %245 : vector<1x1x8xf32> to vector<1x8xf32>
    %247 = vector.broadcast %246 : vector<1x8xf32> to vector<8x8xf32>
    %248 = arith.addf %237, %247 : vector<8x8xf32>
    %249 = arith.truncf %248 : vector<8x8xf32> to vector<8x8xbf16>
    %250 = arith.truncf %238 : vector<8x8xf32> to vector<8x8xbf16>
    %cst_91 = arith.constant dense<0.000000e+00> : vector<8x8xf32>
    %251 = tpu.matmul %244, %250, %cst_91 {dimension_numbers = #tpu.dot_dimension_numbers<[1], [1], [0], [0], [0, 0, 1, 0], [], []>} : vector<8x8xbf16>, vector<8x8xbf16>, vector<8x8xf32> -> vector<8x8xf32>
    %c2_92 = arith.constant 2 : index
    %c0_93 = arith.constant 0 : index
    %c0_94 = arith.constant 0 : index
    %252 = vector.load %arg15[%c2_92, %c0_93, %c0_94] : memref<4x15x8xbf16, #tpu.memory_space<vmem>>, vector<1x15x8xbf16>
    %253 = vector.shape_cast %252 : vector<1x15x8xbf16> to vector<15x8xbf16>
    %cst_95 = arith.constant dense<0.000000e+00> : vector<8x15xf32>
    %254 = tpu.matmul %249, %253, %cst_95 {dimension_numbers = #tpu.dot_dimension_numbers<[1], [1], [0], [0], [0, 0, 1, 0], [], []>} : vector<8x8xbf16>, vector<15x8xbf16>, vector<8x15xf32> -> vector<8x15xf32>
    %255 = vector.extract_strided_slice %254 {offsets = [0, 7], sizes = [8, 8], strides = [1, 1]} : vector<8x15xf32> to vector<8x8xf32>
    %256 = vector.extract_strided_slice %254 {offsets = [0, 0], sizes = [8, 7], strides = [1, 1]} : vector<8x15xf32> to vector<8x7xf32>
    %257 = tpu.concatenate %255, %256 in 1 : vector<8x8xf32>, vector<8x7xf32> -> vector<8x15xf32>
    %258 = vector.extract_strided_slice %257 {offsets = [0, 14], sizes = [8, 1], strides = [1, 1]} : vector<8x15xf32> to vector<8x1xf32>
    %259 = vector.extract_strided_slice %257 {offsets = [0, 0], sizes = [8, 14], strides = [1, 1]} : vector<8x15xf32> to vector<8x14xf32>
    %260 = tpu.concatenate %258, %259 in 1 : vector<8x1xf32>, vector<8x14xf32> -> vector<8x15xf32>
    %c0_i32_96 = arith.constant 0 : i32
    %261 = vector.broadcast %c0_i32_96 : i32 to vector<8x1xi32>
    %262 = arith.shrsi %84, %261 : vector<8x1xi32>
    %c1_i32_97 = arith.constant 1 : i32
    %263 = vector.broadcast %c1_i32_97 : i32 to vector<8x1xi32>
    %264 = arith.andi %262, %263 : vector<8x1xi32>
    %c1_i32_98 = arith.constant 1 : i32
    %265 = vector.broadcast %c1_i32_98 : i32 to vector<8x1xi32>
    %266 = arith.cmpi eq, %264, %265 : vector<8x1xi32>
    %267 = vector.shape_cast %266 : vector<8x1xi1> to vector<8x1xi1>
    %268 = vector.broadcast %267 : vector<8x1xi1> to vector<8x15xi1>
    %269 = arith.select %268, %260, %257 : vector<8x15xi1>, vector<8x15xf32>
    %270 = vector.extract_strided_slice %269 {offsets = [0, 13], sizes = [8, 2], strides = [1, 1]} : vector<8x15xf32> to vector<8x2xf32>
    %271 = vector.extract_strided_slice %269 {offsets = [0, 0], sizes = [8, 13], strides = [1, 1]} : vector<8x15xf32> to vector<8x13xf32>
    %272 = tpu.concatenate %270, %271 in 1 : vector<8x2xf32>, vector<8x13xf32> -> vector<8x15xf32>
    %c1_i32_99 = arith.constant 1 : i32
    %273 = vector.broadcast %c1_i32_99 : i32 to vector<8x1xi32>
    %274 = arith.shrsi %84, %273 : vector<8x1xi32>
    %c1_i32_100 = arith.constant 1 : i32
    %275 = vector.broadcast %c1_i32_100 : i32 to vector<8x1xi32>
    %276 = arith.andi %274, %275 : vector<8x1xi32>
    %c1_i32_101 = arith.constant 1 : i32
    %277 = vector.broadcast %c1_i32_101 : i32 to vector<8x1xi32>
    %278 = arith.cmpi eq, %276, %277 : vector<8x1xi32>
    %279 = vector.shape_cast %278 : vector<8x1xi1> to vector<8x1xi1>
    %280 = vector.broadcast %279 : vector<8x1xi1> to vector<8x15xi1>
    %281 = arith.select %280, %272, %269 : vector<8x15xi1>, vector<8x15xf32>
    %282 = vector.extract_strided_slice %281 {offsets = [0, 11], sizes = [8, 4], strides = [1, 1]} : vector<8x15xf32> to vector<8x4xf32>
    %283 = vector.extract_strided_slice %281 {offsets = [0, 0], sizes = [8, 11], strides = [1, 1]} : vector<8x15xf32> to vector<8x11xf32>
    %284 = tpu.concatenate %282, %283 in 1 : vector<8x4xf32>, vector<8x11xf32> -> vector<8x15xf32>
    %c2_i32_102 = arith.constant 2 : i32
    %285 = vector.broadcast %c2_i32_102 : i32 to vector<8x1xi32>
    %286 = arith.shrsi %84, %285 : vector<8x1xi32>
    %c1_i32_103 = arith.constant 1 : i32
    %287 = vector.broadcast %c1_i32_103 : i32 to vector<8x1xi32>
    %288 = arith.andi %286, %287 : vector<8x1xi32>
    %c1_i32_104 = arith.constant 1 : i32
    %289 = vector.broadcast %c1_i32_104 : i32 to vector<8x1xi32>
    %290 = arith.cmpi eq, %288, %289 : vector<8x1xi32>
    %291 = vector.shape_cast %290 : vector<8x1xi1> to vector<8x1xi1>
    %292 = vector.broadcast %291 : vector<8x1xi1> to vector<8x15xi1>
    %293 = arith.select %292, %284, %281 : vector<8x15xi1>, vector<8x15xf32>
    %294 = vector.extract_strided_slice %293 {offsets = [0, 0], sizes = [8, 8], strides = [1, 1]} : vector<8x15xf32> to vector<8x8xf32>
    %295 = arith.addf %251, %294 : vector<8x8xf32>
    %cst_105 = arith.constant 0.353553385 : f32
    %296 = vector.broadcast %cst_105 : f32 to vector<8x8xf32>
    %297 = arith.mulf %295, %296 : vector<8x8xf32>
    %298 = vector.broadcast %83 : vector<1x8xf32> to vector<8x8xf32>
    %299 = arith.addf %297, %298 : vector<8x8xf32>
    %cst_106 = arith.constant dense<0xFF800000> : vector<8xf32>
    %300 = vector.multi_reduction <maximumf>, %299, %cst_106 [1] : vector<8x8xf32> to vector<8xf32>
    %301 = vector.shape_cast %300 : vector<8xf32> to vector<8x1xf32>
    %302 = vector.broadcast %301 : vector<8x1xf32> to vector<8x8xf32>
    %303 = arith.subf %299, %302 : vector<8x8xf32>
    %304 = math.exp %303 : vector<8x8xf32>
    %cst_107 = arith.constant dense<0.000000e+00> : vector<8xf32>
    %305 = vector.multi_reduction <add>, %304, %cst_107 [1] : vector<8x8xf32> to vector<8xf32>
    %306 = vector.shape_cast %305 : vector<8xf32> to vector<8x1xf32>
    %307 = tpu.reciprocal %306 {approx = true} : vector<8x1xf32> -> vector<8x1xf32>
    %308 = vector.broadcast %307 : vector<8x1xf32> to vector<8x8xf32>
    %309 = arith.mulf %304, %308 : vector<8x8xf32>
    %310 = arith.truncf %309 : vector<8x8xf32> to vector<8x8xbf16>
    %311 = arith.truncf %239 : vector<8x8xf32> to vector<8x8xbf16>
    %cst_108 = arith.constant dense<0.000000e+00> : vector<8x8xf32>
    %312 = tpu.matmul %310, %311, %cst_108 {dimension_numbers = #tpu.dot_dimension_numbers<[1], [0], [0], [1], [0, 0, 1, 1], [], []>} : vector<8x8xbf16>, vector<8x8xbf16>, vector<8x8xf32> -> vector<8x8xf32>
    %313 = vector.extract_strided_slice %78 {offsets = [0, 24], sizes = [8, 8], strides = [1, 1]} : vector<8x96xf32> to vector<8x8xf32>
    %314 = vector.extract_strided_slice %78 {offsets = [0, 56], sizes = [8, 8], strides = [1, 1]} : vector<8x96xf32> to vector<8x8xf32>
    %315 = vector.extract_strided_slice %78 {offsets = [0, 88], sizes = [8, 8], strides = [1, 1]} : vector<8x96xf32> to vector<8x8xf32>
    %c3 = arith.constant 3 : index
    %c0_109 = arith.constant 0 : index
    %c0_110 = arith.constant 0 : index
    %316 = vector.load %arg13[%c3, %c0_109, %c0_110] : memref<4x1x8xf32, #tpu.memory_space<vmem>>, vector<1x1x8xf32>
    %317 = vector.shape_cast %316 : vector<1x1x8xf32> to vector<1x8xf32>
    %318 = vector.broadcast %317 : vector<1x8xf32> to vector<8x8xf32>
    %319 = arith.addf %313, %318 : vector<8x8xf32>
    %320 = arith.truncf %319 : vector<8x8xf32> to vector<8x8xbf16>
    %c3_111 = arith.constant 3 : index
    %c0_112 = arith.constant 0 : index
    %c0_113 = arith.constant 0 : index
    %321 = vector.load %arg14[%c3_111, %c0_112, %c0_113] : memref<4x1x8xf32, #tpu.memory_space<vmem>>, vector<1x1x8xf32>
    %322 = vector.shape_cast %321 : vector<1x1x8xf32> to vector<1x8xf32>
    %323 = vector.broadcast %322 : vector<1x8xf32> to vector<8x8xf32>
    %324 = arith.addf %313, %323 : vector<8x8xf32>
    %325 = arith.truncf %324 : vector<8x8xf32> to vector<8x8xbf16>
    %326 = arith.truncf %314 : vector<8x8xf32> to vector<8x8xbf16>
    %cst_114 = arith.constant dense<0.000000e+00> : vector<8x8xf32>
    %327 = tpu.matmul %320, %326, %cst_114 {dimension_numbers = #tpu.dot_dimension_numbers<[1], [1], [0], [0], [0, 0, 1, 0], [], []>} : vector<8x8xbf16>, vector<8x8xbf16>, vector<8x8xf32> -> vector<8x8xf32>
    %c3_115 = arith.constant 3 : index
    %c0_116 = arith.constant 0 : index
    %c0_117 = arith.constant 0 : index
    %328 = vector.load %arg15[%c3_115, %c0_116, %c0_117] : memref<4x15x8xbf16, #tpu.memory_space<vmem>>, vector<1x15x8xbf16>
    %329 = vector.shape_cast %328 : vector<1x15x8xbf16> to vector<15x8xbf16>
    %cst_118 = arith.constant dense<0.000000e+00> : vector<8x15xf32>
    %330 = tpu.matmul %325, %329, %cst_118 {dimension_numbers = #tpu.dot_dimension_numbers<[1], [1], [0], [0], [0, 0, 1, 0], [], []>} : vector<8x8xbf16>, vector<15x8xbf16>, vector<8x15xf32> -> vector<8x15xf32>
    %331 = vector.extract_strided_slice %330 {offsets = [0, 7], sizes = [8, 8], strides = [1, 1]} : vector<8x15xf32> to vector<8x8xf32>
    %332 = vector.extract_strided_slice %330 {offsets = [0, 0], sizes = [8, 7], strides = [1, 1]} : vector<8x15xf32> to vector<8x7xf32>
    %333 = tpu.concatenate %331, %332 in 1 : vector<8x8xf32>, vector<8x7xf32> -> vector<8x15xf32>
    %334 = vector.extract_strided_slice %333 {offsets = [0, 14], sizes = [8, 1], strides = [1, 1]} : vector<8x15xf32> to vector<8x1xf32>
    %335 = vector.extract_strided_slice %333 {offsets = [0, 0], sizes = [8, 14], strides = [1, 1]} : vector<8x15xf32> to vector<8x14xf32>
    %336 = tpu.concatenate %334, %335 in 1 : vector<8x1xf32>, vector<8x14xf32> -> vector<8x15xf32>
    %c0_i32_119 = arith.constant 0 : i32
    %337 = vector.broadcast %c0_i32_119 : i32 to vector<8x1xi32>
    %338 = arith.shrsi %84, %337 : vector<8x1xi32>
    %c1_i32_120 = arith.constant 1 : i32
    %339 = vector.broadcast %c1_i32_120 : i32 to vector<8x1xi32>
    %340 = arith.andi %338, %339 : vector<8x1xi32>
    %c1_i32_121 = arith.constant 1 : i32
    %341 = vector.broadcast %c1_i32_121 : i32 to vector<8x1xi32>
    %342 = arith.cmpi eq, %340, %341 : vector<8x1xi32>
    %343 = vector.shape_cast %342 : vector<8x1xi1> to vector<8x1xi1>
    %344 = vector.broadcast %343 : vector<8x1xi1> to vector<8x15xi1>
    %345 = arith.select %344, %336, %333 : vector<8x15xi1>, vector<8x15xf32>
    %346 = vector.extract_strided_slice %345 {offsets = [0, 13], sizes = [8, 2], strides = [1, 1]} : vector<8x15xf32> to vector<8x2xf32>
    %347 = vector.extract_strided_slice %345 {offsets = [0, 0], sizes = [8, 13], strides = [1, 1]} : vector<8x15xf32> to vector<8x13xf32>
    %348 = tpu.concatenate %346, %347 in 1 : vector<8x2xf32>, vector<8x13xf32> -> vector<8x15xf32>
    %c1_i32_122 = arith.constant 1 : i32
    %349 = vector.broadcast %c1_i32_122 : i32 to vector<8x1xi32>
    %350 = arith.shrsi %84, %349 : vector<8x1xi32>
    %c1_i32_123 = arith.constant 1 : i32
    %351 = vector.broadcast %c1_i32_123 : i32 to vector<8x1xi32>
    %352 = arith.andi %350, %351 : vector<8x1xi32>
    %c1_i32_124 = arith.constant 1 : i32
    %353 = vector.broadcast %c1_i32_124 : i32 to vector<8x1xi32>
    %354 = arith.cmpi eq, %352, %353 : vector<8x1xi32>
    %355 = vector.shape_cast %354 : vector<8x1xi1> to vector<8x1xi1>
    %356 = vector.broadcast %355 : vector<8x1xi1> to vector<8x15xi1>
    %357 = arith.select %356, %348, %345 : vector<8x15xi1>, vector<8x15xf32>
    %358 = vector.extract_strided_slice %357 {offsets = [0, 11], sizes = [8, 4], strides = [1, 1]} : vector<8x15xf32> to vector<8x4xf32>
    %359 = vector.extract_strided_slice %357 {offsets = [0, 0], sizes = [8, 11], strides = [1, 1]} : vector<8x15xf32> to vector<8x11xf32>
    %360 = tpu.concatenate %358, %359 in 1 : vector<8x4xf32>, vector<8x11xf32> -> vector<8x15xf32>
    %c2_i32_125 = arith.constant 2 : i32
    %361 = vector.broadcast %c2_i32_125 : i32 to vector<8x1xi32>
    %362 = arith.shrsi %84, %361 : vector<8x1xi32>
    %c1_i32_126 = arith.constant 1 : i32
    %363 = vector.broadcast %c1_i32_126 : i32 to vector<8x1xi32>
    %364 = arith.andi %362, %363 : vector<8x1xi32>
    %c1_i32_127 = arith.constant 1 : i32
    %365 = vector.broadcast %c1_i32_127 : i32 to vector<8x1xi32>
    %366 = arith.cmpi eq, %364, %365 : vector<8x1xi32>
    %367 = vector.shape_cast %366 : vector<8x1xi1> to vector<8x1xi1>
    %368 = vector.broadcast %367 : vector<8x1xi1> to vector<8x15xi1>
    %369 = arith.select %368, %360, %357 : vector<8x15xi1>, vector<8x15xf32>
    %370 = vector.extract_strided_slice %369 {offsets = [0, 0], sizes = [8, 8], strides = [1, 1]} : vector<8x15xf32> to vector<8x8xf32>
    %371 = arith.addf %327, %370 : vector<8x8xf32>
    %cst_128 = arith.constant 0.353553385 : f32
    %372 = vector.broadcast %cst_128 : f32 to vector<8x8xf32>
    %373 = arith.mulf %371, %372 : vector<8x8xf32>
    %374 = vector.broadcast %83 : vector<1x8xf32> to vector<8x8xf32>
    %375 = arith.addf %373, %374 : vector<8x8xf32>
    %cst_129 = arith.constant dense<0xFF800000> : vector<8xf32>
    %376 = vector.multi_reduction <maximumf>, %375, %cst_129 [1] : vector<8x8xf32> to vector<8xf32>
    %377 = vector.shape_cast %376 : vector<8xf32> to vector<8x1xf32>
    %378 = vector.broadcast %377 : vector<8x1xf32> to vector<8x8xf32>
    %379 = arith.subf %375, %378 : vector<8x8xf32>
    %380 = math.exp %379 : vector<8x8xf32>
    %cst_130 = arith.constant dense<0.000000e+00> : vector<8xf32>
    %381 = vector.multi_reduction <add>, %380, %cst_130 [1] : vector<8x8xf32> to vector<8xf32>
    %382 = vector.shape_cast %381 : vector<8xf32> to vector<8x1xf32>
    %383 = tpu.reciprocal %382 {approx = true} : vector<8x1xf32> -> vector<8x1xf32>
    %384 = vector.broadcast %383 : vector<8x1xf32> to vector<8x8xf32>
    %385 = arith.mulf %380, %384 : vector<8x8xf32>
    %386 = arith.truncf %385 : vector<8x8xf32> to vector<8x8xbf16>
    %387 = arith.truncf %315 : vector<8x8xf32> to vector<8x8xbf16>
    %cst_131 = arith.constant dense<0.000000e+00> : vector<8x8xf32>
    %388 = tpu.matmul %386, %387, %cst_131 {dimension_numbers = #tpu.dot_dimension_numbers<[1], [0], [0], [1], [0, 0, 1, 1], [], []>} : vector<8x8xbf16>, vector<8x8xbf16>, vector<8x8xf32> -> vector<8x8xf32>
    %389 = tpu.concatenate %160, %236, %312, %388 in 1 : vector<8x8xf32>, vector<8x8xf32>, vector<8x8xf32>, vector<8x8xf32> -> vector<8x32xf32>
    %390 = arith.truncf %389 : vector<8x32xf32> to vector<8x32xbf16>
    %c0_132 = arith.constant 0 : index
    %c0_133 = arith.constant 0 : index
    %391 = vector.load %arg16[%c0_132, %c0_133] : memref<32x32xbf16, #tpu.memory_space<vmem>>, vector<32x32xbf16>
    %cst_134 = arith.constant dense<0.000000e+00> : vector<8x32xf32>
    %392 = tpu.matmul %390, %391, %cst_134 {dimension_numbers = #tpu.dot_dimension_numbers<[1], [0], [0], [1], [0, 0, 1, 1], [], []>} : vector<8x32xbf16>, vector<32x32xbf16>, vector<8x32xf32> -> vector<8x32xf32>
    %c0_135 = arith.constant 0 : index
    %c0_136 = arith.constant 0 : index
    %393 = vector.load %arg17[%c0_135, %c0_136] : memref<1x32xf32, #tpu.memory_space<vmem>>, vector<1x32xf32>
    %394 = vector.broadcast %393 : vector<1x32xf32> to vector<8x32xf32>
    %395 = arith.addf %392, %394 : vector<8x32xf32>
    %396 = arith.addf %395, %46 : vector<8x32xf32>
    %c0_137 = arith.constant 0 : index
    %c0_138 = arith.constant 0 : index
    %397 = vector.load %arg18[%c0_137, %c0_138] : memref<1x32xf32, #tpu.memory_space<vmem>>, vector<1x32xf32>
    %c0_139 = arith.constant 0 : index
    %c0_140 = arith.constant 0 : index
    %398 = vector.load %arg19[%c0_139, %c0_140] : memref<1x32xf32, #tpu.memory_space<vmem>>, vector<1x32xf32>
    %cst_141 = arith.constant dense<0.000000e+00> : vector<8xf32>
    %399 = vector.multi_reduction <add>, %396, %cst_141 [1] : vector<8x32xf32> to vector<8xf32>
    %400 = vector.shape_cast %399 : vector<8xf32> to vector<8x1xf32>
    %cst_142 = arith.constant 3.200000e+01 : f32
    %401 = vector.broadcast %cst_142 : f32 to vector<8x1xf32>
    %402 = arith.divf %400, %401 : vector<8x1xf32>
    %403 = vector.broadcast %402 : vector<8x1xf32> to vector<8x32xf32>
    %404 = arith.subf %396, %403 : vector<8x32xf32>
    %405 = arith.mulf %404, %404 : vector<8x32xf32>
    %cst_143 = arith.constant dense<0.000000e+00> : vector<8xf32>
    %406 = vector.multi_reduction <add>, %405, %cst_143 [1] : vector<8x32xf32> to vector<8xf32>
    %407 = vector.shape_cast %406 : vector<8xf32> to vector<8x1xf32>
    %cst_144 = arith.constant 3.200000e+01 : f32
    %408 = vector.broadcast %cst_144 : f32 to vector<8x1xf32>
    %409 = arith.divf %407, %408 : vector<8x1xf32>
    %410 = vector.broadcast %402 : vector<8x1xf32> to vector<8x32xf32>
    %411 = arith.subf %396, %410 : vector<8x32xf32>
    %cst_145 = arith.constant 9.99999974E-6 : f32
    %412 = vector.broadcast %cst_145 : f32 to vector<8x1xf32>
    %413 = arith.addf %409, %412 : vector<8x1xf32>
    %414 = math.rsqrt %413 : vector<8x1xf32>
    %415 = vector.broadcast %414 : vector<8x1xf32> to vector<8x32xf32>
    %416 = arith.mulf %411, %415 : vector<8x32xf32>
    %417 = vector.broadcast %397 : vector<1x32xf32> to vector<8x32xf32>
    %418 = arith.mulf %416, %417 : vector<8x32xf32>
    %419 = vector.broadcast %398 : vector<1x32xf32> to vector<8x32xf32>
    %420 = arith.addf %418, %419 : vector<8x32xf32>
    %421 = arith.truncf %420 : vector<8x32xf32> to vector<8x32xbf16>
    %c0_146 = arith.constant 0 : index
    %c0_147 = arith.constant 0 : index
    %422 = vector.load %arg20[%c0_146, %c0_147] : memref<32x64xbf16, #tpu.memory_space<vmem>>, vector<32x64xbf16>
    %cst_148 = arith.constant dense<0.000000e+00> : vector<8x64xf32>
    %423 = tpu.matmul %421, %422, %cst_148 {dimension_numbers = #tpu.dot_dimension_numbers<[1], [0], [0], [1], [0, 0, 1, 1], [], []>} : vector<8x32xbf16>, vector<32x64xbf16>, vector<8x64xf32> -> vector<8x64xf32>
    %c0_149 = arith.constant 0 : index
    %c0_150 = arith.constant 0 : index
    %424 = vector.load %arg21[%c0_149, %c0_150] : memref<1x64xf32, #tpu.memory_space<vmem>>, vector<1x64xf32>
    %425 = vector.broadcast %424 : vector<1x64xf32> to vector<8x64xf32>
    %426 = arith.addf %423, %425 : vector<8x64xf32>
    %427 = vector.extract_strided_slice %426 {offsets = [0, 0], sizes = [8, 32], strides = [1, 1]} : vector<8x64xf32> to vector<8x32xf32>
    %428 = vector.extract_strided_slice %426 {offsets = [0, 32], sizes = [8, 32], strides = [1, 1]} : vector<8x64xf32> to vector<8x32xf32>
    %429 = arith.negf %428 : vector<8x32xf32>
    %430 = math.exp %429 : vector<8x32xf32>
    %cst_151 = arith.constant 1.000000e+00 : f32
    %431 = vector.broadcast %cst_151 : f32 to vector<8x32xf32>
    %432 = arith.addf %431, %430 : vector<8x32xf32>
    %433 = arith.divf %431, %432 : vector<8x32xf32>
    %434 = arith.mulf %427, %433 : vector<8x32xf32>
    %cst_152 = arith.constant 0.000000e+00 : f32
    %435 = vector.broadcast %cst_152 : f32 to vector<2x32xf32>
    %436 = tpu.concatenate %435, %434, %435 in 0 : vector<2x32xf32>, vector<8x32xf32>, vector<2x32xf32> -> vector<12x32xf32>
    %cst_153 = arith.constant 0.000000e+00 : f32
    %437 = vector.broadcast %cst_153 : f32 to vector<8x32xf32>
    %438 = vector.extract_strided_slice %436 {offsets = [0, 0], sizes = [8, 32], strides = [1, 1]} : vector<12x32xf32> to vector<8x32xf32>
    %c0_154 = arith.constant 0 : index
    %c0_155 = arith.constant 0 : index
    %c0_156 = arith.constant 0 : index
    %439 = vector.load %arg22[%c0_154, %c0_155, %c0_156] : memref<5x1x32xf32, #tpu.memory_space<vmem>>, vector<1x1x32xf32>
    %440 = vector.shape_cast %439 : vector<1x1x32xf32> to vector<1x32xf32>
    %441 = vector.broadcast %440 : vector<1x32xf32> to vector<8x32xf32>
    %442 = arith.mulf %438, %441 : vector<8x32xf32>
    %443 = arith.addf %437, %442 : vector<8x32xf32>
    %444 = vector.extract_strided_slice %436 {offsets = [1, 0], sizes = [8, 32], strides = [1, 1]} : vector<12x32xf32> to vector<8x32xf32>
    %c1_157 = arith.constant 1 : index
    %c0_158 = arith.constant 0 : index
    %c0_159 = arith.constant 0 : index
    %445 = vector.load %arg22[%c1_157, %c0_158, %c0_159] : memref<5x1x32xf32, #tpu.memory_space<vmem>>, vector<1x1x32xf32>
    %446 = vector.shape_cast %445 : vector<1x1x32xf32> to vector<1x32xf32>
    %447 = vector.broadcast %446 : vector<1x32xf32> to vector<8x32xf32>
    %448 = arith.mulf %444, %447 : vector<8x32xf32>
    %449 = arith.addf %443, %448 : vector<8x32xf32>
    %450 = vector.extract_strided_slice %436 {offsets = [2, 0], sizes = [8, 32], strides = [1, 1]} : vector<12x32xf32> to vector<8x32xf32>
    %c2_160 = arith.constant 2 : index
    %c0_161 = arith.constant 0 : index
    %c0_162 = arith.constant 0 : index
    %451 = vector.load %arg22[%c2_160, %c0_161, %c0_162] : memref<5x1x32xf32, #tpu.memory_space<vmem>>, vector<1x1x32xf32>
    %452 = vector.shape_cast %451 : vector<1x1x32xf32> to vector<1x32xf32>
    %453 = vector.broadcast %452 : vector<1x32xf32> to vector<8x32xf32>
    %454 = arith.mulf %450, %453 : vector<8x32xf32>
    %455 = arith.addf %449, %454 : vector<8x32xf32>
    %456 = vector.extract_strided_slice %436 {offsets = [3, 0], sizes = [8, 32], strides = [1, 1]} : vector<12x32xf32> to vector<8x32xf32>
    %c3_163 = arith.constant 3 : index
    %c0_164 = arith.constant 0 : index
    %c0_165 = arith.constant 0 : index
    %457 = vector.load %arg22[%c3_163, %c0_164, %c0_165] : memref<5x1x32xf32, #tpu.memory_space<vmem>>, vector<1x1x32xf32>
    %458 = vector.shape_cast %457 : vector<1x1x32xf32> to vector<1x32xf32>
    %459 = vector.broadcast %458 : vector<1x32xf32> to vector<8x32xf32>
    %460 = arith.mulf %456, %459 : vector<8x32xf32>
    %461 = arith.addf %455, %460 : vector<8x32xf32>
    %462 = vector.extract_strided_slice %436 {offsets = [4, 0], sizes = [8, 32], strides = [1, 1]} : vector<12x32xf32> to vector<8x32xf32>
    %c4 = arith.constant 4 : index
    %c0_166 = arith.constant 0 : index
    %c0_167 = arith.constant 0 : index
    %463 = vector.load %arg22[%c4, %c0_166, %c0_167] : memref<5x1x32xf32, #tpu.memory_space<vmem>>, vector<1x1x32xf32>
    %464 = vector.shape_cast %463 : vector<1x1x32xf32> to vector<1x32xf32>
    %465 = vector.broadcast %464 : vector<1x32xf32> to vector<8x32xf32>
    %466 = arith.mulf %462, %465 : vector<8x32xf32>
    %467 = arith.addf %461, %466 : vector<8x32xf32>
    %c0_168 = arith.constant 0 : index
    %c0_169 = arith.constant 0 : index
    %468 = vector.load %arg23[%c0_168, %c0_169] : memref<1x32xf32, #tpu.memory_space<vmem>>, vector<1x32xf32>
    %469 = vector.broadcast %468 : vector<1x32xf32> to vector<8x32xf32>
    %470 = arith.addf %467, %469 : vector<8x32xf32>
    %471 = arith.negf %470 : vector<8x32xf32>
    %472 = math.exp %471 : vector<8x32xf32>
    %cst_170 = arith.constant 1.000000e+00 : f32
    %473 = vector.broadcast %cst_170 : f32 to vector<8x32xf32>
    %474 = arith.addf %473, %472 : vector<8x32xf32>
    %475 = arith.divf %473, %474 : vector<8x32xf32>
    %476 = arith.mulf %470, %475 : vector<8x32xf32>
    %477 = arith.truncf %476 : vector<8x32xf32> to vector<8x32xbf16>
    %c0_171 = arith.constant 0 : index
    %c0_172 = arith.constant 0 : index
    %478 = vector.load %arg24[%c0_171, %c0_172] : memref<32x32xbf16, #tpu.memory_space<vmem>>, vector<32x32xbf16>
    %cst_173 = arith.constant dense<0.000000e+00> : vector<8x32xf32>
    %479 = tpu.matmul %477, %478, %cst_173 {dimension_numbers = #tpu.dot_dimension_numbers<[1], [0], [0], [1], [0, 0, 1, 1], [], []>} : vector<8x32xbf16>, vector<32x32xbf16>, vector<8x32xf32> -> vector<8x32xf32>
    %c0_174 = arith.constant 0 : index
    %c0_175 = arith.constant 0 : index
    %480 = vector.load %arg25[%c0_174, %c0_175] : memref<1x32xf32, #tpu.memory_space<vmem>>, vector<1x32xf32>
    %481 = vector.broadcast %480 : vector<1x32xf32> to vector<8x32xf32>
    %482 = arith.addf %479, %481 : vector<8x32xf32>
    %483 = arith.addf %482, %396 : vector<8x32xf32>
    %c0_176 = arith.constant 0 : index
    %c0_177 = arith.constant 0 : index
    %484 = vector.load %arg26[%c0_176, %c0_177] : memref<1x32xf32, #tpu.memory_space<vmem>>, vector<1x32xf32>
    %c0_178 = arith.constant 0 : index
    %c0_179 = arith.constant 0 : index
    %485 = vector.load %arg27[%c0_178, %c0_179] : memref<1x32xf32, #tpu.memory_space<vmem>>, vector<1x32xf32>
    %cst_180 = arith.constant dense<0.000000e+00> : vector<8xf32>
    %486 = vector.multi_reduction <add>, %483, %cst_180 [1] : vector<8x32xf32> to vector<8xf32>
    %487 = vector.shape_cast %486 : vector<8xf32> to vector<8x1xf32>
    %cst_181 = arith.constant 3.200000e+01 : f32
    %488 = vector.broadcast %cst_181 : f32 to vector<8x1xf32>
    %489 = arith.divf %487, %488 : vector<8x1xf32>
    %490 = vector.broadcast %489 : vector<8x1xf32> to vector<8x32xf32>
    %491 = arith.subf %483, %490 : vector<8x32xf32>
    %492 = arith.mulf %491, %491 : vector<8x32xf32>
    %cst_182 = arith.constant dense<0.000000e+00> : vector<8xf32>
    %493 = vector.multi_reduction <add>, %492, %cst_182 [1] : vector<8x32xf32> to vector<8xf32>
    %494 = vector.shape_cast %493 : vector<8xf32> to vector<8x1xf32>
    %cst_183 = arith.constant 3.200000e+01 : f32
    %495 = vector.broadcast %cst_183 : f32 to vector<8x1xf32>
    %496 = arith.divf %494, %495 : vector<8x1xf32>
    %497 = vector.broadcast %489 : vector<8x1xf32> to vector<8x32xf32>
    %498 = arith.subf %483, %497 : vector<8x32xf32>
    %cst_184 = arith.constant 9.99999974E-6 : f32
    %499 = vector.broadcast %cst_184 : f32 to vector<8x1xf32>
    %500 = arith.addf %496, %499 : vector<8x1xf32>
    %501 = math.rsqrt %500 : vector<8x1xf32>
    %502 = vector.broadcast %501 : vector<8x1xf32> to vector<8x32xf32>
    %503 = arith.mulf %498, %502 : vector<8x32xf32>
    %504 = vector.broadcast %484 : vector<1x32xf32> to vector<8x32xf32>
    %505 = arith.mulf %503, %504 : vector<8x32xf32>
    %506 = vector.broadcast %485 : vector<1x32xf32> to vector<8x32xf32>
    %507 = arith.addf %505, %506 : vector<8x32xf32>
    %508 = arith.truncf %507 : vector<8x32xf32> to vector<8x32xbf16>
    %c0_185 = arith.constant 0 : index
    %c0_186 = arith.constant 0 : index
    %509 = vector.load %arg28[%c0_185, %c0_186] : memref<32x64xbf16, #tpu.memory_space<vmem>>, vector<32x64xbf16>
    %cst_187 = arith.constant dense<0.000000e+00> : vector<8x64xf32>
    %510 = tpu.matmul %508, %509, %cst_187 {dimension_numbers = #tpu.dot_dimension_numbers<[1], [0], [0], [1], [0, 0, 1, 1], [], []>} : vector<8x32xbf16>, vector<32x64xbf16>, vector<8x64xf32> -> vector<8x64xf32>
    %c0_188 = arith.constant 0 : index
    %c0_189 = arith.constant 0 : index
    %511 = vector.load %arg29[%c0_188, %c0_189] : memref<1x64xf32, #tpu.memory_space<vmem>>, vector<1x64xf32>
    %512 = vector.broadcast %511 : vector<1x64xf32> to vector<8x64xf32>
    %513 = arith.addf %510, %512 : vector<8x64xf32>
    %514 = arith.negf %513 : vector<8x64xf32>
    %515 = math.exp %514 : vector<8x64xf32>
    %cst_190 = arith.constant 1.000000e+00 : f32
    %516 = vector.broadcast %cst_190 : f32 to vector<8x64xf32>
    %517 = arith.addf %516, %515 : vector<8x64xf32>
    %518 = arith.divf %516, %517 : vector<8x64xf32>
    %519 = arith.mulf %513, %518 : vector<8x64xf32>
    %520 = arith.truncf %519 : vector<8x64xf32> to vector<8x64xbf16>
    %c0_191 = arith.constant 0 : index
    %c0_192 = arith.constant 0 : index
    %521 = vector.load %arg30[%c0_191, %c0_192] : memref<64x32xbf16, #tpu.memory_space<vmem>>, vector<64x32xbf16>
    %cst_193 = arith.constant dense<0.000000e+00> : vector<8x32xf32>
    %522 = tpu.matmul %520, %521, %cst_193 {dimension_numbers = #tpu.dot_dimension_numbers<[1], [0], [0], [1], [0, 0, 1, 1], [], []>} : vector<8x64xbf16>, vector<64x32xbf16>, vector<8x32xf32> -> vector<8x32xf32>
    %c0_194 = arith.constant 0 : index
    %c0_195 = arith.constant 0 : index
    %523 = vector.load %arg31[%c0_194, %c0_195] : memref<1x32xf32, #tpu.memory_space<vmem>>, vector<1x32xf32>
    %524 = vector.broadcast %523 : vector<1x32xf32> to vector<8x32xf32>
    %525 = arith.addf %522, %524 : vector<8x32xf32>
    %cst_196 = arith.constant 5.000000e-01 : f32
    %526 = vector.broadcast %cst_196 : f32 to vector<8x32xf32>
    %527 = arith.mulf %526, %525 : vector<8x32xf32>
    %528 = arith.addf %527, %483 : vector<8x32xf32>
    %c0_197 = arith.constant 0 : index
    %c0_198 = arith.constant 0 : index
    %529 = vector.load %arg32[%c0_197, %c0_198] : memref<1x32xf32, #tpu.memory_space<vmem>>, vector<1x32xf32>
    %c0_199 = arith.constant 0 : index
    %c0_200 = arith.constant 0 : index
    %530 = vector.load %arg33[%c0_199, %c0_200] : memref<1x32xf32, #tpu.memory_space<vmem>>, vector<1x32xf32>
    %cst_201 = arith.constant dense<0.000000e+00> : vector<8xf32>
    %531 = vector.multi_reduction <add>, %528, %cst_201 [1] : vector<8x32xf32> to vector<8xf32>
    %532 = vector.shape_cast %531 : vector<8xf32> to vector<8x1xf32>
    %cst_202 = arith.constant 3.200000e+01 : f32
    %533 = vector.broadcast %cst_202 : f32 to vector<8x1xf32>
    %534 = arith.divf %532, %533 : vector<8x1xf32>
    %535 = vector.broadcast %534 : vector<8x1xf32> to vector<8x32xf32>
    %536 = arith.subf %528, %535 : vector<8x32xf32>
    %537 = arith.mulf %536, %536 : vector<8x32xf32>
    %cst_203 = arith.constant dense<0.000000e+00> : vector<8xf32>
    %538 = vector.multi_reduction <add>, %537, %cst_203 [1] : vector<8x32xf32> to vector<8xf32>
    %539 = vector.shape_cast %538 : vector<8xf32> to vector<8x1xf32>
    %cst_204 = arith.constant 3.200000e+01 : f32
    %540 = vector.broadcast %cst_204 : f32 to vector<8x1xf32>
    %541 = arith.divf %539, %540 : vector<8x1xf32>
    %542 = vector.broadcast %534 : vector<8x1xf32> to vector<8x32xf32>
    %543 = arith.subf %528, %542 : vector<8x32xf32>
    %cst_205 = arith.constant 9.99999974E-6 : f32
    %544 = vector.broadcast %cst_205 : f32 to vector<8x1xf32>
    %545 = arith.addf %541, %544 : vector<8x1xf32>
    %546 = math.rsqrt %545 : vector<8x1xf32>
    %547 = vector.broadcast %546 : vector<8x1xf32> to vector<8x32xf32>
    %548 = arith.mulf %543, %547 : vector<8x32xf32>
    %549 = vector.broadcast %529 : vector<1x32xf32> to vector<8x32xf32>
    %550 = arith.mulf %548, %549 : vector<8x32xf32>
    %551 = vector.broadcast %530 : vector<1x32xf32> to vector<8x32xf32>
    %552 = arith.addf %550, %551 : vector<8x32xf32>
    %c0_206 = arith.constant 0 : index
    %c0_207 = arith.constant 0 : index
    %c0_208 = arith.constant 0 : index
    %553 = vector.load %arg34[%c0_206, %c0_207, %c0_208] : memref<1x8x32xf32, #tpu.memory_space<vmem>>, vector<1x8x32xf32>
    %554 = vector.shape_cast %553 : vector<1x8x32xf32> to vector<8x32xf32>
    %555 = vector.shape_cast %552 : vector<8x32xf32> to vector<1x8x32xf32>
    tpu.vector_store %arg34[%c0_206, %c0_207, %c0_208], %555 {strides = array<i32>} : memref<1x8x32xf32, #tpu.memory_space<vmem>>, vector<1x8x32xf32>,
    return
  }
  func.func @transform_0(%arg0: i32) -> (i32, i32, i32) {
    %c0_i32 = arith.constant 0 : i32
    %c0_i32_0 = arith.constant 0 : i32
    %c0_i32_1 = arith.constant 0 : i32
    return %arg0, %c0_i32, %c0_i32_0 : i32, i32, i32
  }
  func.func @transform_1(%arg0: i32) -> (i32, i32, i32) {
    %c0_i32 = arith.constant 0 : i32
    %c0_i32_0 = arith.constant 0 : i32
    %c0_i32_1 = arith.constant 0 : i32
    return %arg0, %c0_i32, %c0_i32_0 : i32, i32, i32
  }
  func.func @transform_2(%arg0: i32) -> (i32, i32) {
    %c0_i32 = arith.constant 0 : i32
    %c0_i32_0 = arith.constant 0 : i32
    %c0_i32_1 = arith.constant 0 : i32
    return %c0_i32, %c0_i32_0 : i32, i32
  }
  func.func @transform_3(%arg0: i32) -> (i32, i32) {
    %c0_i32 = arith.constant 0 : i32
    %c0_i32_0 = arith.constant 0 : i32
    %c0_i32_1 = arith.constant 0 : i32
    return %c0_i32, %c0_i32_0 : i32, i32
  }
  func.func @transform_4(%arg0: i32) -> (i32, i32) {
    %c0_i32 = arith.constant 0 : i32
    %c0_i32_0 = arith.constant 0 : i32
    %c0_i32_1 = arith.constant 0 : i32
    return %c0_i32, %c0_i32_0 : i32, i32
  }
  func.func @transform_5(%arg0: i32) -> (i32, i32) {
    %c0_i32 = arith.constant 0 : i32
    %c0_i32_0 = arith.constant 0 : i32
    %c0_i32_1 = arith.constant 0 : i32
    return %c0_i32, %c0_i32_0 : i32, i32
  }
  func.func @transform_6(%arg0: i32) -> (i32, i32) {
    %c0_i32 = arith.constant 0 : i32
    %c0_i32_0 = arith.constant 0 : i32
    %c0_i32_1 = arith.constant 0 : i32
    return %c0_i32, %c0_i32_0 : i32, i32
  }
  func.func @transform_7(%arg0: i32) -> (i32, i32) {
    %c0_i32 = arith.constant 0 : i32
    %c0_i32_0 = arith.constant 0 : i32
    %c0_i32_1 = arith.constant 0 : i32
    return %c0_i32, %c0_i32_0 : i32, i32
  }
  func.func @transform_8(%arg0: i32) -> (i32, i32) {
    %c0_i32 = arith.constant 0 : i32
    %c0_i32_0 = arith.constant 0 : i32
    %c0_i32_1 = arith.constant 0 : i32
    return %c0_i32, %c0_i32_0 : i32, i32
  }
  func.func @transform_9(%arg0: i32) -> (i32, i32) {
    %c0_i32 = arith.constant 0 : i32
    %c0_i32_0 = arith.constant 0 : i32
    %c0_i32_1 = arith.constant 0 : i32
    return %c0_i32, %c0_i32_0 : i32, i32
  }
  func.func @transform_10(%arg0: i32) -> (i32, i32) {
    %c0_i32 = arith.constant 0 : i32
    %c0_i32_0 = arith.constant 0 : i32
    %c0_i32_1 = arith.constant 0 : i32
    return %c0_i32, %c0_i32_0 : i32, i32
  }
  func.func @transform_11(%arg0: i32) -> (i32, i32) {
    %c0_i32 = arith.constant 0 : i32
    %c0_i32_0 = arith.constant 0 : i32
    %c0_i32_1 = arith.constant 0 : i32
    return %c0_i32, %c0_i32_0 : i32, i32
  }
  func.func @transform_12(%arg0: i32) -> (i32, i32, i32) {
    %c0_i32 = arith.constant 0 : i32
    %c0_i32_0 = arith.constant 0 : i32
    %c0_i32_1 = arith.constant 0 : i32
    %c0_i32_2 = arith.constant 0 : i32
    return %c0_i32, %c0_i32_0, %c0_i32_1 : i32, i32, i32
  }
  func.func @transform_13(%arg0: i32) -> (i32, i32, i32) {
    %c0_i32 = arith.constant 0 : i32
    %c0_i32_0 = arith.constant 0 : i32
    %c0_i32_1 = arith.constant 0 : i32
    %c0_i32_2 = arith.constant 0 : i32
    return %c0_i32, %c0_i32_0, %c0_i32_1 : i32, i32, i32
  }
  func.func @transform_14(%arg0: i32) -> (i32, i32, i32) {
    %c0_i32 = arith.constant 0 : i32
    %c0_i32_0 = arith.constant 0 : i32
    %c0_i32_1 = arith.constant 0 : i32
    %c0_i32_2 = arith.constant 0 : i32
    return %c0_i32, %c0_i32_0, %c0_i32_1 : i32, i32, i32
  }
  func.func @transform_15(%arg0: i32) -> (i32, i32) {
    %c0_i32 = arith.constant 0 : i32
    %c0_i32_0 = arith.constant 0 : i32
    %c0_i32_1 = arith.constant 0 : i32
    return %c0_i32, %c0_i32_0 : i32, i32
  }
  func.func @transform_16(%arg0: i32) -> (i32, i32) {
    %c0_i32 = arith.constant 0 : i32
    %c0_i32_0 = arith.constant 0 : i32
    %c0_i32_1 = arith.constant 0 : i32
    return %c0_i32, %c0_i32_0 : i32, i32
  }
  func.func @transform_17(%arg0: i32) -> (i32, i32) {
    %c0_i32 = arith.constant 0 : i32
    %c0_i32_0 = arith.constant 0 : i32
    %c0_i32_1 = arith.constant 0 : i32
    return %c0_i32, %c0_i32_0 : i32, i32
  }
  func.func @transform_18(%arg0: i32) -> (i32, i32) {
    %c0_i32 = arith.constant 0 : i32
    %c0_i32_0 = arith.constant 0 : i32
    %c0_i32_1 = arith.constant 0 : i32
    return %c0_i32, %c0_i32_0 : i32, i32
  }
  func.func @transform_19(%arg0: i32) -> (i32, i32) {
    %c0_i32 = arith.constant 0 : i32
    %c0_i32_0 = arith.constant 0 : i32
    %c0_i32_1 = arith.constant 0 : i32
    return %c0_i32, %c0_i32_0 : i32, i32
  }
  func.func @transform_20(%arg0: i32) -> (i32, i32) {
    %c0_i32 = arith.constant 0 : i32
    %c0_i32_0 = arith.constant 0 : i32
    %c0_i32_1 = arith.constant 0 : i32
    return %c0_i32, %c0_i32_0 : i32, i32
  }
  func.func @transform_21(%arg0: i32) -> (i32, i32, i32) {
    %c0_i32 = arith.constant 0 : i32
    %c0_i32_0 = arith.constant 0 : i32
    %c0_i32_1 = arith.constant 0 : i32
    %c0_i32_2 = arith.constant 0 : i32
    return %c0_i32, %c0_i32_0, %c0_i32_1 : i32, i32, i32
  }
  func.func @transform_22(%arg0: i32) -> (i32, i32) {
    %c0_i32 = arith.constant 0 : i32
    %c0_i32_0 = arith.constant 0 : i32
    %c0_i32_1 = arith.constant 0 : i32
    return %c0_i32, %c0_i32_0 : i32, i32
  }
  func.func @transform_23(%arg0: i32) -> (i32, i32) {
    %c0_i32 = arith.constant 0 : i32
    %c0_i32_0 = arith.constant 0 : i32
    %c0_i32_1 = arith.constant 0 : i32
    return %c0_i32, %c0_i32_0 : i32, i32
  }
  func.func @transform_24(%arg0: i32) -> (i32, i32) {
    %c0_i32 = arith.constant 0 : i32
    %c0_i32_0 = arith.constant 0 : i32
    %c0_i32_1 = arith.constant 0 : i32
    return %c0_i32, %c0_i32_0 : i32, i32
  }
  func.func @transform_25(%arg0: i32) -> (i32, i32) {
    %c0_i32 = arith.constant 0 : i32
    %c0_i32_0 = arith.constant 0 : i32
    %c0_i32_1 = arith.constant 0 : i32
    return %c0_i32, %c0_i32_0 : i32, i32
  }
  func.func @transform_26(%arg0: i32) -> (i32, i32) {
    %c0_i32 = arith.constant 0 : i32
    %c0_i32_0 = arith.constant 0 : i32
    %c0_i32_1 = arith.constant 0 : i32
    return %c0_i32, %c0_i32_0 : i32, i32
  }
  func.func @transform_27(%arg0: i32) -> (i32, i32) {
    %c0_i32 = arith.constant 0 : i32
    %c0_i32_0 = arith.constant 0 : i32
    %c0_i32_1 = arith.constant 0 : i32
    return %c0_i32, %c0_i32_0 : i32, i32
  }
  func.func @transform_28(%arg0: i32) -> (i32, i32) {
    %c0_i32 = arith.constant 0 : i32
    %c0_i32_0 = arith.constant 0 : i32
    %c0_i32_1 = arith.constant 0 : i32
    return %c0_i32, %c0_i32_0 : i32, i32
  }
  func.func @transform_29(%arg0: i32) -> (i32, i32) {
    %c0_i32 = arith.constant 0 : i32
    %c0_i32_0 = arith.constant 0 : i32
    %c0_i32_1 = arith.constant 0 : i32
    return %c0_i32, %c0_i32_0 : i32, i32
  }
  func.func @transform_30(%arg0: i32) -> (i32, i32) {
    %c0_i32 = arith.constant 0 : i32
    %c0_i32_0 = arith.constant 0 : i32
    %c0_i32_1 = arith.constant 0 : i32
    return %c0_i32, %c0_i32_0 : i32, i32
  }
  func.func @transform_31(%arg0: i32) -> (i32, i32) {
    %c0_i32 = arith.constant 0 : i32
    %c0_i32_0 = arith.constant 0 : i32
    %c0_i32_1 = arith.constant 0 : i32
    return %c0_i32, %c0_i32_0 : i32, i32
  }
  func.func @transform_32(%arg0: i32) -> (i32, i32) {
    %c0_i32 = arith.constant 0 : i32
    %c0_i32_0 = arith.constant 0 : i32
    %c0_i32_1 = arith.constant 0 : i32
    return %c0_i32, %c0_i32_0 : i32, i32
  }
  func.func @transform_33(%arg0: i32) -> (i32, i32, i32) {
    %c0_i32 = arith.constant 0 : i32
    %c0_i32_0 = arith.constant 0 : i32
    %c0_i32_1 = arith.constant 0 : i32
    return %arg0, %c0_i32, %c0_i32_0 : i32, i32, i32
  }
}

</mosaic_0001>

<llo_original>
// kernel: tpu_custom_call.1
$region0: #{tpu_custom_call.1}
  #allocation0 [shape = 'u32[]', space=smem, size = 0x4, offset = 0x4, fixed_abs, tag = 'smem constant byte address 0x4 - core index']
  #allocation1 [shape = 'u32[72,128]{1,0:T(1,128)}', space=vmem, size = 0x9000, scoped, tag = 'internal scratch']
  %s0 = inlined_call_operand.smem [shape: u32[34], index: -1, kind: input, shape index: {}]
  %s1 = sld [smem:[%s0]]
  %s2 = scalar_lea.smem %s0, 1
  %s3 = sld [smem:[%s2]]
  %s4 = scalar_lea.smem %s0, 2
  %s5 = sld [smem:[%s4]]
  %s6 = scalar_lea.smem %s0, 3
  %s7 = sld [smem:[%s6]]
  %s8 = scalar_lea.smem %s0, 4
  %s9 = sld [smem:[%s8]]
  %s10 = scalar_lea.smem %s0, 5
  %s11 = sld [smem:[%s10]]
  %s12 = scalar_lea.smem %s0, 6
  %s13 = sld [smem:[%s12]]
  %s14 = scalar_lea.smem %s0, 7
  %s15 = sld [smem:[%s14]]
  %s16 = scalar_lea.smem %s0, 8
  %s17 = sld [smem:[%s16]]
  %s18 = scalar_lea.smem %s0, 9
  %s19 = sld [smem:[%s18]]
  %s20 = scalar_lea.smem %s0, 10
  %s21 = sld [smem:[%s20]]
  %s22 = scalar_lea.smem %s0, 11
  %s23 = sld [smem:[%s22]]
  %s24 = scalar_lea.smem %s0, 12
  %s25 = sld [smem:[%s24]]
  %s26 = scalar_lea.smem %s0, 13
  %s27 = sld [smem:[%s26]]
  %s28 = scalar_lea.smem %s0, 14
  %s29 = sld [smem:[%s28]]
  %s30 = scalar_lea.smem %s0, 15
  %s31 = sld [smem:[%s30]]
  %s32 = scalar_lea.smem %s0, 16
  %s33 = sld [smem:[%s32]]
  %s34 = scalar_lea.smem %s0, 17
  %s35 = sld [smem:[%s34]]
  %s36 = scalar_lea.smem %s0, 18
  %s37 = sld [smem:[%s36]]
  %s38 = scalar_lea.smem %s0, 19
  %s39 = sld [smem:[%s38]]
  %s40 = scalar_lea.smem %s0, 20
  %s41 = sld [smem:[%s40]]
  %s42 = scalar_lea.smem %s0, 21
  %s43 = sld [smem:[%s42]]
  %s44 = scalar_lea.smem %s0, 22
  %s45 = sld [smem:[%s44]]
  %s46 = scalar_lea.smem %s0, 23
  %s47 = sld [smem:[%s46]]
  %s48 = scalar_lea.smem %s0, 24
  %s49 = sld [smem:[%s48]]
  %s50 = scalar_lea.smem %s0, 25
  %s51 = sld [smem:[%s50]]
  %s52 = scalar_lea.smem %s0, 26
  %s53 = sld [smem:[%s52]]
  %s54 = scalar_lea.smem %s0, 27
  %s55 = sld [smem:[%s54]]
  %s56 = scalar_lea.smem %s0, 28
  %s57 = sld [smem:[%s56]]
  %s58 = scalar_lea.smem %s0, 29
  %s59 = sld [smem:[%s58]]
  %s60 = scalar_lea.smem %s0, 30
  %s61 = sld [smem:[%s60]]
  %s62 = scalar_lea.smem %s0, 31
  %s63 = sld [smem:[%s62]]
  %s64 = scalar_lea.smem %s0, 32
  %s65 = sld [smem:[%s64]]
  %s66 = scalar_lea.smem %s0, 33
  %s67 = sld [smem:[%s66]]
  %s68 = sld [smem:[#allocation0]]
  $region201: #{tpu_custom_call.1} parent=0
    _
  %s70 = ssub.s32 1, %s68
  %s71 = scalar_select 0, %s70, %s68
  $region1: #{tpu_custom_call.1} parent=0
    #allocation2 [shape = 'u8[1024]{0}', space=vmem, size = 0x400, scoped, tag = 'input window, operand 1']
    #allocation3 [shape = 's32[2]{0}', space=sflag, size = 0x8, scoped, tag = 'scoped memory for tpu_custom_call.1']
    #allocation4 [shape = 's32[2]{0}', space=sflag, size = 0x8, scoped, tag = 'scoped memory for tpu_custom_call.1']
    #allocation5 [shape = 'u8[512]{0}', space=vmem, size = 0x400, scoped, tag = 'input window, operand 2, single buffered']
    #allocation6 [shape = 's32[1]{0}', space=sflag, size = 0x4, scoped, tag = 'scoped memory for tpu_custom_call.1']
    #allocation7 [shape = 'u8[512]{0}', space=vmem, size = 0x400, scoped, tag = 'input window, operand 3, single buffered']
    #allocation8 [shape = 'u8[512]{0}', space=vmem, size = 0x400, scoped, tag = 'input window, operand 5, single buffered']
    #allocation9 [shape = 's32[1]{0}', space=sflag, size = 0x4, scoped, tag = 'scoped memory for tpu_custom_call.1']
    #allocation10 [shape = 'u8[512]{0}', space=vmem, size = 0x400, scoped, tag = 'input window, operand 7, single buffered']
    #allocation11 [shape = 'u8[512]{0}', space=vmem, size = 0x400, scoped, tag = 'input window, operand 8, single buffered']
    #allocation12 [shape = 's32[1]{0}', space=sflag, size = 0x4, scoped, tag = 'scoped memory for tpu_custom_call.1']
    #allocation13 [shape = 'u8[512]{0}', space=vmem, size = 0x400, scoped, tag = 'input window, operand 9, single buffered']
    #allocation14 [shape = 'u8[512]{0}', space=vmem, size = 0x400, scoped, tag = 'input window, operand 11, single buffered']
    #allocation15 [shape = 's32[1]{0}', space=sflag, size = 0x4, scoped, tag = 'scoped memory for tpu_custom_call.1']
    #allocation16 [shape = 'u8[2048]{0}', space=vmem, size = 0x800, scoped, tag = 'input window, operand 13, single buffered']
    #allocation17 [shape = 'u8[8192]{0}', space=vmem, size = 0x2000, scoped, tag = 'output window, operand 0']
    %72 = vsyncpa [#allocation3], 0
    %s73 = scalar_lea.sflag [#allocation3], 1
    %74 = vsyncpa %s73, 0
    %75 = vsyncpa [#allocation6], 0
    %76 = vsyncpa [#allocation9], 0
    %77 = vsyncpa [#allocation12], 0
    %78 = vsyncpa [#allocation15], 0
    %79 = vsyncpa [#allocation4], 0
    %s80 = scalar_lea.sflag [#allocation4], 1
    %81 = vsyncpa %s80, 0
    loop: start=0, step=1, limit=4
    $region2: #{tpu_custom_call.1} parent=1 // loop_pre_header
      _
    $region3: #{tpu_custom_call.1} parent=1 // loop_header
      %s83 = sphi 0, %s87
      %p84 = scmp.ge.s32.totalorder %s83, 4
      %s93 = sphi 0, %s95
      %s96 = sphi 0, %s93
      %s97 = sphi 0, %s96
      %s113 = sphi 0, %s97
      %s119 = sphi 0, %s121
      %s122 = sphi 0, %s119
      %s123 = sphi 0, %s122
      %s139 = sphi 0, %s123
      %s143 = sphi 0, %s143
      %s145 = sphi 0, %s143
      %s146 = sphi 0, %s145
      %s160 = sphi 0, %s146
      %s164 = sphi 0, %s164
      %s166 = sphi 0, %s164
      %s167 = sphi 0, %s166
      %s181 = sphi 0, %s167
      %s185 = sphi 0, %s185
      %s187 = sphi 0, %s185
      %s188 = sphi 0, %s187
      %s202 = sphi 0, %s188
      %s206 = sphi 0, %s206
      %s208 = sphi 0, %s206
      %s209 = sphi 0, %s208
      %s223 = sphi 0, %s209
      %s227 = sphi 0, %s227
      %s229 = sphi 0, %s227
      %s230 = sphi 0, %s229
      %s244 = sphi 0, %s230
      %s248 = sphi 0, %s248
      %s250 = sphi 0, %s248
      %s251 = sphi 0, %s250
      %s265 = sphi 0, %s251
      %s269 = sphi 0, %s269
      %s271 = sphi 0, %s269
      %s272 = sphi 0, %s271
      %s286 = sphi 0, %s272
      %s290 = sphi 0, %s290
      %s292 = sphi 0, %s290
      %s293 = sphi 0, %s292
      %s307 = sphi 0, %s293
      %s311 = sphi 0, %s311
      %s313 = sphi 0, %s311
      %s314 = sphi 0, %s313
      %s328 = sphi 0, %s314
      %s332 = sphi 0, %s332
      %s334 = sphi 0, %s332
      %s335 = sphi 0, %s334
      %s349 = sphi 0, %s335
      %s353 = sphi 0, %s353
      %s355 = sphi 0, %s353
      %s356 = sphi 0, %s355
      %s370 = sphi 0, %s356
      %s374 = sphi 0, %s374
      %s376 = sphi 0, %s374
      %s377 = sphi 0, %s376
      %s391 = sphi 0, %s377
      %s395 = sphi 0, %s395
      %s397 = sphi 0, %s395
      %s398 = sphi 0, %s397
      %s412 = sphi 0, %s398
      %s416 = sphi 0, %s416
      %s418 = sphi 0, %s416
      %s419 = sphi 0, %s418
      %s433 = sphi 0, %s419
      %s437 = sphi 0, %s437
      %s439 = sphi 0, %s437
      %s440 = sphi 0, %s439
      %s454 = sphi 0, %s440
      %s458 = sphi 0, %s458
      %s460 = sphi 0, %s458
      %s461 = sphi 0, %s460
      %s475 = sphi 0, %s461
      %s479 = sphi 0, %s479
      %s481 = sphi 0, %s479
      %s482 = sphi 0, %s481
      %s496 = sphi 0, %s482
      %s500 = sphi 0, %s500
      %s502 = sphi 0, %s500
      %s503 = sphi 0, %s502
      %s517 = sphi 0, %s503
      %s521 = sphi 0, %s521
      %s523 = sphi 0, %s521
      %s524 = sphi 0, %s523
      %s538 = sphi 0, %s524
      %s542 = sphi 0, %s542
      %s544 = sphi 0, %s542
      %s545 = sphi 0, %s544
      %s559 = sphi 0, %s545
      %s563 = sphi 0, %s563
      %s565 = sphi 0, %s563
      %s566 = sphi 0, %s565
      %s580 = sphi 0, %s566
      %s584 = sphi 0, %s584
      %s586 = sphi 0, %s584
      %s587 = sphi 0, %s586
      %s601 = sphi 0, %s587
      %s605 = sphi 0, %s605
      %s607 = sphi 0, %s605
      %s608 = sphi 0, %s607
      %s622 = sphi 0, %s608
      %s626 = sphi 0, %s626
      %s628 = sphi 0, %s626
      %s629 = sphi 0, %s628
      %s643 = sphi 0, %s629
      %s647 = sphi 0, %s647
      %s649 = sphi 0, %s647
      %s650 = sphi 0, %s649
      %s664 = sphi 0, %s650
      %s668 = sphi 0, %s668
      %s670 = sphi 0, %s668
      %s671 = sphi 0, %s670
      %s685 = sphi 0, %s671
      %s689 = sphi 0, %s689
      %s691 = sphi 0, %s689
      %s692 = sphi 0, %s691
      %s706 = sphi 0, %s692
      %s710 = sphi 0, %s710
      %s712 = sphi 0, %s710
      %s713 = sphi 0, %s712
      %s727 = sphi 0, %s713
      %s731 = sphi 0, %s731
      %s733 = sphi 0, %s731
      %s734 = sphi 0, %s733
      %s748 = sphi 0, %s734
      %s752 = sphi 0, %s752
      %s754 = sphi 0, %s752
      %s755 = sphi 0, %s754
      %s769 = sphi 0, %s755
      %s773 = sphi 0, %s773
      %s775 = sphi 0, %s773
      %s776 = sphi 0, %s775
      %s790 = sphi 0, %s776
      %s796 = sphi 0, %s798
      %s799 = sphi 0, %s796
      %s800 = sphi 0, %s799
      %s816 = sphi 0, %s800
    $region4: #{tpu_custom_call.1} parent=1 // loop_header_branch
      %86 = sbr.rel (%p84) target = $region8
    $region5: #{tpu_custom_call.1} parent=1 // loop_body
      %s88 = ssub.s32 %s83, 1
      %s89 = ssub.s32 %s83, 2
      %s90 = sadd.s32 %s83, 1
      %s91 = ssub.s32 %s83, %s90
      %p92 = scmp.eq.s32.totalorder %s91, 0
      %s94 = sadd.s32 %s93, 1
      %s95 = scalar_select %p92, %s93, %s94
      %p98 = pneg %p92
      %p99 = scmp.eq.s32.totalorder %s83, 1
      %p100 = por %p98, %p99
      %p101 = scmp.ne.s32.totalorder %s93, %s96
      %p102 = scmp.eq.s32.totalorder %s83, 0
      %p103 = por %p101, %p102
      %p104 = scmp.ne.s32.totalorder %s93, %s96
      %p105 = scmp.eq.s32.totalorder %s88, 1
      %p106 = por %p104, %p105
      %p107 = scmp.ne.s32.totalorder %s96, %s97
      %p108 = scmp.eq.s32.totalorder %s88, 0
      %p109 = por %p107, %p108
      %p110 = scmp.ne.s32.totalorder %s96, %s97
      %p111 = scmp.eq.s32.totalorder %s89, 1
      %p112 = por %p110, %p111
      %p114 = scmp.ne.s32.totalorder %s97, %s113
      %p115 = scmp.eq.s32.totalorder %s89, 0
      %p116 = por %p114, %p115
      %s117 = ssub.s32 %s83, %s90
      %p118 = scmp.eq.s32.totalorder %s117, 0
      %s120 = sadd.s32 %s119, 1
      %s121 = scalar_select %p118, %s119, %s120
      %p124 = pneg %p118
      %p125 = scmp.eq.s32.totalorder %s83, 1
      %p126 = por %p124, %p125
      %p127 = scmp.ne.s32.totalorder %s119, %s122
      %p128 = scmp.eq.s32.totalorder %s83, 0
      %p129 = por %p127, %p128
      %p130 = scmp.ne.s32.totalorder %s119, %s122
      %p131 = scmp.eq.s32.totalorder %s88, 1
      %p132 = por %p130, %p131
      %p133 = scmp.ne.s32.totalorder %s122, %s123
      %p134 = scmp.eq.s32.totalorder %s88, 0
      %p135 = por %p133, %p134
      %p136 = scmp.ne.s32.totalorder %s122, %s123
      %p137 = scmp.eq.s32.totalorder %s89, 1
      %p138 = por %p136, %p137
      %p140 = scmp.ne.s32.totalorder %s123, %s139
      %p141 = scmp.eq.s32.totalorder %s89, 0
      %p142 = por %p140, %p141
      %s144 = sadd.s32 %s143, 1
      %p147 = scmp.eq.s32.totalorder %s83, 1
      %p148 = scmp.ne.s32.totalorder %s143, %s145
      %p149 = scmp.eq.s32.totalorder %s83, 0
      %p150 = por %p148, %p149
      %p151 = scmp.ne.s32.totalorder %s143, %s145
      %p152 = scmp.eq.s32.totalorder %s88, 1
      %p153 = por %p151, %p152
      %p154 = scmp.ne.s32.totalorder %s145, %s146
      %p155 = scmp.eq.s32.totalorder %s88, 0
      %p156 = por %p154, %p155
      %p157 = scmp.ne.s32.totalorder %s145, %s146
      %p158 = scmp.eq.s32.totalorder %s89, 1
      %p159 = por %p157, %p158
      %p161 = scmp.ne.s32.totalorder %s146, %s160
      %p162 = scmp.eq.s32.totalorder %s89, 0
      %p163 = por %p161, %p162
      %s165 = sadd.s32 %s164, 1
      %p168 = scmp.eq.s32.totalorder %s83, 1
      %p169 = scmp.ne.s32.totalorder %s164, %s166
      %p170 = scmp.eq.s32.totalorder %s83, 0
      %p171 = por %p169, %p170
      %p172 = scmp.ne.s32.totalorder %s164, %s166
      %p173 = scmp.eq.s32.totalorder %s88, 1
      %p174 = por %p172, %p173
      %p175 = scmp.ne.s32.totalorder %s166, %s167
      %p176 = scmp.eq.s32.totalorder %s88, 0
      %p177 = por %p175, %p176
      %p178 = scmp.ne.s32.totalorder %s166, %s167
      %p179 = scmp.eq.s32.totalorder %s89, 1
      %p180 = por %p178, %p179
      %p182 = scmp.ne.s32.totalorder %s167, %s181
      %p183 = scmp.eq.s32.totalorder %s89, 0
      %p184 = por %p182, %p183
      %s186 = sadd.s32 %s185, 1
      %p189 = scmp.eq.s32.totalorder %s83, 1
      %p190 = scmp.ne.s32.totalorder %s185, %s187
      %p191 = scmp.eq.s32.totalorder %s83, 0
      %p192 = por %p190, %p191
      %p193 = scmp.ne.s32.totalorder %s185, %s187
      %p194 = scmp.eq.s32.totalorder %s88, 1
      %p195 = por %p193, %p194
      %p196 = scmp.ne.s32.totalorder %s187, %s188
      %p197 = scmp.eq.s32.totalorder %s88, 0
      %p198 = por %p196, %p197
      %p199 = scmp.ne.s32.totalorder %s187, %s188
      %p200 = scmp.eq.s32.totalorder %s89, 1
      %p201 = por %p199, %p200
      %p203 = scmp.ne.s32.totalorder %s188, %s202
      %p204 = scmp.eq.s32.totalorder %s89, 0
      %p205 = por %p203, %p204
      %s207 = sadd.s32 %s206, 1
      %p210 = scmp.eq.s32.totalorder %s83, 1
      %p211 = scmp.ne.s32.totalorder %s206, %s208
      %p212 = scmp.eq.s32.totalorder %s83, 0
      %p213 = por %p211, %p212
      %p214 = scmp.ne.s32.totalorder %s206, %s208
      %p215 = scmp.eq.s32.totalorder %s88, 1
      %p216 = por %p214, %p215
      %p217 = scmp.ne.s32.totalorder %s208, %s209
      %p218 = scmp.eq.s32.totalorder %s88, 0
      %p219 = por %p217, %p218
      %p220 = scmp.ne.s32.totalorder %s208, %s209
      %p221 = scmp.eq.s32.totalorder %s89, 1
      %p222 = por %p220, %p221
      %p224 = scmp.ne.s32.totalorder %s209, %s223
      %p225 = scmp.eq.s32.totalorder %s89, 0
      %p226 = por %p224, %p225
      %s228 = sadd.s32 %s227, 1
      %p231 = scmp.eq.s32.totalorder %s83, 1
      %p232 = scmp.ne.s32.totalorder %s227, %s229
      %p233 = scmp.eq.s32.totalorder %s83, 0
      %p234 = por %p232, %p233
      %p235 = scmp.ne.s32.totalorder %s227, %s229
      %p236 = scmp.eq.s32.totalorder %s88, 1
      %p237 = por %p235, %p236
      %p238 = scmp.ne.s32.totalorder %s229, %s230
      %p239 = scmp.eq.s32.totalorder %s88, 0
      %p240 = por %p238, %p239
      %p241 = scmp.ne.s32.totalorder %s229, %s230
      %p242 = scmp.eq.s32.totalorder %s89, 1
      %p243 = por %p241, %p242
      %p245 = scmp.ne.s32.totalorder %s230, %s244
      %p246 = scmp.eq.s32.totalorder %s89, 0
      %p247 = por %p245, %p246
      %s249 = sadd.s32 %s248, 1
      %p252 = scmp.eq.s32.totalorder %s83, 1
      %p253 = scmp.ne.s32.totalorder %s248, %s250
      %p254 = scmp.eq.s32.totalorder %s83, 0
      %p255 = por %p253, %p254
      %p256 = scmp.ne.s32.totalorder %s248, %s250
      %p257 = scmp.eq.s32.totalorder %s88, 1
      %p258 = por %p256, %p257
      %p259 = scmp.ne.s32.totalorder %s250, %s251
      %p260 = scmp.eq.s32.totalorder %s88, 0
      %p261 = por %p259, %p260
      %p262 = scmp.ne.s32.totalorder %s250, %s251
      %p263 = scmp.eq.s32.totalorder %s89, 1
      %p264 = por %p262, %p263
      %p266 = scmp.ne.s32.totalorder %s251, %s265
      %p267 = scmp.eq.s32.totalorder %s89, 0
      %p268 = por %p266, %p267
      %s270 = sadd.s32 %s269, 1
      %p273 = scmp.eq.s32.totalorder %s83, 1
      %p274 = scmp.ne.s32.totalorder %s269, %s271
      %p275 = scmp.eq.s32.totalorder %s83, 0
      %p276 = por %p274, %p275
      %p277 = scmp.ne.s32.totalorder %s269, %s271
      %p278 = scmp.eq.s32.totalorder %s88, 1
      %p279 = por %p277, %p278
      %p280 = scmp.ne.s32.totalorder %s271, %s272
      %p281 = scmp.eq.s32.totalorder %s88, 0
      %p282 = por %p280, %p281
      %p283 = scmp.ne.s32.totalorder %s271, %s272
      %p284 = scmp.eq.s32.totalorder %s89, 1
      %p285 = por %p283, %p284
      %p287 = scmp.ne.s32.totalorder %s272, %s286
      %p288 = scmp.eq.s32.totalorder %s89, 0
      %p289 = por %p287, %p288
      %s291 = sadd.s32 %s290, 1
      %p294 = scmp.eq.s32.totalorder %s83, 1
      %p295 = scmp.ne.s32.totalorder %s290, %s292
      %p296 = scmp.eq.s32.totalorder %s83, 0
      %p297 = por %p295, %p296
      %p298 = scmp.ne.s32.totalorder %s290, %s292
      %p299 = scmp.eq.s32.totalorder %s88, 1
      %p300 = por %p298, %p299
      %p301 = scmp.ne.s32.totalorder %s292, %s293
      %p302 = scmp.eq.s32.totalorder %s88, 0
      %p303 = por %p301, %p302
      %p304 = scmp.ne.s32.totalorder %s292, %s293
      %p305 = scmp.eq.s32.totalorder %s89, 1
      %p306 = por %p304, %p305
      %p308 = scmp.ne.s32.totalorder %s293, %s307
      %p309 = scmp.eq.s32.totalorder %s89, 0
      %p310 = por %p308, %p309
      %s312 = sadd.s32 %s311, 1
      %p315 = scmp.eq.s32.totalorder %s83, 1
      %p316 = scmp.ne.s32.totalorder %s311, %s313
      %p317 = scmp.eq.s32.totalorder %s83, 0
      %p318 = por %p316, %p317
      %p319 = scmp.ne.s32.totalorder %s311, %s313
      %p320 = scmp.eq.s32.totalorder %s88, 1
      %p321 = por %p319, %p320
      %p322 = scmp.ne.s32.totalorder %s313, %s314
      %p323 = scmp.eq.s32.totalorder %s88, 0
      %p324 = por %p322, %p323
      %p325 = scmp.ne.s32.totalorder %s313, %s314
      %p326 = scmp.eq.s32.totalorder %s89, 1
      %p327 = por %p325, %p326
      %p329 = scmp.ne.s32.totalorder %s314, %s328
      %p330 = scmp.eq.s32.totalorder %s89, 0
      %p331 = por %p329, %p330
      %s333 = sadd.s32 %s332, 1
      %p336 = scmp.eq.s32.totalorder %s83, 1
      %p337 = scmp.ne.s32.totalorder %s332, %s334
      %p338 = scmp.eq.s32.totalorder %s83, 0
      %p339 = por %p337, %p338
      %p340 = scmp.ne.s32.totalorder %s332, %s334
      %p341 = scmp.eq.s32.totalorder %s88, 1
      %p342 = por %p340, %p341
      %p343 = scmp.ne.s32.totalorder %s334, %s335
      %p344 = scmp.eq.s32.totalorder %s88, 0
      %p345 = por %p343, %p344
      %p346 = scmp.ne.s32.totalorder %s334, %s335
      %p347 = scmp.eq.s32.totalorder %s89, 1
      %p348 = por %p346, %p347
      %p350 = scmp.ne.s32.totalorder %s335, %s349
      %p351 = scmp.eq.s32.totalorder %s89, 0
      %p352 = por %p350, %p351
      %s354 = sadd.s32 %s353, 1
      %p357 = scmp.eq.s32.totalorder %s83, 1
      %p358 = scmp.ne.s32.totalorder %s353, %s355
      %p359 = scmp.eq.s32.totalorder %s83, 0
      %p360 = por %p358, %p359
      %p361 = scmp.ne.s32.totalorder %s353, %s355
      %p362 = scmp.eq.s32.totalorder %s88, 1
      %p363 = por %p361, %p362
      %p364 = scmp.ne.s32.totalorder %s355, %s356
      %p365 = scmp.eq.s32.totalorder %s88, 0
      %p366 = por %p364, %p365
      %p367 = scmp.ne.s32.totalorder %s355, %s356
      %p368 = scmp.eq.s32.totalorder %s89, 1
      %p369 = por %p367, %p368
      %p371 = scmp.ne.s32.totalorder %s356, %s370
      %p372 = scmp.eq.s32.totalorder %s89, 0
      %p373 = por %p371, %p372
      %s375 = sadd.s32 %s374, 1
      %p378 = scmp.eq.s32.totalorder %s83, 1
      %p379 = scmp.ne.s32.totalorder %s374, %s376
      %p380 = scmp.eq.s32.totalorder %s83, 0
      %p381 = por %p379, %p380
      %p382 = scmp.ne.s32.totalorder %s374, %s376
      %p383 = scmp.eq.s32.totalorder %s88, 1
      %p384 = por %p382, %p383
      %p385 = scmp.ne.s32.totalorder %s376, %s377
      %p386 = scmp.eq.s32.totalorder %s88, 0
      %p387 = por %p385, %p386
      %p388 = scmp.ne.s32.totalorder %s376, %s377
      %p389 = scmp.eq.s32.totalorder %s89, 1
      %p390 = por %p388, %p389
      %p392 = scmp.ne.s32.totalorder %s377, %s391
      %p393 = scmp.eq.s32.totalorder %s89, 0
      %p394 = por %p392, %p393
      %s396 = sadd.s32 %s395, 1
      %p399 = scmp.eq.s32.totalorder %s83, 1
      %p400 = scmp.ne.s32.totalorder %s395, %s397
      %p401 = scmp.eq.s32.totalorder %s83, 0
      %p402 = por %p400, %p401
      %p403 = scmp.ne.s32.totalorder %s395, %s397
      %p404 = scmp.eq.s32.totalorder %s88, 1
      %p405 = por %p403, %p404
      %p406 = scmp.ne.s32.totalorder %s397, %s398
      %p407 = scmp.eq.s32.totalorder %s88, 0
      %p408 = por %p406, %p407
      %p409 = scmp.ne.s32.totalorder %s397, %s398
      %p410 = scmp.eq.s32.totalorder %s89, 1
      %p411 = por %p409, %p410
      %p413 = scmp.ne.s32.totalorder %s398, %s412
      %p414 = scmp.eq.s32.totalorder %s89, 0
      %p415 = por %p413, %p414
      %s417 = sadd.s32 %s416, 1
      %p420 = scmp.eq.s32.totalorder %s83, 1
      %p421 = scmp.ne.s32.totalorder %s416, %s418
      %p422 = scmp.eq.s32.totalorder %s83, 0
      %p423 = por %p421, %p422
      %p424 = scmp.ne.s32.totalorder %s416, %s418
      %p425 = scmp.eq.s32.totalorder %s88, 1
      %p426 = por %p424, %p425
      %p427 = scmp.ne.s32.totalorder %s418, %s419
      %p428 = scmp.eq.s32.totalorder %s88, 0
      %p429 = por %p427, %p428
      %p430 = scmp.ne.s32.totalorder %s418, %s419
      %p431 = scmp.eq.s32.totalorder %s89, 1
      %p432 = por %p430, %p431
      %p434 = scmp.ne.s32.totalorder %s419, %s433
      %p435 = scmp.eq.s32.totalorder %s89, 0
      %p436 = por %p434, %p435
      %s438 = sadd.s32 %s437, 1
      %p441 = scmp.eq.s32.totalorder %s83, 1
      %p442 = scmp.ne.s32.totalorder %s437, %s439
      %p443 = scmp.eq.s32.totalorder %s83, 0
      %p444 = por %p442, %p443
      %p445 = scmp.ne.s32.totalorder %s437, %s439
      %p446 = scmp.eq.s32.totalorder %s88, 1
      %p447 = por %p445, %p446
      %p448 = scmp.ne.s32.totalorder %s439, %s440
      %p449 = scmp.eq.s32.totalorder %s88, 0
      %p450 = por %p448, %p449
      %p451 = scmp.ne.s32.totalorder %s439, %s440
      %p452 = scmp.eq.s32.totalorder %s89, 1
      %p453 = por %p451, %p452
      %p455 = scmp.ne.s32.totalorder %s440, %s454
      %p456 = scmp.eq.s32.totalorder %s89, 0
      %p457 = por %p455, %p456
      %s459 = sadd.s32 %s458, 1
      %p462 = scmp.eq.s32.totalorder %s83, 1
      %p463 = scmp.ne.s32.totalorder %s458, %s460
      %p464 = scmp.eq.s32.totalorder %s83, 0
      %p465 = por %p463, %p464
      %p466 = scmp.ne.s32.totalorder %s458, %s460
      %p467 = scmp.eq.s32.totalorder %s88, 1
      %p468 = por %p466, %p467
      %p469 = scmp.ne.s32.totalorder %s460, %s461
      %p470 = scmp.eq.s32.totalorder %s88, 0
      %p471 = por %p469, %p470
      %p472 = scmp.ne.s32.totalorder %s460, %s461
      %p473 = scmp.eq.s32.totalorder %s89, 1
      %p474 = por %p472, %p473
      %p476 = scmp.ne.s32.totalorder %s461, %s475
      %p477 = scmp.eq.s32.totalorder %s89, 0
      %p478 = por %p476, %p477
      %s480 = sadd.s32 %s479, 1
      %p483 = scmp.eq.s32.totalorder %s83, 1
      %p484 = scmp.ne.s32.totalorder %s479, %s481
      %p485 = scmp.eq.s32.totalorder %s83, 0
      %p486 = por %p484, %p485
      %p487 = scmp.ne.s32.totalorder %s479, %s481
      %p488 = scmp.eq.s32.totalorder %s88, 1
      %p489 = por %p487, %p488
      %p490 = scmp.ne.s32.totalorder %s481, %s482
      %p491 = scmp.eq.s32.totalorder %s88, 0
      %p492 = por %p490, %p491
      %p493 = scmp.ne.s32.totalorder %s481, %s482
      %p494 = scmp.eq.s32.totalorder %s89, 1
      %p495 = por %p493, %p494
      %p497 = scmp.ne.s32.totalorder %s482, %s496
      %p498 = scmp.eq.s32.totalorder %s89, 0
      %p499 = por %p497, %p498
      %s501 = sadd.s32 %s500, 1
      %p504 = scmp.eq.s32.totalorder %s83, 1
      %p505 = scmp.ne.s32.totalorder %s500, %s502
      %p506 = scmp.eq.s32.totalorder %s83, 0
      %p507 = por %p505, %p506
      %p508 = scmp.ne.s32.totalorder %s500, %s502
      %p509 = scmp.eq.s32.totalorder %s88, 1
      %p510 = por %p508, %p509
      %p511 = scmp.ne.s32.totalorder %s502, %s503
      %p512 = scmp.eq.s32.totalorder %s88, 0
      %p513 = por %p511, %p512
      %p514 = scmp.ne.s32.totalorder %s502, %s503
      %p515 = scmp.eq.s32.totalorder %s89, 1
      %p516 = por %p514, %p515
      %p518 = scmp.ne.s32.totalorder %s503, %s517
      %p519 = scmp.eq.s32.totalorder %s89, 0
      %p520 = por %p518, %p519
      %s522 = sadd.s32 %s521, 1
      %p525 = scmp.eq.s32.totalorder %s83, 1
      %p526 = scmp.ne.s32.totalorder %s521, %s523
      %p527 = scmp.eq.s32.totalorder %s83, 0
      %p528 = por %p526, %p527
      %p529 = scmp.ne.s32.totalorder %s521, %s523
      %p530 = scmp.eq.s32.totalorder %s88, 1
      %p531 = por %p529, %p530
      %p532 = scmp.ne.s32.totalorder %s523, %s524
      %p533 = scmp.eq.s32.totalorder %s88, 0
      %p534 = por %p532, %p533
      %p535 = scmp.ne.s32.totalorder %s523, %s524
      %p536 = scmp.eq.s32.totalorder %s89, 1
      %p537 = por %p535, %p536
      %p539 = scmp.ne.s32.totalorder %s524, %s538
      %p540 = scmp.eq.s32.totalorder %s89, 0
      %p541 = por %p539, %p540
      %s543 = sadd.s32 %s542, 1
      %p546 = scmp.eq.s32.totalorder %s83, 1
      %p547 = scmp.ne.s32.totalorder %s542, %s544
      %p548 = scmp.eq.s32.totalorder %s83, 0
      %p549 = por %p547, %p548
      %p550 = scmp.ne.s32.totalorder %s542, %s544
      %p551 = scmp.eq.s32.totalorder %s88, 1
      %p552 = por %p550, %p551
      %p553 = scmp.ne.s32.totalorder %s544, %s545
      %p554 = scmp.eq.s32.totalorder %s88, 0
      %p555 = por %p553, %p554
      %p556 = scmp.ne.s32.totalorder %s544, %s545
      %p557 = scmp.eq.s32.totalorder %s89, 1
      %p558 = por %p556, %p557
      %p560 = scmp.ne.s32.totalorder %s545, %s559
      %p561 = scmp.eq.s32.totalorder %s89, 0
      %p562 = por %p560, %p561
      %s564 = sadd.s32 %s563, 1
      %p567 = scmp.eq.s32.totalorder %s83, 1
      %p568 = scmp.ne.s32.totalorder %s563, %s565
      %p569 = scmp.eq.s32.totalorder %s83, 0
      %p570 = por %p568, %p569
      %p571 = scmp.ne.s32.totalorder %s563, %s565
      %p572 = scmp.eq.s32.totalorder %s88, 1
      %p573 = por %p571, %p572
      %p574 = scmp.ne.s32.totalorder %s565, %s566
      %p575 = scmp.eq.s32.totalorder %s88, 0
      %p576 = por %p574, %p575
      %p577 = scmp.ne.s32.totalorder %s565, %s566
      %p578 = scmp.eq.s32.totalorder %s89, 1
      %p579 = por %p577, %p578
      %p581 = scmp.ne.s32.totalorder %s566, %s580
      %p582 = scmp.eq.s32.totalorder %s89, 0
      %p583 = por %p581, %p582
      %s585 = sadd.s32 %s584, 1
      %p588 = scmp.eq.s32.totalorder %s83, 1
      %p589 = scmp.ne.s32.totalorder %s584, %s586
      %p590 = scmp.eq.s32.totalorder %s83, 0
      %p591 = por %p589, %p590
      %p592 = scmp.ne.s32.totalorder %s584, %s586
      %p593 = scmp.eq.s32.totalorder %s88, 1
      %p594 = por %p592, %p593
      %p595 = scmp.ne.s32.totalorder %s586, %s587
      %p596 = scmp.eq.s32.totalorder %s88, 0
      %p597 = por %p595, %p596
      %p598 = scmp.ne.s32.totalorder %s586, %s587
      %p599 = scmp.eq.s32.totalorder %s89, 1
      %p600 = por %p598, %p599
      %p602 = scmp.ne.s32.totalorder %s587, %s601
      %p603 = scmp.eq.s32.totalorder %s89, 0
      %p604 = por %p602, %p603
      %s606 = sadd.s32 %s605, 1
      %p609 = scmp.eq.s32.totalorder %s83, 1
      %p610 = scmp.ne.s32.totalorder %s605, %s607
      %p611 = scmp.eq.s32.totalorder %s83, 0
      %p612 = por %p610, %p611
      %p613 = scmp.ne.s32.totalorder %s605, %s607
      %p614 = scmp.eq.s32.totalorder %s88, 1
      %p615 = por %p613, %p614
      %p616 = scmp.ne.s32.totalorder %s607, %s608
      %p617 = scmp.eq.s32.totalorder %s88, 0
      %p618 = por %p616, %p617
      %p619 = scmp.ne.s32.totalorder %s607, %s608
      %p620 = scmp.eq.s32.totalorder %s89, 1
      %p621 = por %p619, %p620
      %p623 = scmp.ne.s32.totalorder %s608, %s622
      %p624 = scmp.eq.s32.totalorder %s89, 0
      %p625 = por %p623, %p624
      %s627 = sadd.s32 %s626, 1
      %p630 = scmp.eq.s32.totalorder %s83, 1
      %p631 = scmp.ne.s32.totalorder %s626, %s628
      %p632 = scmp.eq.s32.totalorder %s83, 0
      %p633 = por %p631, %p632
      %p634 = scmp.ne.s32.totalorder %s626, %s628
      %p635 = scmp.eq.s32.totalorder %s88, 1
      %p636 = por %p634, %p635
      %p637 = scmp.ne.s32.totalorder %s628, %s629
      %p638 = scmp.eq.s32.totalorder %s88, 0
      %p639 = por %p637, %p638
      %p640 = scmp.ne.s32.totalorder %s628, %s629
      %p641 = scmp.eq.s32.totalorder %s89, 1
      %p642 = por %p640, %p641
      %p644 = scmp.ne.s32.totalorder %s629, %s643
      %p645 = scmp.eq.s32.totalorder %s89, 0
      %p646 = por %p644, %p645
      %s648 = sadd.s32 %s647, 1
      %p651 = scmp.eq.s32.totalorder %s83, 1
      %p652 = scmp.ne.s32.totalorder %s647, %s649
      %p653 = scmp.eq.s32.totalorder %s83, 0
      %p654 = por %p652, %p653
      %p655 = scmp.ne.s32.totalorder %s647, %s649
      %p656 = scmp.eq.s32.totalorder %s88, 1
      %p657 = por %p655, %p656
      %p658 = scmp.ne.s32.totalorder %s649, %s650
      %p659 = scmp.eq.s32.totalorder %s88, 0
      %p660 = por %p658, %p659
      %p661 = scmp.ne.s32.totalorder %s649, %s650
      %p662 = scmp.eq.s32.totalorder %s89, 1
      %p663 = por %p661, %p662
      %p665 = scmp.ne.s32.totalorder %s650, %s664
      %p666 = scmp.eq.s32.totalorder %s89, 0
      %p667 = por %p665, %p666
      %s669 = sadd.s32 %s668, 1
      %p672 = scmp.eq.s32.totalorder %s83, 1
      %p673 = scmp.ne.s32.totalorder %s668, %s670
      %p674 = scmp.eq.s32.totalorder %s83, 0
      %p675 = por %p673, %p674
      %p676 = scmp.ne.s32.totalorder %s668, %s670
      %p677 = scmp.eq.s32.totalorder %s88, 1
      %p678 = por %p676, %p677
      %p679 = scmp.ne.s32.totalorder %s670, %s671
      %p680 = scmp.eq.s32.totalorder %s88, 0
      %p681 = por %p679, %p680
      %p682 = scmp.ne.s32.totalorder %s670, %s671
      %p683 = scmp.eq.s32.totalorder %s89, 1
      %p684 = por %p682, %p683
      %p686 = scmp.ne.s32.totalorder %s671, %s685
      %p687 = scmp.eq.s32.totalorder %s89, 0
      %p688 = por %p686, %p687
      %s690 = sadd.s32 %s689, 1
      %p693 = scmp.eq.s32.totalorder %s83, 1
      %p694 = scmp.ne.s32.totalorder %s689, %s691
      %p695 = scmp.eq.s32.totalorder %s83, 0
      %p696 = por %p694, %p695
      %p697 = scmp.ne.s32.totalorder %s689, %s691
      %p698 = scmp.eq.s32.totalorder %s88, 1
      %p699 = por %p697, %p698
      %p700 = scmp.ne.s32.totalorder %s691, %s692
      %p701 = scmp.eq.s32.totalorder %s88, 0
      %p702 = por %p700, %p701
      %p703 = scmp.ne.s32.totalorder %s691, %s692
      %p704 = scmp.eq.s32.totalorder %s89, 1
      %p705 = por %p703, %p704
      %p707 = scmp.ne.s32.totalorder %s692, %s706
      %p708 = scmp.eq.s32.totalorder %s89, 0
      %p709 = por %p707, %p708
      %s711 = sadd.s32 %s710, 1
      %p714 = scmp.eq.s32.totalorder %s83, 1
      %p715 = scmp.ne.s32.totalorder %s710, %s712
      %p716 = scmp.eq.s32.totalorder %s83, 0
      %p717 = por %p715, %p716
      %p718 = scmp.ne.s32.totalorder %s710, %s712
      %p719 = scmp.eq.s32.totalorder %s88, 1
      %p720 = por %p718, %p719
      %p721 = scmp.ne.s32.totalorder %s712, %s713
      %p722 = scmp.eq.s32.totalorder %s88, 0
      %p723 = por %p721, %p722
      %p724 = scmp.ne.s32.totalorder %s712, %s713
      %p725 = scmp.eq.s32.totalorder %s89, 1
      %p726 = por %p724, %p725
      %p728 = scmp.ne.s32.totalorder %s713, %s727
      %p729 = scmp.eq.s32.totalorder %s89, 0
      %p730 = por %p728, %p729
      %s732 = sadd.s32 %s731, 1
      %p735 = scmp.eq.s32.totalorder %s83, 1
      %p736 = scmp.ne.s32.totalorder %s731, %s733
      %p737 = scmp.eq.s32.totalorder %s83, 0
      %p738 = por %p736, %p737
      %p739 = scmp.ne.s32.totalorder %s731, %s733
      %p740 = scmp.eq.s32.totalorder %s88, 1
      %p741 = por %p739, %p740
      %p742 = scmp.ne.s32.totalorder %s733, %s734
      %p743 = scmp.eq.s32.totalorder %s88, 0
      %p744 = por %p742, %p743
      %p745 = scmp.ne.s32.totalorder %s733, %s734
      %p746 = scmp.eq.s32.totalorder %s89, 1
      %p747 = por %p745, %p746
      %p749 = scmp.ne.s32.totalorder %s734, %s748
      %p750 = scmp.eq.s32.totalorder %s89, 0
      %p751 = por %p749, %p750
      %s753 = sadd.s32 %s752, 1
      %p756 = scmp.eq.s32.totalorder %s83, 1
      %p757 = scmp.ne.s32.totalorder %s752, %s754
      %p758 = scmp.eq.s32.totalorder %s83, 0
      %p759 = por %p757, %p758
      %p760 = scmp.ne.s32.totalorder %s752, %s754
      %p761 = scmp.eq.s32.totalorder %s88, 1
      %p762 = por %p760, %p761
      %p763 = scmp.ne.s32.totalorder %s754, %s755
      %p764 = scmp.eq.s32.totalorder %s88, 0
      %p765 = por %p763, %p764
      %p766 = scmp.ne.s32.totalorder %s754, %s755
      %p767 = scmp.eq.s32.totalorder %s89, 1
      %p768 = por %p766, %p767
      %p770 = scmp.ne.s32.totalorder %s755, %s769
      %p771 = scmp.eq.s32.totalorder %s89, 0
      %p772 = por %p770, %p771
      %s774 = sadd.s32 %s773, 1
      %p777 = scmp.eq.s32.totalorder %s83, 1
      %p778 = scmp.ne.s32.totalorder %s773, %s775
      %p779 = scmp.eq.s32.totalorder %s83, 0
      %p780 = por %p778, %p779
      %p781 = scmp.ne.s32.totalorder %s773, %s775
      %p782 = scmp.eq.s32.totalorder %s88, 1
      %p783 = por %p781, %p782
      %p784 = scmp.ne.s32.totalorder %s775, %s776
      %p785 = scmp.eq.s32.totalorder %s88, 0
      %p786 = por %p784, %p785
      %p787 = scmp.ne.s32.totalorder %s775, %s776
      %p788 = scmp.eq.s32.totalorder %s89, 1
      %p789 = por %p787, %p788
      %p791 = scmp.ne.s32.totalorder %s776, %s790
      %p792 = scmp.eq.s32.totalorder %s89, 0
      %p793 = por %p791, %p792
      %s794 = ssub.s32 %s83, %s90
      %p795 = scmp.eq.s32.totalorder %s794, 0
      %s797 = sadd.s32 %s796, 1
      %s798 = scalar_select %p795, %s796, %s797
      %p801 = pneg %p795
      %p802 = scmp.eq.s32.totalorder %s83, 1
      %p803 = por %p801, %p802
      %p804 = scmp.ne.s32.totalorder %s796, %s799
      %p805 = scmp.eq.s32.totalorder %s83, 0
      %p806 = por %p804, %p805
      %p807 = scmp.ne.s32.totalorder %s796, %s799
      %p808 = scmp.eq.s32.totalorder %s88, 1
      %p809 = por %p807, %p808
      %p810 = scmp.ne.s32.totalorder %s799, %s800
      %p811 = scmp.eq.s32.totalorder %s88, 0
      %p812 = por %p810, %p811
      %p813 = scmp.ne.s32.totalorder %s799, %s800
      %p814 = scmp.eq.s32.totalorder %s89, 1
      %p815 = por %p813, %p814
      %p817 = scmp.ne.s32.totalorder %s800, %s816
      %p818 = scmp.eq.s32.totalorder %s89, 0
      %p819 = por %p817, %p818
      %p820 = scmp.le.s32.totalorder 1, %s83
      %p821 = scmp.lt.s32.totalorder %s83, 3
      %p822 = pnand %p820, %p821
      %p823 = pneg %p822
      // Predicated region
      $region9: #{tpu_custom_call.1} parent=5 // pred_check
        _
      $region10: #{tpu_custom_call.1} parent=5 // pred_check_branch
        %825 = sbr.rel (%p822) target = $region12
      $region11: #{tpu_custom_call.1} parent=5 // pred_region
        %s826 = ssub.s32 %s83, 1
        // Predicated region
        $region13: #{tpu_custom_call.1} parent=11 // pred_check
          %p827 = pneg %p156
        $region14: #{tpu_custom_call.1} parent=11 // pred_check_branch
          %829 = sbr.rel (%p827) target = $region16
        $region15: #{tpu_custom_call.1} parent=11 // pred_region
          %831 = vsyncadd [#allocation6], 0
          %s833 = sshll.u32 %s5, 4
          %s834 = int_to_ptr.hbm [resolvable:$true] %s833
          %s835 = sshll.u32 [#allocation5], 4
          %s836 = int_to_ptr.vmem [resolvable:$true] %s835
          %838 = dma.hbm_to_vmem [thread:$0]  %s834, 16, %s836, [#allocation6]
        $region16: #{tpu_custom_call.1} parent=11 // pred_fallthru
          _
        // Predicated region
        $region17: #{tpu_custom_call.1} parent=11 // pred_check
          %p839 = pneg %p177
        $region18: #{tpu_custom_call.1} parent=11 // pred_check_branch
          %841 = sbr.rel (%p839) target = $region20
        $region19: #{tpu_custom_call.1} parent=11 // pred_region
          %843 = vsyncadd [#allocation6], 0
          %s845 = sshll.u32 %s7, 4
          %s846 = int_to_ptr.hbm [resolvable:$true] %s845
          %s847 = sshll.u32 [#allocation7], 4
          %s848 = int_to_ptr.vmem [resolvable:$true] %s847
          %850 = dma.hbm_to_vmem [thread:$0]  %s846, 16, %s848, [#allocation6]
        $region20: #{tpu_custom_call.1} parent=11 // pred_fallthru
          _
        // Predicated region
        $region21: #{tpu_custom_call.1} parent=11 // pred_check
          %p851 = pneg %p198
        $region22: #{tpu_custom_call.1} parent=11 // pred_check_branch
          %853 = sbr.rel (%p851) target = $region24
        $region23: #{tpu_custom_call.1} parent=11 // pred_region
          _
        $region24: #{tpu_custom_call.1} parent=11 // pred_fallthru
          _
        // Predicated region
        $region25: #{tpu_custom_call.1} parent=11 // pred_check
          %p854 = pneg %p219
        $region26: #{tpu_custom_call.1} parent=11 // pred_check_branch
          %856 = sbr.rel (%p854) target = $region28
        $region27: #{tpu_custom_call.1} parent=11 // pred_region
          %858 = vsyncadd [#allocation9], 0
          %s860 = sshll.u32 %s11, 4
          %s861 = int_to_ptr.hbm [resolvable:$true] %s860
          %s862 = sshll.u32 [#allocation8], 4
          %s863 = int_to_ptr.vmem [resolvable:$true] %s862
          %865 = dma.hbm_to_vmem [thread:$0]  %s861, 16, %s863, [#allocation9]
        $region28: #{tpu_custom_call.1} parent=11 // pred_fallthru
          _
        // Predicated region
        $region29: #{tpu_custom_call.1} parent=11 // pred_check
          %p866 = pneg %p240
        $region30: #{tpu_custom_call.1} parent=11 // pred_check_branch
          %868 = sbr.rel (%p866) target = $region32
        $region31: #{tpu_custom_call.1} parent=11 // pred_region
          _
        $region32: #{tpu_custom_call.1} parent=11 // pred_fallthru
          _
        // Predicated region
        $region33: #{tpu_custom_call.1} parent=11 // pred_check
          %p869 = pneg %p261
        $region34: #{tpu_custom_call.1} parent=11 // pred_check_branch
          %871 = sbr.rel (%p869) target = $region36
        $region35: #{tpu_custom_call.1} parent=11 // pred_region
          %873 = vsyncadd [#allocation9], 0
          %s875 = sshll.u32 %s15, 4
          %s876 = int_to_ptr.hbm [resolvable:$true] %s875
          %s877 = sshll.u32 [#allocation10], 4
          %s878 = int_to_ptr.vmem [resolvable:$true] %s877
          %880 = dma.hbm_to_vmem [thread:$0]  %s876, 16, %s878, [#allocation9]
        $region36: #{tpu_custom_call.1} parent=11 // pred_fallthru
          _
        // Predicated region
        $region37: #{tpu_custom_call.1} parent=11 // pred_check
          %p881 = pneg %p282
        $region38: #{tpu_custom_call.1} parent=11 // pred_check_branch
          %883 = sbr.rel (%p881) target = $region40
        $region39: #{tpu_custom_call.1} parent=11 // pred_region
          %885 = vsyncadd [#allocation12], 0
          %s887 = sshll.u32 %s17, 4
          %s888 = int_to_ptr.hbm [resolvable:$true] %s887
          %s889 = sshll.u32 [#allocation11], 4
          %s890 = int_to_ptr.vmem [resolvable:$true] %s889
          %892 = dma.hbm_to_vmem [thread:$0]  %s888, 16, %s890, [#allocation12]
        $region40: #{tpu_custom_call.1} parent=11 // pred_fallthru
          _
        // Predicated region
        $region41: #{tpu_custom_call.1} parent=11 // pred_check
          %p893 = pneg %p303
        $region42: #{tpu_custom_call.1} parent=11 // pred_check_branch
          %895 = sbr.rel (%p893) target = $region44
        $region43: #{tpu_custom_call.1} parent=11 // pred_region
          %897 = vsyncadd [#allocation12], 0
          %s899 = sshll.u32 %s19, 4
          %s900 = int_to_ptr.hbm [resolvable:$true] %s899
          %s901 = sshll.u32 [#allocation13], 4
          %s902 = int_to_ptr.vmem [resolvable:$true] %s901
          %904 = dma.hbm_to_vmem [thread:$0]  %s900, 16, %s902, [#allocation12]
        $region44: #{tpu_custom_call.1} parent=11 // pred_fallthru
          _
        // Predicated region
        $region45: #{tpu_custom_call.1} parent=11 // pred_check
          %p905 = pneg %p324
        $region46: #{tpu_custom_call.1} parent=11 // pred_check_branch
          %907 = sbr.rel (%p905) target = $region48
        $region47: #{tpu_custom_call.1} parent=11 // pred_region
          _
        $region48: #{tpu_custom_call.1} parent=11 // pred_fallthru
          _
        // Predicated region
        $region49: #{tpu_custom_call.1} parent=11 // pred_check
          %p908 = pneg %p345
        $region50: #{tpu_custom_call.1} parent=11 // pred_check_branch
          %910 = sbr.rel (%p908) target = $region52
        $region51: #{tpu_custom_call.1} parent=11 // pred_region
          %912 = vsyncadd [#allocation15], 0
          %s914 = sshll.u32 %s23, 4
          %s915 = int_to_ptr.hbm [resolvable:$true] %s914
          %s916 = sshll.u32 [#allocation14], 4
          %s917 = int_to_ptr.vmem [resolvable:$true] %s916
          %919 = dma.hbm_to_vmem [thread:$0]  %s915, 16, %s917, [#allocation15]
        $region52: #{tpu_custom_call.1} parent=11 // pred_fallthru
          _
        // Predicated region
        $region53: #{tpu_custom_call.1} parent=11 // pred_check
          %p920 = pneg %p366
        $region54: #{tpu_custom_call.1} parent=11 // pred_check_branch
          %922 = sbr.rel (%p920) target = $region56
        $region55: #{tpu_custom_call.1} parent=11 // pred_region
          _
        $region56: #{tpu_custom_call.1} parent=11 // pred_fallthru
          _
        // Predicated region
        $region57: #{tpu_custom_call.1} parent=11 // pred_check
          %p923 = pneg %p387
        $region58: #{tpu_custom_call.1} parent=11 // pred_check_branch
          %925 = sbr.rel (%p923) target = $region60
        $region59: #{tpu_custom_call.1} parent=11 // pred_region
          %927 = vsyncadd [#allocation15], 0
          %s928 = sshll.u32 %s27, 4
          %s929 = int_to_ptr.hbm [resolvable:$true] %s928
          %s930 = sshll.u32 [#allocation16], 4
          %s931 = int_to_ptr.vmem [resolvable:$true] %s930
          %936 = dma.hbm_to_vmem [thread:$0]  %s929, 64, %s931, [#allocation15], 16, 16, 1
        $region60: #{tpu_custom_call.1} parent=11 // pred_fallthru
          _
        // Predicated region
        $region61: #{tpu_custom_call.1} parent=11 // pred_check
          %p937 = pneg %p408
        $region62: #{tpu_custom_call.1} parent=11 // pred_check_branch
          %939 = sbr.rel (%p937) target = $region64
        $region63: #{tpu_custom_call.1} parent=11 // pred_region
          _
        $region64: #{tpu_custom_call.1} parent=11 // pred_fallthru
          _
        // Predicated region
        $region65: #{tpu_custom_call.1} parent=11 // pred_check
          %p940 = pneg %p429
        $region66: #{tpu_custom_call.1} parent=11 // pred_check_branch
          %942 = sbr.rel (%p940) target = $region68
        $region67: #{tpu_custom_call.1} parent=11 // pred_region
          _
        $region68: #{tpu_custom_call.1} parent=11 // pred_fallthru
          _
        // Predicated region
        $region69: #{tpu_custom_call.1} parent=11 // pred_check
          %p943 = pneg %p450
        $region70: #{tpu_custom_call.1} parent=11 // pred_check_branch
          %945 = sbr.rel (%p943) target = $region72
        $region71: #{tpu_custom_call.1} parent=11 // pred_region
          _
        $region72: #{tpu_custom_call.1} parent=11 // pred_fallthru
          _
        // Predicated region
        $region73: #{tpu_custom_call.1} parent=11 // pred_check
          %p946 = pneg %p471
        $region74: #{tpu_custom_call.1} parent=11 // pred_check_branch
          %948 = sbr.rel (%p946) target = $region76
        $region75: #{tpu_custom_call.1} parent=11 // pred_region
          _
        $region76: #{tpu_custom_call.1} parent=11 // pred_fallthru
          _
        // Predicated region
        $region77: #{tpu_custom_call.1} parent=11 // pred_check
          %p949 = pneg %p492
        $region78: #{tpu_custom_call.1} parent=11 // pred_check_branch
          %951 = sbr.rel (%p949) target = $region80
        $region79: #{tpu_custom_call.1} parent=11 // pred_region
          _
        $region80: #{tpu_custom_call.1} parent=11 // pred_fallthru
          _
        // Predicated region
        $region81: #{tpu_custom_call.1} parent=11 // pred_check
          %p952 = pneg %p513
        $region82: #{tpu_custom_call.1} parent=11 // pred_check_branch
          %954 = sbr.rel (%p952) target = $region84
        $region83: #{tpu_custom_call.1} parent=11 // pred_region
          _
        $region84: #{tpu_custom_call.1} parent=11 // pred_fallthru
          _
        // Predicated region
        $region85: #{tpu_custom_call.1} parent=11 // pred_check
          %p955 = pneg %p534
        $region86: #{tpu_custom_call.1} parent=11 // pred_check_branch
          %957 = sbr.rel (%p955) target = $region88
        $region87: #{tpu_custom_call.1} parent=11 // pred_region
          _
        $region88: #{tpu_custom_call.1} parent=11 // pred_fallthru
          _
        // Predicated region
        $region89: #{tpu_custom_call.1} parent=11 // pred_check
          %p958 = pneg %p555
        $region90: #{tpu_custom_call.1} parent=11 // pred_check_branch
          %960 = sbr.rel (%p958) target = $region92
        $region91: #{tpu_custom_call.1} parent=11 // pred_region
          _
        $region92: #{tpu_custom_call.1} parent=11 // pred_fallthru
          _
        // Predicated region
        $region93: #{tpu_custom_call.1} parent=11 // pred_check
          %p961 = pneg %p576
        $region94: #{tpu_custom_call.1} parent=11 // pred_check_branch
          %963 = sbr.rel (%p961) target = $region96
        $region95: #{tpu_custom_call.1} parent=11 // pred_region
          _
        $region96: #{tpu_custom_call.1} parent=11 // pred_fallthru
          _
        // Predicated region
        $region97: #{tpu_custom_call.1} parent=11 // pred_check
          %p964 = pneg %p597
        $region98: #{tpu_custom_call.1} parent=11 // pred_check_branch
          %966 = sbr.rel (%p964) target = $region100
        $region99: #{tpu_custom_call.1} parent=11 // pred_region
          _
        $region100: #{tpu_custom_call.1} parent=11 // pred_fallthru
          _
        // Predicated region
        $region101: #{tpu_custom_call.1} parent=11 // pred_check
          %p967 = pneg %p618
        $region102: #{tpu_custom_call.1} parent=11 // pred_check_branch
          %969 = sbr.rel (%p967) target = $region104
        $region103: #{tpu_custom_call.1} parent=11 // pred_region
          _
        $region104: #{tpu_custom_call.1} parent=11 // pred_fallthru
          _
        // Predicated region
        $region105: #{tpu_custom_call.1} parent=11 // pred_check
          %p970 = pneg %p639
        $region106: #{tpu_custom_call.1} parent=11 // pred_check_branch
          %972 = sbr.rel (%p970) target = $region108
        $region107: #{tpu_custom_call.1} parent=11 // pred_region
          _
        $region108: #{tpu_custom_call.1} parent=11 // pred_fallthru
          _
        // Predicated region
        $region109: #{tpu_custom_call.1} parent=11 // pred_check
          %p973 = pneg %p660
        $region110: #{tpu_custom_call.1} parent=11 // pred_check_branch
          %975 = sbr.rel (%p973) target = $region112
        $region111: #{tpu_custom_call.1} parent=11 // pred_region
          _
        $region112: #{tpu_custom_call.1} parent=11 // pred_fallthru
          _
        // Predicated region
        $region113: #{tpu_custom_call.1} parent=11 // pred_check
          %p976 = pneg %p681
        $region114: #{tpu_custom_call.1} parent=11 // pred_check_branch
          %978 = sbr.rel (%p976) target = $region116
        $region115: #{tpu_custom_call.1} parent=11 // pred_region
          _
        $region116: #{tpu_custom_call.1} parent=11 // pred_fallthru
          _
        // Predicated region
        $region117: #{tpu_custom_call.1} parent=11 // pred_check
          %p979 = pneg %p702
        $region118: #{tpu_custom_call.1} parent=11 // pred_check_branch
          %981 = sbr.rel (%p979) target = $region120
        $region119: #{tpu_custom_call.1} parent=11 // pred_region
          _
        $region120: #{tpu_custom_call.1} parent=11 // pred_fallthru
          _
        // Predicated region
        $region121: #{tpu_custom_call.1} parent=11 // pred_check
          %p982 = pneg %p723
        $region122: #{tpu_custom_call.1} parent=11 // pred_check_branch
          %984 = sbr.rel (%p982) target = $region124
        $region123: #{tpu_custom_call.1} parent=11 // pred_region
          _
        $region124: #{tpu_custom_call.1} parent=11 // pred_fallthru
          _
        // Predicated region
        $region125: #{tpu_custom_call.1} parent=11 // pred_check
          %p985 = pneg %p744
        $region126: #{tpu_custom_call.1} parent=11 // pred_check_branch
          %987 = sbr.rel (%p985) target = $region128
        $region127: #{tpu_custom_call.1} parent=11 // pred_region
          _
        $region128: #{tpu_custom_call.1} parent=11 // pred_fallthru
          _
        // Predicated region
        $region129: #{tpu_custom_call.1} parent=11 // pred_check
          %p988 = pneg %p765
        $region130: #{tpu_custom_call.1} parent=11 // pred_check_branch
          %990 = sbr.rel (%p988) target = $region132
        $region131: #{tpu_custom_call.1} parent=11 // pred_region
          _
        $region132: #{tpu_custom_call.1} parent=11 // pred_fallthru
          _
        // Predicated region
        $region133: #{tpu_custom_call.1} parent=11 // pred_check
          %p991 = pneg %p786
        $region134: #{tpu_custom_call.1} parent=11 // pred_check_branch
          %993 = sbr.rel (%p991) target = $region136
        $region135: #{tpu_custom_call.1} parent=11 // pred_region
          _
        $region136: #{tpu_custom_call.1} parent=11 // pred_fallthru
          _
      $region12: #{tpu_custom_call.1} parent=5 // pred_fallthru
        _
      %p994 = scmp.lt.s32.totalorder %s83, 2
      // Predicated region
      $region137: #{tpu_custom_call.1} parent=5 // pred_check
        %p995 = pneg %p994
      $region138: #{tpu_custom_call.1} parent=5 // pred_check_branch
        %997 = sbr.rel (%p995) target = $region140
      $region139: #{tpu_custom_call.1} parent=5 // pred_region
        // Predicated region
        $region141: #{tpu_custom_call.1} parent=139 // pred_check
          %p998 = pneg %p103
        $region142: #{tpu_custom_call.1} parent=139 // pred_check_branch
          %1000 = sbr.rel (%p998) target = $region144
        $region143: #{tpu_custom_call.1} parent=139 // pred_region
          %p1001 = scmp.lt.s32.totalorder %s83, 1
          %s1002 = scalar_select %p1001, %s83, 1
          %s1003 = smul.addr %s1002, 8
          %s1004 = scalar_lea.vmem %s1, %s1003
        $region144: #{tpu_custom_call.1} parent=139 // pred_fallthru
          _
        // Predicated region
        $region145: #{tpu_custom_call.1} parent=139 // pred_check
          %p1005 = pneg %p129
        $region146: #{tpu_custom_call.1} parent=139 // pred_check_branch
          %1007 = sbr.rel (%p1005) target = $region148
        $region147: #{tpu_custom_call.1} parent=139 // pred_region
          %s1008 = sand.u32 %s119, 1
          %s1009 = scalar_lea.sflag [#allocation3], %s1008
          %s1010 = sand.u32 %s119, 1
          %s1011 = scalar_lea.vmem [#allocation2], %s1010
          %1013 = vsyncadd %s1009, 0
          %s1014 = scalar_lea.hbm %s3, %s83
          %s1016 = sshll.u32 %s1014, 4
          %s1017 = int_to_ptr.hbm [resolvable:$true] %s1016
          %s1018 = sshll.u32 %s1011, 4
          %s1019 = int_to_ptr.vmem [resolvable:$true] %s1018
          %1021 = dma.hbm_to_vmem [thread:$0]  %s1017, 16, %s1019, %s1009
        $region148: #{tpu_custom_call.1} parent=139 // pred_fallthru
          _
      $region140: #{tpu_custom_call.1} parent=5 // pred_fallthru
        _
      %p1022 = scmp.le.s32.totalorder 1, %s83
      %p1023 = scmp.lt.s32.totalorder %s83, 3
      %p1024 = pnand %p1022, %p1023
      %p1025 = pneg %p1024
      // Predicated region
      $region149: #{tpu_custom_call.1} parent=5 // pred_check
        _
      $region150: #{tpu_custom_call.1} parent=5 // pred_check_branch
        %1027 = sbr.rel (%p1024) target = $region152
      $region151: #{tpu_custom_call.1} parent=5 // pred_region
        %s1028 = ssub.s32 %s83, 1
        %s1029 = sand.u32 %s122, 1
        %s1030 = scalar_lea.sflag [#allocation3], %s1029
        %s1031 = sand.u32 %s122, 1
        %s1032 = scalar_lea.vmem [#allocation2], %s1031
        // Predicated region
        $region153: #{tpu_custom_call.1} parent=151 // pred_check
          %p1033 = pneg %p135
        $region154: #{tpu_custom_call.1} parent=151 // pred_check_branch
          %1035 = sbr.rel (%p1033) target = $region156
        $region155: #{tpu_custom_call.1} parent=151 // pred_region
          %1037 = dma.done %s1030, 16
        $region156: #{tpu_custom_call.1} parent=151 // pred_fallthru
          _
        // Predicated region
        $region157: #{tpu_custom_call.1} parent=151 // pred_check
          %p1038 = pneg %p156
        $region158: #{tpu_custom_call.1} parent=151 // pred_check_branch
          %1040 = sbr.rel (%p1038) target = $region160
        $region159: #{tpu_custom_call.1} parent=151 // pred_region
          %1042 = dma.done [#allocation6], 16
        $region160: #{tpu_custom_call.1} parent=151 // pred_fallthru
          _
        // Predicated region
        $region161: #{tpu_custom_call.1} parent=151 // pred_check
          %p1043 = pneg %p177
        $region162: #{tpu_custom_call.1} parent=151 // pred_check_branch
          %1045 = sbr.rel (%p1043) target = $region164
        $region163: #{tpu_custom_call.1} parent=151 // pred_region
          %1047 = dma.done [#allocation6], 16
        $region164: #{tpu_custom_call.1} parent=151 // pred_fallthru
          _
        // Predicated region
        $region165: #{tpu_custom_call.1} parent=151 // pred_check
          %p1048 = pneg %p219
        $region166: #{tpu_custom_call.1} parent=151 // pred_check_branch
          %1050 = sbr.rel (%p1048) target = $region168
        $region167: #{tpu_custom_call.1} parent=151 // pred_region
          %1052 = dma.done [#allocation9], 16
        $region168: #{tpu_custom_call.1} parent=151 // pred_fallthru
          _
        // Predicated region
        $region169: #{tpu_custom_call.1} parent=151 // pred_check
          %p1053 = pneg %p261
        $region170: #{tpu_custom_call.1} parent=151 // pred_check_branch
          %1055 = sbr.rel (%p1053) target = $region172
        $region171: #{tpu_custom_call.1} parent=151 // pred_region
          %1057 = dma.done [#allocation9], 16
        $region172: #{tpu_custom_call.1} parent=151 // pred_fallthru
          _
        // Predicated region
        $region173: #{tpu_custom_call.1} parent=151 // pred_check
          %p1058 = pneg %p282
        $region174: #{tpu_custom_call.1} parent=151 // pred_check_branch
          %1060 = sbr.rel (%p1058) target = $region176
        $region175: #{tpu_custom_call.1} parent=151 // pred_region
          %1062 = dma.done [#allocation12], 16
        $region176: #{tpu_custom_call.1} parent=151 // pred_fallthru
          _
        // Predicated region
        $region177: #{tpu_custom_call.1} parent=151 // pred_check
          %p1063 = pneg %p303
        $region178: #{tpu_custom_call.1} parent=151 // pred_check_branch
          %1065 = sbr.rel (%p1063) target = $region180
        $region179: #{tpu_custom_call.1} parent=151 // pred_region
          %1067 = dma.done [#allocation12], 16
        $region180: #{tpu_custom_call.1} parent=151 // pred_fallthru
          _
        // Predicated region
        $region181: #{tpu_custom_call.1} parent=151 // pred_check
          %p1068 = pneg %p345
        $region182: #{tpu_custom_call.1} parent=151 // pred_check_branch
          %1070 = sbr.rel (%p1068) target = $region184
        $region183: #{tpu_custom_call.1} parent=151 // pred_region
          %1072 = dma.done [#allocation15], 16
        $region184: #{tpu_custom_call.1} parent=151 // pred_fallthru
          _
        // Predicated region
        $region185: #{tpu_custom_call.1} parent=151 // pred_check
          %p1073 = pneg %p387
        $region186: #{tpu_custom_call.1} parent=151 // pred_check_branch
          %1075 = sbr.rel (%p1073) target = $region188
        $region187: #{tpu_custom_call.1} parent=151 // pred_region
          %1077 = dma.done [#allocation15], 64
        $region188: #{tpu_custom_call.1} parent=151 // pred_fallthru
          _
        %p1078 = scmp.lt.s32.totalorder %s88, 1
        %s1079 = scalar_select %p1078, %s88, 1
        %s1080 = smul.addr %s1079, 8
        %s1081 = scalar_lea.vmem %s1, %s1080
        %p1082 = pneg %p109
        %p1083 = pneg %p106
        %s1084 = sand.u32 %s122, 1
        %s1085 = scalar_lea.sflag [#allocation3], %s1084
        %s1086 = sand.u32 %s122, 1
        %s1087 = scalar_lea.vmem [#allocation2], %s1086
        %p1088 = pneg %p135
        %p1089 = pneg %p132
        %p1090 = pneg %p156
        %p1091 = pneg %p153
        %p1092 = pneg %p177
        %p1093 = pneg %p174
        %p1094 = pneg %p198
        %p1095 = pneg %p195
        %p1096 = pneg %p219
        %p1097 = pneg %p216
        %p1098 = pneg %p240
        %p1099 = pneg %p237
        %p1100 = pneg %p261
        %p1101 = pneg %p258
        %p1102 = pneg %p282
        %p1103 = pneg %p279
        %p1104 = pneg %p303
        %p1105 = pneg %p300
        %p1106 = pneg %p324
        %p1107 = pneg %p321
        %p1108 = pneg %p345
        %p1109 = pneg %p342
        %p1110 = pneg %p366
        %p1111 = pneg %p363
        %p1112 = pneg %p387
        %p1113 = pneg %p384
        %p1114 = pneg %p408
        %p1115 = pneg %p405
        %p1116 = pneg %p429
        %p1117 = pneg %p426
        %p1118 = pneg %p450
        %p1119 = pneg %p447
        %p1120 = pneg %p471
        %p1121 = pneg %p468
        %p1122 = pneg %p492
        %p1123 = pneg %p489
        %p1124 = pneg %p513
        %p1125 = pneg %p510
        %p1126 = pneg %p534
        %p1127 = pneg %p531
        %p1128 = pneg %p555
        %p1129 = pneg %p552
        %p1130 = pneg %p576
        %p1131 = pneg %p573
        %p1132 = pneg %p597
        %p1133 = pneg %p594
        %p1134 = pneg %p618
        %p1135 = pneg %p615
        %p1136 = pneg %p639
        %p1137 = pneg %p636
        %p1138 = pneg %p660
        %p1139 = pneg %p657
        %p1140 = pneg %p681
        %p1141 = pneg %p678
        %p1142 = pneg %p702
        %p1143 = pneg %p699
        %p1144 = pneg %p723
        %p1145 = pneg %p720
        %p1146 = pneg %p744
        %p1147 = pneg %p741
        %p1148 = pneg %p765
        %p1149 = pneg %p762
        %p1150 = pneg %p786
        %p1151 = pneg %p783
        %p1152 = pneg %p812
        %p1153 = pneg %p809
        %s1154 = sand.u32 %s799, 1
        %s1155 = scalar_lea.sflag [#allocation4], %s1154
        %s1156 = sand.u32 %s799, 1
        %s1157 = smul.addr %s1156, 8
        %s1158 = scalar_lea.vmem [#allocation17], %s1157
        %p1159 = scmp.lt.s32.totalorder %s88, 1
        %s1160 = scalar_select %p1159, %s88, 1
        %s1161 = smul.addr %s1160, 8
        %s1162 = scalar_lea.vmem %s1, %s1161
        %v1164 = vld [vmem:[%s1162] sm:$0xff]
        %v1165 = vld [vmem:[#allocation5] sm:$0x1]
        %v1166 = vld [vmem:[#allocation7] sm:$0x1]
        %vm1167 = vcmask 261120
        %v1168 = vsel %vm1167, %v1164, 0.0
        %1169 = vadd.xlane.f32.xlu0 %v1168
        %v1170 = vpop.xlane.xlu0 %1169
        %v1171 = vrcp.pop 32.0
        %v1172 = vmul.f32 32.0, %v1171
        %v1173 = vsub.f32 1.0, %v1172
        %v1174 = vmul.f32 %v1171, %v1173
        %v1175 = vadd.f32 %v1171, %v1174
        %vm1176 = vweird.f32 %v1171
        %v1177 = vsel %vm1176, %v1171, %v1175
        %v1178 = vmul.f32 %v1170, %v1177
        %v1179 = vsub.f32 %v1164, %v1178
        %v1180 = vmul.f32 %v1179, %v1179
        %v1181 = vsel %vm1167, %v1180, 0.0
        %1182 = vadd.xlane.f32.xlu0 %v1181
        %v1183 = vpop.xlane.xlu0 %1182
        %v1184 = vmul.f32 %v1183, %v1177
        %v1185 = vadd.f32 %v1184, 1e-05
        %v1186 = vrsqrt.pop %v1185
        %v1187 = vmul.f32 %v1186, %v1185
        %v1188 = vmul.f32 %v1187, %v1186
        %v1189 = vmul.f32 0.5, %v1188
        %v1190 = vsub.f32 1.5, %v1189
        %v1191 = vmul.f32 %v1186, %v1190
        %vm1192 = vweird.f32 %v1185
        %vm1193 = vweird.f32 %v1186
        %vm1194 = vmor %vm1192, %vm1193
        %v1195 = vsel %vm1194, %v1186, %v1191
        %v1196 = vmul.f32 %v1179, %v1195
        %v1198 = vperm.slane %v1165, 0
        %v1200 = vmul.f32 %v1196, %v1198
        %v1202 = vperm.slane %v1166, 0
        %v1204 = vadd.f32 %v1200, %v1202
        %v1205 = vpack.c.bf16 %v1204, %v1204
        %v1206 = vld [vmem:[%s9] sm:$0xf]
        %v1207 = vld [vmem:[%s9 + $0x4] sm:$0xf]
        %v1208 = vld [vmem:[%s9 + $0x8] sm:$0xf]
        %v1209 = vld [vmem:[%s9 + $0xc] sm:$0xf]
        %v1210 = vld [vmem:[#allocation8] sm:$0x1]
        %v1212 = vperm.slane %v1210, 0
        %v1218 = vunpack.c.l.b16 %v1206
        %v1219 = vunpack.c.l.b16 %v1207
        %v1220 = vunpack.c.l.b16 %v1208
        %v1221 = vunpack.c.l.b16 %v1209
        %v1222 = vpack.c.b16 %v1219, %v1218
        %v1223 = vpack.c.b16 %v1221, %v1220
        %v1227 = vsel %vm1167, %v1205, 0
        %1229 = vmatpush.bf16.msra.mxu0 0
        %1230 = vmatpush.bf16.msra.mxu0 0
        %1231 = vmatpush.bf16.msra.mxu0 0
        %1232 = vmatpush.bf16.msra.mxu0 0
        %1233 = vmatpush.bf16.msra.mxu0 0
        %1234 = vmatpush.bf16.msra.mxu0 0
        %1235 = vmatpush.bf16.msra.mxu0 %v1223
        %1236 = vmatpush.bf16.msra.mxu0 %v1222
        %1237 = vmatmul.bf16.gmra.mxu0 %v1227
        %v1238 = vpop.f32.mrf.mxu0
        %v1239 = vadd.f32 %v1212, %v1238
        %v1240 = vpop.f32.mrf.mxu0
        %1241 = vdwg.mxu0
        %v1242 = vxor.u32 %v1239, 2147483648
        %v1243 = vmul.f32 %v1242, 1.442695
        %v1244 = vpow.pop %v1243
        %v1245 = vadd.f32 %v1244, 1.0
        %v1246 = vrcp.pop %v1245
        %v1247 = vmul.f32 %v1245, %v1246
        %v1248 = vsub.f32 1.0, %v1247
        %v1249 = vmul.f32 %v1246, %v1248
        %v1250 = vadd.f32 %v1246, %v1249
        %vm1251 = vweird.f32 %v1245
        %vm1252 = vweird.f32 %v1246
        %vm1253 = vmor %vm1251, %vm1252
        %v1254 = vsel %vm1253, %v1246, %v1250
        %v1255 = vand.u32 2147483647, %v1245
        %vm1256 = vcmp.eq.f32.partialorder %v1255, 8.507059e+37
        %v1257 = vand.u32 %v1245, 2147483648
        %v1258 = vor.u32 1.1754944e-38, %v1257
        %v1259 = vsel %vm1256, %v1258, %v1254
        %v1260 = vmul.f32 1.0, %v1259
        %v1261 = vmul.f32 %v1239, %v1260
        %v1262 = vpack.c.bf16 %v1261, %v1261
        %v1263 = vld [vmem:[%s13] sm:$0xf]
        %v1264 = vld [vmem:[%s13 + $0x4] sm:$0xf]
        %v1265 = vld [vmem:[%s13 + $0x8] sm:$0xf]
        %v1266 = vld [vmem:[%s13 + $0xc] sm:$0xf]
        %v1267 = vld [vmem:[%s13 + $0x10] sm:$0xf]
        %v1268 = vld [vmem:[%s13 + $0x14] sm:$0xf]
        %v1269 = vld [vmem:[%s13 + $0x18] sm:$0xf]
        %v1270 = vld [vmem:[%s13 + $0x1c] sm:$0xf]
        %v1271 = vld [vmem:[#allocation10] sm:$0x1]
        %v1273 = vperm.slane %v1271, 0
        %v1283 = vunpack.c.l.b16 %v1263
        %v1284 = vunpack.c.l.b16 %v1264
        %v1285 = vunpack.c.l.b16 %v1265
        %v1286 = vunpack.c.l.b16 %v1266
        %v1287 = vunpack.c.l.b16 %v1267
        %v1288 = vunpack.c.l.b16 %v1268
        %v1289 = vunpack.c.l.b16 %v1269
        %v1290 = vunpack.c.l.b16 %v1270
        %v1291 = vpack.c.b16 %v1284, %v1283
        %v1292 = vpack.c.b16 %v1286, %v1285
        %v1293 = vpack.c.b16 %v1288, %v1287
        %v1294 = vpack.c.b16 %v1290, %v1289
        %vm1299 = vcmask 523264
        %v1301 = vsel %vm1299, %v1262, 0
        %1303 = vmatpush.bf16.msra.mxu0 0
        %1304 = vmatpush.bf16.msra.mxu0 0
        %1305 = vmatpush.bf16.msra.mxu0 0
        %1306 = vmatpush.bf16.msra.mxu0 0
        %1307 = vmatpush.bf16.msra.mxu0 %v1294
        %1308 = vmatpush.bf16.msra.mxu0 %v1293
        %1309 = vmatpush.bf16.msra.mxu0 %v1292
        %1310 = vmatpush.bf16.msra.mxu0 %v1291
        %1311 = vmatmul.bf16.gmra.mxu0 %v1301
        %v1312 = vpop.f32.mrf.mxu0
        %v1313 = vadd.f32 %v1273, %v1312
        %v1314 = vpop.f32.mrf.mxu0
        %1315 = vdwg.mxu0
        %v1316 = vmul.f32 %v1313, 0.5
        %v1317 = vadd.f32 %v1316, %v1164
        %v1318 = vld [vmem:[%s1032] sm:$0x1]
        %v1319 = vld [vmem:[#allocation11] sm:$0x1]
        %v1320 = vld [vmem:[#allocation13] sm:$0x1]
        %v1321 = vsel %vm1167, %v1317, 0.0
        %1322 = vadd.xlane.f32.xlu0 %v1321
        %v1323 = vpop.xlane.xlu0 %1322
        %v1324 = vmul.f32 %v1323, %v1177
        %v1325 = vsub.f32 %v1317, %v1324
        %v1326 = vmul.f32 %v1325, %v1325
        %v1327 = vsel %vm1167, %v1326, 0.0
        %1328 = vadd.xlane.f32.xlu0 %v1327
        %v1329 = vpop.xlane.xlu0 %1328
        %v1330 = vmul.f32 %v1329, %v1177
        %v1331 = vadd.f32 %v1330, 1e-05
        %v1332 = vrsqrt.pop %v1331
        %v1333 = vmul.f32 %v1332, %v1331
        %v1334 = vmul.f32 %v1333, %v1332
        %v1335 = vmul.f32 0.5, %v1334
        %v1336 = vsub.f32 1.5, %v1335
        %v1337 = vmul.f32 %v1332, %v1336
        %vm1338 = vweird.f32 %v1331
        %vm1339 = vweird.f32 %v1332
        %vm1340 = vmor %vm1338, %vm1339
        %v1341 = vsel %vm1340, %v1332, %v1337
        %v1342 = vmul.f32 %v1325, %v1341
        %v1344 = vperm.slane %v1319, 0
        %v1346 = vmul.f32 %v1342, %v1344
        %v1348 = vperm.slane %v1320, 0
        %v1350 = vadd.f32 %v1346, %v1348
        %v1351 = vpack.c.bf16 %v1350, %v1350
        %v1352 = vld [vmem:[%s21] sm:$0xf]
        %v1353 = vld [vmem:[%s21 + $0x4] sm:$0xf]
        %v1354 = vld [vmem:[%s21 + $0x8] sm:$0xf]
        %v1355 = vld [vmem:[%s21 + $0xc] sm:$0xf]
        %v1356 = vld [vmem:[#allocation14] sm:$0x1]
        %v1358 = vperm.slane %v1356, 0
        %v1364 = vunpack.c.l.b16 %v1352
        %v1365 = vunpack.c.l.b16 %v1353
        %v1366 = vunpack.c.l.b16 %v1354
        %v1367 = vunpack.c.l.b16 %v1355
        %v1368 = vpack.c.b16 %v1365, %v1364
        %v1369 = vpack.c.b16 %v1367, %v1366
        %v1373 = vsel %vm1167, %v1351, 0
        %1375 = vmatpush.bf16.msra.mxu0 0
        %1376 = vmatpush.bf16.msra.mxu0 0
        %1377 = vmatpush.bf16.msra.mxu0 0
        %1378 = vmatpush.bf16.msra.mxu0 0
        %1379 = vmatpush.bf16.msra.mxu0 0
        %1380 = vmatpush.bf16.msra.mxu0 0
        %1381 = vmatpush.bf16.msra.mxu0 %v1369
        %1382 = vmatpush.bf16.msra.mxu0 %v1368
        %1383 = vmatmul.bf16.gmra.mxu0 %v1373
        %v1384 = vpop.f32.mrf.mxu0
        %v1385 = vadd.f32 %v1358, %v1384
        %v1386 = vpop.f32.mrf.mxu0
        %1387 = vdwg.mxu0
        %vm1388 = vcmp.gt.f32.partialorder %v1318, 0.0
        %v1389 = vsel %vm1388, 0.0, -1e+30
        %v1390 = vlaneseq
        %v1391 = vshrl.u32 %v1390, 7
        %v1392 = vld [vmem:[%s25] sm:$0x1]
        %v1394 = vperm.slane %v1392, 0
        %v1396 = vadd.f32 %v1385, %v1394
        %v1397 = vpack.c.bf16 %v1396, %v1396
        %v1398 = vld [vmem:[#allocation16] sm:$0x1]
        %v1400 = vperm.slane %v1398, 0
        %v1402 = vadd.f32 %v1385, %v1400
        %v1403 = vpack.c.bf16 %v1402, %v1402
        %v1404 = vpack.c.bf16 %v1385, %v1385
        %v1405 = vld [vmem:[%s29] sm:$0xf]
        %v1406 = vld [vmem:[%s29 + $0x4] sm:$0xf]
        %v1409 = vunpack.c.l.b16 %v1405
        %v1410 = vunpack.c.l.b16 %v1406
        %v1411 = vpack.c.b16 %v1410, %v1409
        %vm1412 = vcmask 64512
        %v1414 = vsel %vm1412, %v1403, 0
        %v1417 = vsel %vm1412, %v1411, 0
        %1419 = vmatpush.bf16.xpose.msra.mxu0 0
        %1420 = vmatpush.bf16.xpose.msra.mxu0 0
        %1421 = vmatpush.bf16.xpose.msra.mxu0 0
        %1422 = vmatpush.bf16.xpose.msra.mxu0 0
        %1423 = vmatpush.bf16.xpose.msra.mxu0 0
        %1424 = vmatpush.bf16.xpose.msra.mxu0 0
        %1425 = vmatpush.bf16.xpose.msra.mxu0 0
        %1426 = vmatpush.bf16.xpose.msra.mxu0 %v1417
        %1427 = vmatmul.bf16.gmra.mxu0 %v1414
        %v1428 = vpop.f32.mrf.mxu0
        %v1429 = vadd.f32 0.0, %v1428
        %v1430 = vpop.f32.mrf.mxu0
        %1431 = vdwg.mxu0
        %1433 = vrot.lane.b32.xlu0 %v1429, 121
        %v1434 = vpop.permute.xlu0 %1433
        %1436 = vrot.lane.b32.xlu0 %v1429, 8
        %v1437 = vpop.permute.xlu0 %1436
        %v1439 = vsel %vm1412, %v1434, %v1437
        %1441 = vrot.lane.b32.xlu0 %v1439, 114
        %v1442 = vpop.permute.xlu0 %1441
        %1444 = vrot.lane.b32.xlu0 %v1439, 1
        %v1445 = vpop.permute.xlu0 %1444
        %vm1447 = vcmask 7168
        %v1448 = vsel %vm1447, %v1442, %v1445
        %v1449 = vand.u32 %v1391, 1
        %vm1450 = vcmp.eq.s32.totalorder %v1449, 1
        %v1451 = vsel %vm1450, 1, 0
        %vm1452 = vcmp.eq.s32.totalorder %v1451, 1
        %v1453 = vsel %vm1452, %v1448, %v1439
        %1455 = vrot.lane.b32.xlu0 %v1453, 115
        %v1456 = vpop.permute.xlu0 %1455
        %1458 = vrot.lane.b32.xlu0 %v1453, 2
        %v1459 = vpop.permute.xlu0 %1458
        %vm1461 = vcmask 15360
        %v1462 = vsel %vm1461, %v1456, %v1459
        %v1463 = vshra.s32 %v1391, 1
        %v1464 = vand.u32 %v1463, 1
        %vm1465 = vcmp.eq.s32.totalorder %v1464, 1
        %v1466 = vsel %vm1465, 1, 0
        %vm1467 = vcmp.eq.s32.totalorder %v1466, 1
        %v1468 = vsel %vm1467, %v1462, %v1453
        %1470 = vrot.lane.b32.xlu0 %v1468, 117
        %v1471 = vpop.permute.xlu0 %1470
        %1473 = vrot.lane.b32.xlu0 %v1468, 4
        %v1474 = vpop.permute.xlu0 %1473
        %vm1476 = vcmask 31744
        %v1477 = vsel %vm1476, %v1471, %v1474
        %v1478 = vshra.s32 %v1391, 2
        %v1479 = vand.u32 %v1478, 1
        %vm1480 = vcmp.eq.s32.totalorder %v1479, 1
        %v1481 = vsel %vm1480, 1, 0
        %vm1482 = vcmp.eq.s32.totalorder %v1481, 1
        %v1483 = vsel %vm1482, %v1477, %v1468
        %1485 = vrot.lane.b32.xlu0 %v1404, 96
        %v1486 = vpop.permute.xlu0 %1485
        %v1488 = vsel %vm1412, %v1397, 0
        %v1491 = vsel %vm1412, %v1486, 0
        %1493 = vmatpush.bf16.xpose.msra.mxu0 0
        %1494 = vmatpush.bf16.xpose.msra.mxu0 0
        %1495 = vmatpush.bf16.xpose.msra.mxu0 0
        %1496 = vmatpush.bf16.xpose.msra.mxu0 0
        %1497 = vmatpush.bf16.xpose.msra.mxu0 0
        %1498 = vmatpush.bf16.xpose.msra.mxu0 0
        %1499 = vmatpush.bf16.xpose.msra.mxu0 0
        %1500 = vmatpush.bf16.xpose.msra.mxu0 %v1491
        %1501 = vmatmul.bf16.gmra.mxu0 %v1488
        %v1502 = vpop.f32.mrf.mxu0
        %v1503 = vadd.f32 %v1483, %v1502
        %v1504 = vpop.f32.mrf.mxu0
        %1505 = vdwg.mxu0
        %v1506 = vmul.f32 %v1503, 0.35355338
        %v1508 = vperm.slane %v1389, 0
        %v1510 = vadd.f32 %v1506, %v1508
        %v1511 = vsel %vm1412, %v1510, -inf
        %1512 = vmax.xlane.f32.xlu0 %v1511
        %v1513 = vpop.xlane.xlu0 %1512
        %v1514 = vsub.f32 %v1510, %v1513
        %v1515 = vmul.f32 %v1514, 1.442695
        %v1516 = vpow.pop %v1515
        %v1517 = vsel %vm1412, %v1516, 0.0
        %1518 = vadd.xlane.f32.xlu0 %v1517
        %v1519 = vpop.xlane.xlu0 %1518
        %v1520 = vrcp.pop %v1519
        %v1521 = vmul.f32 %v1516, %v1520
        %v1522 = vpack.c.bf16 %v1521, %v1521
        %1523 = vrot.lane.b32.xlu0 %v1404, 64
        %v1524 = vpop.permute.xlu0 %1523
        %v1526 = vsel %vm1412, %v1522, 0
        %vm1528 = vcmask 1043456
        %v1530 = vsel %vm1528, %v1524, 0
        %1532 = vmatpush.bf16.msra.mxu0 0
        %1533 = vmatpush.bf16.msra.mxu0 0
        %1534 = vmatpush.bf16.msra.mxu0 0
        %1535 = vmatpush.bf16.msra.mxu0 0
        %1536 = vmatpush.bf16.msra.mxu0 0
        %1537 = vmatpush.bf16.msra.mxu0 0
        %1538 = vmatpush.bf16.msra.mxu0 0
        %1539 = vmatpush.bf16.msra.mxu0 %v1530
        %1540 = vmatmul.bf16.gmra.mxu0 %v1526
        %v1541 = vpop.f32.mrf.mxu0
        %v1542 = vadd.f32 0.0, %v1541
        %v1543 = vpop.f32.mrf.mxu0
        %1544 = vdwg.mxu0
        %s1545 = scalar_lea.vmem %s25, 1
        %v1546 = vld [vmem:[%s1545] sm:$0x1]
        %v1548 = vperm.slane %v1546, 0
        %1549 = vrot.lane.b32.xlu0 %v1548, 8
        %v1550 = vpop.permute.xlu0 %1549
        %v1552 = vadd.f32 %v1385, %v1550
        %v1553 = vpack.c.bf16 %v1552, %v1552
        %s1554 = scalar_lea.vmem [#allocation16], 1
        %v1555 = vld [vmem:[%s1554] sm:$0x1]
        %v1557 = vperm.slane %v1555, 0
        %1558 = vrot.lane.b32.xlu0 %v1557, 8
        %v1559 = vpop.permute.xlu0 %1558
        %v1561 = vadd.f32 %v1385, %v1559
        %v1562 = vpack.c.bf16 %v1561, %v1561
        %s1563 = scalar_lea.vmem %s29, 8
        %v1564 = vld [vmem:[%s1563] sm:$0xf]
        %v1565 = vld [vmem:[%s1563 + $0x4] sm:$0xf]
        %1567 = vrot.lane.b32.xlu0 %v1562, 120
        %v1568 = vpop.permute.xlu0 %1567
        %v1571 = vunpack.c.l.b16 %v1564
        %v1572 = vunpack.c.l.b16 %v1565
        %v1573 = vpack.c.b16 %v1572, %v1571
        %v1575 = vsel %vm1412, %v1568, 0
        %v1578 = vsel %vm1412, %v1573, 0
        %1580 = vmatpush.bf16.xpose.msra.mxu0 0
        %1581 = vmatpush.bf16.xpose.msra.mxu0 0
        %1582 = vmatpush.bf16.xpose.msra.mxu0 0
        %1583 = vmatpush.bf16.xpose.msra.mxu0 0
        %1584 = vmatpush.bf16.xpose.msra.mxu0 0
        %1585 = vmatpush.bf16.xpose.msra.mxu0 0
        %1586 = vmatpush.bf16.xpose.msra.mxu0 0
        %1587 = vmatpush.bf16.xpose.msra.mxu0 %v1578
        %1588 = vmatmul.bf16.gmra.mxu0 %v1575
        %v1589 = vpop.f32.mrf.mxu0
        %v1590 = vadd.f32 0.0, %v1589
        %v1591 = vpop.f32.mrf.mxu0
        %1592 = vdwg.mxu0
        %1594 = vrot.lane.b32.xlu0 %v1590, 121
        %v1595 = vpop.permute.xlu0 %1594
        %1597 = vrot.lane.b32.xlu0 %v1590, 8
        %v1598 = vpop.permute.xlu0 %1597
        %v1600 = vsel %vm1412, %v1595, %v1598
        %1602 = vrot.lane.b32.xlu0 %v1600, 114
        %v1603 = vpop.permute.xlu0 %1602
        %1605 = vrot.lane.b32.xlu0 %v1600, 1
        %v1606 = vpop.permute.xlu0 %1605
        %v1608 = vsel %vm1447, %v1603, %v1606
        %v1609 = vsel %vm1452, %v1608, %v1600
        %1611 = vrot.lane.b32.xlu0 %v1609, 115
        %v1612 = vpop.permute.xlu0 %1611
        %1614 = vrot.lane.b32.xlu0 %v1609, 2
        %v1615 = vpop.permute.xlu0 %1614
        %v1617 = vsel %vm1461, %v1612, %v1615
        %v1618 = vsel %vm1467, %v1617, %v1609
        %1620 = vrot.lane.b32.xlu0 %v1618, 117
        %v1621 = vpop.permute.xlu0 %1620
        %1623 = vrot.lane.b32.xlu0 %v1618, 4
        %v1624 = vpop.permute.xlu0 %1623
        %v1626 = vsel %vm1476, %v1621, %v1624
        %v1627 = vsel %vm1482, %v1626, %v1618
        %1629 = vrot.lane.b32.xlu0 %v1553, 120
        %v1630 = vpop.permute.xlu0 %1629
        %1631 = vrot.lane.b32.xlu0 %v1404, 88
        %v1632 = vpop.permute.xlu0 %1631
        %v1634 = vsel %vm1412, %v1630, 0
        %v1637 = vsel %vm1412, %v1632, 0
        %1639 = vmatpush.bf16.xpose.msra.mxu0 0
        %1640 = vmatpush.bf16.xpose.msra.mxu0 0
        %1641 = vmatpush.bf16.xpose.msra.mxu0 0
        %1642 = vmatpush.bf16.xpose.msra.mxu0 0
        %1643 = vmatpush.bf16.xpose.msra.mxu0 0
        %1644 = vmatpush.bf16.xpose.msra.mxu0 0
        %1645 = vmatpush.bf16.xpose.msra.mxu0 0
        %1646 = vmatpush.bf16.xpose.msra.mxu0 %v1637
        %1647 = vmatmul.bf16.gmra.mxu0 %v1634
        %v1648 = vpop.f32.mrf.mxu0
        %v1649 = vadd.f32 %v1627, %v1648
        %v1650 = vpop.f32.mrf.mxu0
        %1651 = vdwg.mxu0
        %v1652 = vmul.f32 %v1649, 0.35355338
        %v1653 = vadd.f32 %v1652, %v1508
        %v1654 = vsel %vm1412, %v1653, -inf
        %1655 = vmax.xlane.f32.xlu0 %v1654
        %v1656 = vpop.xlane.xlu0 %1655
        %v1657 = vsub.f32 %v1653, %v1656
        %v1658 = vmul.f32 %v1657, 1.442695
        %v1659 = vpow.pop %v1658
        %v1660 = vsel %vm1412, %v1659, 0.0
        %1661 = vadd.xlane.f32.xlu0 %v1660
        %v1662 = vpop.xlane.xlu0 %1661
        %v1663 = vrcp.pop %v1662
        %v1664 = vmul.f32 %v1659, %v1663
        %v1665 = vpack.c.bf16 %v1664, %v1664
        %1666 = vrot.lane.b32.xlu0 %v1404, 56
        %v1667 = vpop.permute.xlu0 %1666
        %v1669 = vsel %vm1412, %v1665, 0
        %v1672 = vsel %vm1528, %v1667, 0
        %1674 = vmatpush.bf16.msra.mxu0 0
        %1675 = vmatpush.bf16.msra.mxu0 0
        %1676 = vmatpush.bf16.msra.mxu0 0
        %1677 = vmatpush.bf16.msra.mxu0 0
        %1678 = vmatpush.bf16.msra.mxu0 0
        %1679 = vmatpush.bf16.msra.mxu0 0
        %1680 = vmatpush.bf16.msra.mxu0 0
        %1681 = vmatpush.bf16.msra.mxu0 %v1672
        %1682 = vmatmul.bf16.gmra.mxu0 %v1669
        %v1683 = vpop.f32.mrf.mxu0
        %v1684 = vadd.f32 0.0, %v1683
        %v1685 = vpop.f32.mrf.mxu0
        %1686 = vdwg.mxu0
        %s1687 = scalar_lea.vmem %s25, 2
        %v1688 = vld [vmem:[%s1687] sm:$0x1]
        %v1690 = vperm.slane %v1688, 0
        %1691 = vrot.lane.b32.xlu0 %v1690, 16
        %v1692 = vpop.permute.xlu0 %1691
        %v1694 = vadd.f32 %v1385, %v1692
        %v1695 = vpack.c.bf16 %v1694, %v1694
        %s1696 = scalar_lea.vmem [#allocation16], 2
        %v1697 = vld [vmem:[%s1696] sm:$0x1]
        %v1699 = vperm.slane %v1697, 0
        %1700 = vrot.lane.b32.xlu0 %v1699, 16
        %v1701 = vpop.permute.xlu0 %1700
        %v1703 = vadd.f32 %v1385, %v1701
        %v1704 = vpack.c.bf16 %v1703, %v1703
        %s1705 = scalar_lea.vmem %s29, 16
        %v1706 = vld [vmem:[%s1705] sm:$0xf]
        %v1707 = vld [vmem:[%s1705 + $0x4] sm:$0xf]
        %1709 = vrot.lane.b32.xlu0 %v1704, 112
        %v1710 = vpop.permute.xlu0 %1709
        %v1713 = vunpack.c.l.b16 %v1706
        %v1714 = vunpack.c.l.b16 %v1707
        %v1715 = vpack.c.b16 %v1714, %v1713
        %v1717 = vsel %vm1412, %v1710, 0
        %v1720 = vsel %vm1412, %v1715, 0
        %1722 = vmatpush.bf16.xpose.msra.mxu0 0
        %1723 = vmatpush.bf16.xpose.msra.mxu0 0
        %1724 = vmatpush.bf16.xpose.msra.mxu0 0
        %1725 = vmatpush.bf16.xpose.msra.mxu0 0
        %1726 = vmatpush.bf16.xpose.msra.mxu0 0
        %1727 = vmatpush.bf16.xpose.msra.mxu0 0
        %1728 = vmatpush.bf16.xpose.msra.mxu0 0
        %1729 = vmatpush.bf16.xpose.msra.mxu0 %v1720
        %1730 = vmatmul.bf16.gmra.mxu0 %v1717
        %v1731 = vpop.f32.mrf.mxu0
        %v1732 = vadd.f32 0.0, %v1731
        %v1733 = vpop.f32.mrf.mxu0
        %1734 = vdwg.mxu0
        %1736 = vrot.lane.b32.xlu0 %v1732, 121
        %v1737 = vpop.permute.xlu0 %1736
        %1739 = vrot.lane.b32.xlu0 %v1732, 8
        %v1740 = vpop.permute.xlu0 %1739
        %v1742 = vsel %vm1412, %v1737, %v1740
        %1744 = vrot.lane.b32.xlu0 %v1742, 114
        %v1745 = vpop.permute.xlu0 %1744
        %1747 = vrot.lane.b32.xlu0 %v1742, 1
        %v1748 = vpop.permute.xlu0 %1747
        %v1750 = vsel %vm1447, %v1745, %v1748
        %v1751 = vsel %vm1452, %v1750, %v1742
        %1753 = vrot.lane.b32.xlu0 %v1751, 115
        %v1754 = vpop.permute.xlu0 %1753
        %1756 = vrot.lane.b32.xlu0 %v1751, 2
        %v1757 = vpop.permute.xlu0 %1756
        %v1759 = vsel %vm1461, %v1754, %v1757
        %v1760 = vsel %vm1467, %v1759, %v1751
        %1762 = vrot.lane.b32.xlu0 %v1760, 117
        %v1763 = vpop.permute.xlu0 %1762
        %1765 = vrot.lane.b32.xlu0 %v1760, 4
        %v1766 = vpop.permute.xlu0 %1765
        %v1768 = vsel %vm1476, %v1763, %v1766
        %v1769 = vsel %vm1482, %v1768, %v1760
        %1771 = vrot.lane.b32.xlu0 %v1695, 112
        %v1772 = vpop.permute.xlu0 %1771
        %1773 = vrot.lane.b32.xlu0 %v1404, 80
        %v1774 = vpop.permute.xlu0 %1773
        %v1776 = vsel %vm1412, %v1772, 0
        %v1779 = vsel %vm1412, %v1774, 0
        %1781 = vmatpush.bf16.xpose.msra.mxu0 0
        %1782 = vmatpush.bf16.xpose.msra.mxu0 0
        %1783 = vmatpush.bf16.xpose.msra.mxu0 0
        %1784 = vmatpush.bf16.xpose.msra.mxu0 0
        %1785 = vmatpush.bf16.xpose.msra.mxu0 0
        %1786 = vmatpush.bf16.xpose.msra.mxu0 0
        %1787 = vmatpush.bf16.xpose.msra.mxu0 0
        %1788 = vmatpush.bf16.xpose.msra.mxu0 %v1779
        %1789 = vmatmul.bf16.gmra.mxu0 %v1776
        %v1790 = vpop.f32.mrf.mxu0
        %v1791 = vadd.f32 %v1769, %v1790
        %v1792 = vpop.f32.mrf.mxu0
        %1793 = vdwg.mxu0
        %v1794 = vmul.f32 %v1791, 0.35355338
        %v1795 = vadd.f32 %v1794, %v1508
        %v1796 = vsel %vm1412, %v1795, -inf
        %1797 = vmax.xlane.f32.xlu0 %v1796
        %v1798 = vpop.xlane.xlu0 %1797
        %v1799 = vsub.f32 %v1795, %v1798
        %v1800 = vmul.f32 %v1799, 1.442695
        %v1801 = vpow.pop %v1800
        %v1802 = vsel %vm1412, %v1801, 0.0
        %1803 = vadd.xlane.f32.xlu0 %v1802
        %v1804 = vpop.xlane.xlu0 %1803
        %v1805 = vrcp.pop %v1804
        %v1806 = vmul.f32 %v1801, %v1805
        %v1807 = vpack.c.bf16 %v1806, %v1806
        %1808 = vrot.lane.b32.xlu0 %v1404, 48
        %v1809 = vpop.permute.xlu0 %1808
        %v1811 = vsel %vm1412, %v1807, 0
        %v1814 = vsel %vm1528, %v1809, 0
        %1816 = vmatpush.bf16.msra.mxu0 0
        %1817 = vmatpush.bf16.msra.mxu0 0
        %1818 = vmatpush.bf16.msra.mxu0 0
        %1819 = vmatpush.bf16.msra.mxu0 0
        %1820 = vmatpush.bf16.msra.mxu0 0
        %1821 = vmatpush.bf16.msra.mxu0 0
        %1822 = vmatpush.bf16.msra.mxu0 0
        %1823 = vmatpush.bf16.msra.mxu0 %v1814
        %1824 = vmatmul.bf16.gmra.mxu0 %v1811
        %v1825 = vpop.f32.mrf.mxu0
        %v1826 = vadd.f32 0.0, %v1825
        %v1827 = vpop.f32.mrf.mxu0
        %1828 = vdwg.mxu0
        %s1829 = scalar_lea.vmem %s25, 3
        %v1830 = vld [vmem:[%s1829] sm:$0x1]
        %v1832 = vperm.slane %v1830, 0
        %1833 = vrot.lane.b32.xlu0 %v1832, 24
        %v1834 = vpop.permute.xlu0 %1833
        %v1836 = vadd.f32 %v1385, %v1834
        %v1837 = vpack.c.bf16 %v1836, %v1836
        %s1838 = scalar_lea.vmem [#allocation16], 3
        %v1839 = vld [vmem:[%s1838] sm:$0x1]
        %v1841 = vperm.slane %v1839, 0
        %1842 = vrot.lane.b32.xlu0 %v1841, 24
        %v1843 = vpop.permute.xlu0 %1842
        %v1845 = vadd.f32 %v1385, %v1843
        %v1846 = vpack.c.bf16 %v1845, %v1845
        %s1847 = scalar_lea.vmem %s29, 24
        %v1848 = vld [vmem:[%s1847] sm:$0xf]
        %v1849 = vld [vmem:[%s1847 + $0x4] sm:$0xf]
        %1851 = vrot.lane.b32.xlu0 %v1846, 104
        %v1852 = vpop.permute.xlu0 %1851
        %v1855 = vunpack.c.l.b16 %v1848
        %v1856 = vunpack.c.l.b16 %v1849
        %v1857 = vpack.c.b16 %v1856, %v1855
        %v1859 = vsel %vm1412, %v1852, 0
        %v1862 = vsel %vm1412, %v1857, 0
        %1864 = vmatpush.bf16.xpose.msra.mxu0 0
        %1865 = vmatpush.bf16.xpose.msra.mxu0 0
        %1866 = vmatpush.bf16.xpose.msra.mxu0 0
        %1867 = vmatpush.bf16.xpose.msra.mxu0 0
        %1868 = vmatpush.bf16.xpose.msra.mxu0 0
        %1869 = vmatpush.bf16.xpose.msra.mxu0 0
        %1870 = vmatpush.bf16.xpose.msra.mxu0 0
        %1871 = vmatpush.bf16.xpose.msra.mxu0 %v1862
        %1872 = vmatmul.bf16.gmra.mxu0 %v1859
        %v1873 = vpop.f32.mrf.mxu0
        %v1874 = vadd.f32 0.0, %v1873
        %v1875 = vpop.f32.mrf.mxu0
        %1876 = vdwg.mxu0
        %1878 = vrot.lane.b32.xlu0 %v1874, 121
        %v1879 = vpop.permute.xlu0 %1878
        %1881 = vrot.lane.b32.xlu0 %v1874, 8
        %v1882 = vpop.permute.xlu0 %1881
        %v1884 = vsel %vm1412, %v1879, %v1882
        %1886 = vrot.lane.b32.xlu0 %v1884, 114
        %v1887 = vpop.permute.xlu0 %1886
        %1889 = vrot.lane.b32.xlu0 %v1884, 1
        %v1890 = vpop.permute.xlu0 %1889
        %v1892 = vsel %vm1447, %v1887, %v1890
        %v1893 = vsel %vm1452, %v1892, %v1884
        %1895 = vrot.lane.b32.xlu0 %v1893, 115
        %v1896 = vpop.permute.xlu0 %1895
        %1898 = vrot.lane.b32.xlu0 %v1893, 2
        %v1899 = vpop.permute.xlu0 %1898
        %v1901 = vsel %vm1461, %v1896, %v1899
        %v1902 = vsel %vm1467, %v1901, %v1893
        %1904 = vrot.lane.b32.xlu0 %v1902, 117
        %v1905 = vpop.permute.xlu0 %1904
        %1907 = vrot.lane.b32.xlu0 %v1902, 4
        %v1908 = vpop.permute.xlu0 %1907
        %v1910 = vsel %vm1476, %v1905, %v1908
        %v1911 = vsel %vm1482, %v1910, %v1902
        %1913 = vrot.lane.b32.xlu0 %v1837, 104
        %v1914 = vpop.permute.xlu0 %1913
        %1915 = vrot.lane.b32.xlu0 %v1404, 72
        %v1916 = vpop.permute.xlu0 %1915
        %v1918 = vsel %vm1412, %v1914, 0
        %v1921 = vsel %vm1412, %v1916, 0
        %1923 = vmatpush.bf16.xpose.msra.mxu0 0
        %1924 = vmatpush.bf16.xpose.msra.mxu0 0
        %1925 = vmatpush.bf16.xpose.msra.mxu0 0
        %1926 = vmatpush.bf16.xpose.msra.mxu0 0
        %1927 = vmatpush.bf16.xpose.msra.mxu0 0
        %1928 = vmatpush.bf16.xpose.msra.mxu0 0
        %1929 = vmatpush.bf16.xpose.msra.mxu0 0
        %1930 = vmatpush.bf16.xpose.msra.mxu0 %v1921
        %1931 = vmatmul.bf16.gmra.mxu0 %v1918
        %v1932 = vpop.f32.mrf.mxu0
        %v1933 = vadd.f32 %v1911, %v1932
        %v1934 = vpop.f32.mrf.mxu0
        %1935 = vdwg.mxu0
        %v1936 = vmul.f32 %v1933, 0.35355338
        %v1937 = vadd.f32 %v1936, %v1508
        %v1938 = vsel %vm1412, %v1937, -inf
        %1939 = vmax.xlane.f32.xlu0 %v1938
        %v1940 = vpop.xlane.xlu0 %1939
        %v1941 = vsub.f32 %v1937, %v1940
        %v1942 = vmul.f32 %v1941, 1.442695
        %v1943 = vpow.pop %v1942
        %v1944 = vsel %vm1412, %v1943, 0.0
        %1945 = vadd.xlane.f32.xlu0 %v1944
        %v1946 = vpop.xlane.xlu0 %1945
        %v1947 = vrcp.pop %v1946
        %v1948 = vmul.f32 %v1943, %v1947
        %v1949 = vpack.c.bf16 %v1948, %v1948
        %1950 = vrot.lane.b32.xlu0 %v1404, 40
        %v1951 = vpop.permute.xlu0 %1950
        %v1953 = vsel %vm1412, %v1949, 0
        %v1956 = vsel %vm1528, %v1951, 0
        %1958 = vmatpush.bf16.msra.mxu0 0
        %1959 = vmatpush.bf16.msra.mxu0 0
        %1960 = vmatpush.bf16.msra.mxu0 0
        %1961 = vmatpush.bf16.msra.mxu0 0
        %1962 = vmatpush.bf16.msra.mxu0 0
        %1963 = vmatpush.bf16.msra.mxu0 0
        %1964 = vmatpush.bf16.msra.mxu0 0
        %1965 = vmatpush.bf16.msra.mxu0 %v1956
        %1966 = vmatmul.bf16.gmra.mxu0 %v1953
        %v1967 = vpop.f32.mrf.mxu0
        %v1968 = vadd.f32 0.0, %v1967
        %v1969 = vpop.f32.mrf.mxu0
        %1970 = vdwg.mxu0
        %1972 = vrot.lane.b32.xlu0 %v1684, 8
        %v1973 = vpop.permute.xlu0 %1972
        %1976 = vrot.lane.b32.xlu0 %v1826, 16
        %v1977 = vpop.permute.xlu0 %1976
        %1980 = vrot.lane.b32.xlu0 %v1968, 24
        %v1981 = vpop.permute.xlu0 %1980
        %v1983 = vsel %vm1412, %v1542, %v1973
        %vm1984 = vcmask 130048
        %v1985 = vsel %vm1984, %v1983, %v1977
        %vm1986 = vcmask 195584
        %v1987 = vsel %vm1986, %v1985, %v1981
        %v1988 = vpack.c.bf16 %v1987, %v1987
        %v1989 = vld [vmem:[%s31] sm:$0xf]
        %v1990 = vld [vmem:[%s31 + $0x4] sm:$0xf]
        %v1991 = vld [vmem:[%s31 + $0x8] sm:$0xf]
        %v1992 = vld [vmem:[%s31 + $0xc] sm:$0xf]
        %v1993 = vld [vmem:[%s33] sm:$0x1]
        %v1995 = vperm.slane %v1993, 0
        %v2001 = vunpack.c.l.b16 %v1989
        %v2002 = vunpack.c.l.b16 %v1990
        %v2003 = vunpack.c.l.b16 %v1991
        %v2004 = vunpack.c.l.b16 %v1992
        %v2005 = vpack.c.b16 %v2002, %v2001
        %v2006 = vpack.c.b16 %v2004, %v2003
        %v2010 = vsel %vm1167, %v1988, 0
        %2012 = vmatpush.bf16.msra.mxu0 0
        %2013 = vmatpush.bf16.msra.mxu0 0
        %2014 = vmatpush.bf16.msra.mxu0 0
        %2015 = vmatpush.bf16.msra.mxu0 0
        %2016 = vmatpush.bf16.msra.mxu0 0
        %2017 = vmatpush.bf16.msra.mxu0 0
        %2018 = vmatpush.bf16.msra.mxu0 %v2006
        %2019 = vmatpush.bf16.msra.mxu0 %v2005
        %2020 = vmatmul.bf16.gmra.mxu0 %v2010
        %v2021 = vpop.f32.mrf.mxu0
        %v2022 = vadd.f32 %v1995, %v2021
        %v2023 = vpop.f32.mrf.mxu0
        %2024 = vdwg.mxu0
        %v2025 = vadd.f32 %v2022, %v1317
        %v2026 = vld [vmem:[%s35] sm:$0x1]
        %v2027 = vld [vmem:[%s37] sm:$0x1]
        %v2028 = vsel %vm1167, %v2025, 0.0
        %2029 = vadd.xlane.f32.xlu0 %v2028
        %v2030 = vpop.xlane.xlu0 %2029
        %v2031 = vmul.f32 %v2030, %v1177
        %v2032 = vsub.f32 %v2025, %v2031
        %v2033 = vmul.f32 %v2032, %v2032
        %v2034 = vsel %vm1167, %v2033, 0.0
        %2035 = vadd.xlane.f32.xlu0 %v2034
        %v2036 = vpop.xlane.xlu0 %2035
        %v2037 = vmul.f32 %v2036, %v1177
        %v2038 = vadd.f32 %v2037, 1e-05
        %v2039 = vrsqrt.pop %v2038
        %v2040 = vmul.f32 %v2039, %v2038
        %v2041 = vmul.f32 %v2040, %v2039
        %v2042 = vmul.f32 0.5, %v2041
        %v2043 = vsub.f32 1.5, %v2042
        %v2044 = vmul.f32 %v2039, %v2043
        %vm2045 = vweird.f32 %v2038
        %vm2046 = vweird.f32 %v2039
        %vm2047 = vmor %vm2045, %vm2046
        %v2048 = vsel %vm2047, %v2039, %v2044
        %v2049 = vmul.f32 %v2032, %v2048
        %v2051 = vperm.slane %v2026, 0
        %v2053 = vmul.f32 %v2049, %v2051
        %v2055 = vperm.slane %v2027, 0
        %v2057 = vadd.f32 %v2053, %v2055
        %v2058 = vpack.c.bf16 %v2057, %v2057
        %v2059 = vld [vmem:[%s39] sm:$0xf]
        %v2060 = vld [vmem:[%s39 + $0x4] sm:$0xf]
        %v2061 = vld [vmem:[%s39 + $0x8] sm:$0xf]
        %v2062 = vld [vmem:[%s39 + $0xc] sm:$0xf]
        %v2063 = vld [vmem:[%s41] sm:$0x1]
        %v2065 = vperm.slane %v2063, 0
        %v2071 = vunpack.c.l.b16 %v2059
        %v2072 = vunpack.c.l.b16 %v2060
        %v2073 = vunpack.c.l.b16 %v2061
        %v2074 = vunpack.c.l.b16 %v2062
        %v2075 = vpack.c.b16 %v2072, %v2071
        %v2076 = vpack.c.b16 %v2074, %v2073
        %v2080 = vsel %vm1167, %v2058, 0
        %2082 = vmatpush.bf16.msra.mxu0 0
        %2083 = vmatpush.bf16.msra.mxu0 0
        %2084 = vmatpush.bf16.msra.mxu0 0
        %2085 = vmatpush.bf16.msra.mxu0 0
        %2086 = vmatpush.bf16.msra.mxu0 0
        %2087 = vmatpush.bf16.msra.mxu0 0
        %2088 = vmatpush.bf16.msra.mxu0 %v2076
        %2089 = vmatpush.bf16.msra.mxu0 %v2075
        %2090 = vmatmul.bf16.gmra.mxu0 %v2080
        %v2091 = vpop.f32.mrf.mxu0
        %v2092 = vadd.f32 %v2065, %v2091
        %v2093 = vpop.f32.mrf.mxu0
        %2094 = vdwg.mxu0
        %v2095 = vxor.u32 %v2092, 2147483648
        %v2096 = vmul.f32 %v2095, 1.442695
        %v2097 = vpow.pop %v2096
        %v2098 = vadd.f32 %v2097, 1.0
        %v2099 = vrcp.pop %v2098
        %v2100 = vmul.f32 %v2098, %v2099
        %v2101 = vsub.f32 1.0, %v2100
        %v2102 = vmul.f32 %v2099, %v2101
        %v2103 = vadd.f32 %v2099, %v2102
        %vm2104 = vweird.f32 %v2098
        %vm2105 = vweird.f32 %v2099
        %vm2106 = vmor %vm2104, %vm2105
        %v2107 = vsel %vm2106, %v2099, %v2103
        %v2108 = vand.u32 2147483647, %v2098
        %vm2109 = vcmp.eq.f32.partialorder %v2108, 8.507059e+37
        %v2110 = vand.u32 %v2098, 2147483648
        %v2111 = vor.u32 1.1754944e-38, %v2110
        %v2112 = vsel %vm2109, %v2111, %v2107
        %v2113 = vmul.f32 1.0, %v2112
        %2115 = vrot.lane.b32.xlu0 %v2113, 96
        %v2116 = vpop.permute.xlu0 %2115
        %v2118 = vmul.f32 %v2092, %v2116
        %v2120 = vrot.slane %v2118, 6
        %vm2122 = vcmask 1041408
        %v2123 = vsel %vm2122, 0.0, %v2120
        %v2124 = vsel %vm2122, %v2120, 0.0
        %v2125 = vld [vmem:[%s43] sm:$0x1]
        %v2127 = vperm.slane %v2125, 0
        %v2129 = vmul.f32 %v2123, %v2127
        %v2130 = vadd.f32 %v2129, 0.0
        %s2131 = scalar_lea.vmem %s43, 1
        %v2132 = vld [vmem:[%s2131] sm:$0x1]
        %v2134 = vperm.slane %v2132, 0
        %v2136 = vmul.f32 %v2123, %v2134
        %v2137 = vmul.f32 %v2124, %v2134
        %vm2140 = vcmask 1046528
        %v2141 = vrot.slane %v2136, 1
        %v2142 = vrot.slane %v2137, 1
        %v2143 = vsel %vm2140, %v2141, %v2142
        %v2145 = vadd.f32 %v2130, %v2143
        %s2146 = scalar_lea.vmem %s43, 2
        %v2147 = vld [vmem:[%s2146] sm:$0x1]
        %v2149 = vperm.slane %v2147, 0
        %v2151 = vmul.f32 %v2123, %v2149
        %v2152 = vmul.f32 %v2124, %v2149
        %vm2155 = vcmask 1045504
        %v2156 = vrot.slane %v2151, 2
        %v2157 = vrot.slane %v2152, 2
        %v2158 = vsel %vm2155, %v2156, %v2157
        %v2160 = vadd.f32 %v2145, %v2158
        %s2161 = scalar_lea.vmem %s43, 3
        %v2162 = vld [vmem:[%s2161] sm:$0x1]
        %v2164 = vperm.slane %v2162, 0
        %v2166 = vmul.f32 %v2123, %v2164
        %v2167 = vmul.f32 %v2124, %v2164
        %vm2170 = vcmask 1044480
        %v2171 = vrot.slane %v2166, 3
        %v2172 = vrot.slane %v2167, 3
        %v2173 = vsel %vm2170, %v2171, %v2172
        %v2175 = vadd.f32 %v2160, %v2173
        %s2176 = scalar_lea.vmem %s43, 4
        %v2177 = vld [vmem:[%s2176] sm:$0x1]
        %v2179 = vperm.slane %v2177, 0
        %v2181 = vmul.f32 %v2123, %v2179
        %v2182 = vmul.f32 %v2124, %v2179
        %v2185 = vrot.slane %v2181, 4
        %v2186 = vrot.slane %v2182, 4
        %v2187 = vsel %vm1528, %v2185, %v2186
        %v2189 = vadd.f32 %v2175, %v2187
        %v2190 = vld [vmem:[%s45] sm:$0x1]
        %v2192 = vperm.slane %v2190, 0
        %v2194 = vadd.f32 %v2189, %v2192
        %v2195 = vxor.u32 %v2194, 2147483648
        %v2196 = vmul.f32 %v2195, 1.442695
        %v2197 = vpow.pop %v2196
        %v2198 = vadd.f32 %v2197, 1.0
        %v2199 = vrcp.pop %v2198
        %v2200 = vmul.f32 %v2198, %v2199
        %v2201 = vsub.f32 1.0, %v2200
        %v2202 = vmul.f32 %v2199, %v2201
        %v2203 = vadd.f32 %v2199, %v2202
        %vm2204 = vweird.f32 %v2198
        %vm2205 = vweird.f32 %v2199
        %vm2206 = vmor %vm2204, %vm2205
        %v2207 = vsel %vm2206, %v2199, %v2203
        %v2208 = vand.u32 2147483647, %v2198
        %vm2209 = vcmp.eq.f32.partialorder %v2208, 8.507059e+37
        %v2210 = vand.u32 %v2198, 2147483648
        %v2211 = vor.u32 1.1754944e-38, %v2210
        %v2212 = vsel %vm2209, %v2211, %v2207
        %v2213 = vmul.f32 1.0, %v2212
        %v2214 = vmul.f32 %v2194, %v2213
        %v2215 = vpack.c.bf16 %v2214, %v2214
        %v2216 = vld [vmem:[%s47] sm:$0xf]
        %v2217 = vld [vmem:[%s47 + $0x4] sm:$0xf]
        %v2218 = vld [vmem:[%s47 + $0x8] sm:$0xf]
        %v2219 = vld [vmem:[%s47 + $0xc] sm:$0xf]
        %v2220 = vld [vmem:[%s49] sm:$0x1]
        %v2222 = vperm.slane %v2220, 0
        %v2228 = vunpack.c.l.b16 %v2216
        %v2229 = vunpack.c.l.b16 %v2217
        %v2230 = vunpack.c.l.b16 %v2218
        %v2231 = vunpack.c.l.b16 %v2219
        %v2232 = vpack.c.b16 %v2229, %v2228
        %v2233 = vpack.c.b16 %v2231, %v2230
        %v2237 = vsel %vm1167, %v2215, 0
        %2239 = vmatpush.bf16.msra.mxu0 0
        %2240 = vmatpush.bf16.msra.mxu0 0
        %2241 = vmatpush.bf16.msra.mxu0 0
        %2242 = vmatpush.bf16.msra.mxu0 0
        %2243 = vmatpush.bf16.msra.mxu0 0
        %2244 = vmatpush.bf16.msra.mxu0 0
        %2245 = vmatpush.bf16.msra.mxu0 %v2233
        %2246 = vmatpush.bf16.msra.mxu0 %v2232
        %2247 = vmatmul.bf16.gmra.mxu0 %v2237
        %v2248 = vpop.f32.mrf.mxu0
        %v2249 = vadd.f32 %v2222, %v2248
        %v2250 = vpop.f32.mrf.mxu0
        %2251 = vdwg.mxu0
        %v2252 = vadd.f32 %v2249, %v2025
        %v2253 = vld [vmem:[%s51] sm:$0x1]
        %v2254 = vld [vmem:[%s53] sm:$0x1]
        %v2255 = vsel %vm1167, %v2252, 0.0
        %2256 = vadd.xlane.f32.xlu0 %v2255
        %v2257 = vpop.xlane.xlu0 %2256
        %v2258 = vmul.f32 %v2257, %v1177
        %v2259 = vsub.f32 %v2252, %v2258
        %v2260 = vmul.f32 %v2259, %v2259
        %v2261 = vsel %vm1167, %v2260, 0.0
        %2262 = vadd.xlane.f32.xlu0 %v2261
        %v2263 = vpop.xlane.xlu0 %2262
        %v2264 = vmul.f32 %v2263, %v1177
        %v2265 = vadd.f32 %v2264, 1e-05
        %v2266 = vrsqrt.pop %v2265
        %v2267 = vmul.f32 %v2266, %v2265
        %v2268 = vmul.f32 %v2267, %v2266
        %v2269 = vmul.f32 0.5, %v2268
        %v2270 = vsub.f32 1.5, %v2269
        %v2271 = vmul.f32 %v2266, %v2270
        %vm2272 = vweird.f32 %v2265
        %vm2273 = vweird.f32 %v2266
        %vm2274 = vmor %vm2272, %vm2273
        %v2275 = vsel %vm2274, %v2266, %v2271
        %v2276 = vmul.f32 %v2259, %v2275
        %v2278 = vperm.slane %v2253, 0
        %v2280 = vmul.f32 %v2276, %v2278
        %v2282 = vperm.slane %v2254, 0
        %v2284 = vadd.f32 %v2280, %v2282
        %v2285 = vpack.c.bf16 %v2284, %v2284
        %v2286 = vld [vmem:[%s55] sm:$0xf]
        %v2287 = vld [vmem:[%s55 + $0x4] sm:$0xf]
        %v2288 = vld [vmem:[%s55 + $0x8] sm:$0xf]
        %v2289 = vld [vmem:[%s55 + $0xc] sm:$0xf]
        %v2290 = vld [vmem:[%s57] sm:$0x1]
        %v2292 = vperm.slane %v2290, 0
        %v2298 = vunpack.c.l.b16 %v2286
        %v2299 = vunpack.c.l.b16 %v2287
        %v2300 = vunpack.c.l.b16 %v2288
        %v2301 = vunpack.c.l.b16 %v2289
        %v2302 = vpack.c.b16 %v2299, %v2298
        %v2303 = vpack.c.b16 %v2301, %v2300
        %v2307 = vsel %vm1167, %v2285, 0
        %2309 = vmatpush.bf16.msra.mxu0 0
        %2310 = vmatpush.bf16.msra.mxu0 0
        %2311 = vmatpush.bf16.msra.mxu0 0
        %2312 = vmatpush.bf16.msra.mxu0 0
        %2313 = vmatpush.bf16.msra.mxu0 0
        %2314 = vmatpush.bf16.msra.mxu0 0
        %2315 = vmatpush.bf16.msra.mxu0 %v2303
        %2316 = vmatpush.bf16.msra.mxu0 %v2302
        %2317 = vmatmul.bf16.gmra.mxu0 %v2307
        %v2318 = vpop.f32.mrf.mxu0
        %v2319 = vadd.f32 %v2292, %v2318
        %v2320 = vpop.f32.mrf.mxu0
        %2321 = vdwg.mxu0
        %v2322 = vxor.u32 %v2319, 2147483648
        %v2323 = vmul.f32 %v2322, 1.442695
        %v2324 = vpow.pop %v2323
        %v2325 = vadd.f32 %v2324, 1.0
        %v2326 = vrcp.pop %v2325
        %v2327 = vmul.f32 %v2325, %v2326
        %v2328 = vsub.f32 1.0, %v2327
        %v2329 = vmul.f32 %v2326, %v2328
        %v2330 = vadd.f32 %v2326, %v2329
        %vm2331 = vweird.f32 %v2325
        %vm2332 = vweird.f32 %v2326
        %vm2333 = vmor %vm2331, %vm2332
        %v2334 = vsel %vm2333, %v2326, %v2330
        %v2335 = vand.u32 2147483647, %v2325
        %vm2336 = vcmp.eq.f32.partialorder %v2335, 8.507059e+37
        %v2337 = vand.u32 %v2325, 2147483648
        %v2338 = vor.u32 1.1754944e-38, %v2337
        %v2339 = vsel %vm2336, %v2338, %v2334
        %v2340 = vmul.f32 1.0, %v2339
        %v2341 = vmul.f32 %v2319, %v2340
        %v2342 = vpack.c.bf16 %v2341, %v2341
        %v2343 = vld [vmem:[%s59] sm:$0xf]
        %v2344 = vld [vmem:[%s59 + $0x4] sm:$0xf]
        %v2345 = vld [vmem:[%s59 + $0x8] sm:$0xf]
        %v2346 = vld [vmem:[%s59 + $0xc] sm:$0xf]
        %v2347 = vld [vmem:[%s59 + $0x10] sm:$0xf]
        %v2348 = vld [vmem:[%s59 + $0x14] sm:$0xf]
        %v2349 = vld [vmem:[%s59 + $0x18] sm:$0xf]
        %v2350 = vld [vmem:[%s59 + $0x1c] sm:$0xf]
        %v2351 = vld [vmem:[%s61] sm:$0x1]
        %v2353 = vperm.slane %v2351, 0
        %v2363 = vunpack.c.l.b16 %v2343
        %v2364 = vunpack.c.l.b16 %v2344
        %v2365 = vunpack.c.l.b16 %v2345
        %v2366 = vunpack.c.l.b16 %v2346
        %v2367 = vunpack.c.l.b16 %v2347
        %v2368 = vunpack.c.l.b16 %v2348
        %v2369 = vunpack.c.l.b16 %v2349
        %v2370 = vunpack.c.l.b16 %v2350
        %v2371 = vpack.c.b16 %v2364, %v2363
        %v2372 = vpack.c.b16 %v2366, %v2365
        %v2373 = vpack.c.b16 %v2368, %v2367
        %v2374 = vpack.c.b16 %v2370, %v2369
        %v2380 = vsel %vm1299, %v2342, 0
        %2382 = vmatpush.bf16.msra.mxu0 0
        %2383 = vmatpush.bf16.msra.mxu0 0
        %2384 = vmatpush.bf16.msra.mxu0 0
        %2385 = vmatpush.bf16.msra.mxu0 0
        %2386 = vmatpush.bf16.msra.mxu0 %v2374
        %2387 = vmatpush.bf16.msra.mxu0 %v2373
        %2388 = vmatpush.bf16.msra.mxu0 %v2372
        %2389 = vmatpush.bf16.msra.mxu0 %v2371
        %2390 = vmatmul.bf16.gmra.mxu0 %v2380
        %v2391 = vpop.f32.mrf.mxu0
        %v2392 = vadd.f32 %v2353, %v2391
        %v2393 = vpop.f32.mrf.mxu0
        %2394 = vdwg.mxu0
        %v2395 = vmul.f32 %v2392, 0.5
        %v2396 = vadd.f32 %v2395, %v2252
        %v2397 = vld [vmem:[%s63] sm:$0x1]
        %v2398 = vld [vmem:[%s65] sm:$0x1]
        %v2399 = vsel %vm1167, %v2396, 0.0
        %2400 = vadd.xlane.f32.xlu0 %v2399
        %v2401 = vpop.xlane.xlu0 %2400
        %v2402 = vmul.f32 %v2401, %v1177
        %v2403 = vsub.f32 %v2396, %v2402
        %v2404 = vmul.f32 %v2403, %v2403
        %v2405 = vsel %vm1167, %v2404, 0.0
        %2406 = vadd.xlane.f32.xlu0 %v2405
        %v2407 = vpop.xlane.xlu0 %2406
        %v2408 = vmul.f32 %v2407, %v1177
        %v2409 = vadd.f32 %v2408, 1e-05
        %v2410 = vrsqrt.pop %v2409
        %v2411 = vmul.f32 %v2410, %v2409
        %v2412 = vmul.f32 %v2411, %v2410
        %v2413 = vmul.f32 0.5, %v2412
        %v2414 = vsub.f32 1.5, %v2413
        %v2415 = vmul.f32 %v2410, %v2414
        %vm2416 = vweird.f32 %v2409
        %vm2417 = vweird.f32 %v2410
        %vm2418 = vmor %vm2416, %vm2417
        %v2419 = vsel %vm2418, %v2410, %v2415
        %v2420 = vmul.f32 %v2403, %v2419
        %v2422 = vperm.slane %v2397, 0
        %v2424 = vmul.f32 %v2420, %v2422
        %v2426 = vperm.slane %v2398, 0
        %v2428 = vadd.f32 %v2424, %v2426
        %2429 = vst.msk [vmem:[%s1158] sm:$0xff] %vm1167, %v2428
        %s2430 = sand.u32 %s799, 1
        %s2431 = scalar_lea.sflag [#allocation4], %s2430
        %s2432 = sand.u32 %s799, 1
        %s2433 = smul.addr %s2432, 8
        %s2434 = scalar_lea.vmem [#allocation17], %s2433
        // Predicated region
        $region189: #{tpu_custom_call.1} parent=151 // pred_check
          %p2435 = pneg %p809
        $region190: #{tpu_custom_call.1} parent=151 // pred_check_branch
          %2437 = sbr.rel (%p2435) target = $region192
        $region191: #{tpu_custom_call.1} parent=151 // pred_region
          %2439 = vsyncadd %s2431, 0
          %s2440 = smul.addr %s88, 8
          %s2441 = scalar_lea.hbm %s67, %s2440
          %s2443 = sshll.u32 %s2434, 4
          %s2444 = int_to_ptr.vmem [resolvable:$true] %s2443
          %s2445 = sshll.u32 %s2441, 4
          %s2446 = int_to_ptr.hbm [resolvable:$true] %s2445
          %2448 = dma.vmem_to_hbm [thread:$0]  %s2444, 128, %s2446, %s2431
        $region192: #{tpu_custom_call.1} parent=151 // pred_fallthru
          _
      $region152: #{tpu_custom_call.1} parent=5 // pred_fallthru
        _
      %p2449 = scmp.le.s32.totalorder 2, %s83
      // Predicated region
      $region193: #{tpu_custom_call.1} parent=5 // pred_check
        %p2450 = pneg %p2449
      $region194: #{tpu_custom_call.1} parent=5 // pred_check_branch
        %2452 = sbr.rel (%p2450) target = $region196
      $region195: #{tpu_custom_call.1} parent=5 // pred_region
        %s2453 = ssub.s32 %s83, 2
        // Predicated region
        $region197: #{tpu_custom_call.1} parent=195 // pred_check
          %p2454 = pneg %p815
        $region198: #{tpu_custom_call.1} parent=195 // pred_check_branch
          %2456 = sbr.rel (%p2454) target = $region200
        $region199: #{tpu_custom_call.1} parent=195 // pred_region
          %s2457 = sand.u32 %s800, 1
          %s2458 = scalar_lea.sflag [#allocation4], %s2457
          %s2459 = sand.u32 %s800, 1
          %s2460 = smul.addr %s2459, 8
          %s2461 = scalar_lea.vmem [#allocation17], %s2460
          %2463 = dma.done %s2458, 128
        $region200: #{tpu_custom_call.1} parent=195 // pred_fallthru
          _
      $region196: #{tpu_custom_call.1} parent=5 // pred_fallthru
        _
    $region6: #{tpu_custom_call.1} parent=1 // loop_footer
      %s87 = sadd.s32 1, %s83
    $region7: #{tpu_custom_call.1} parent=1 // loop_footer_branch
      %82 = sbr.rel target = $region3
    $region8: #{tpu_custom_call.1} parent=1 // loop_exit
      _
    %2464 = vsyncpa [#allocation3], 1
    %s2465 = scalar_lea.sflag [#allocation3], 1
    %2466 = vsyncpa %s2465, 1
    %2467 = vsyncpa [#allocation6], 1
    %2468 = vsyncpa [#allocation9], 1
    %2469 = vsyncpa [#allocation12], 1
    %2470 = vsyncpa [#allocation15], 1
    %2471 = vsyncpa [#allocation4], 1
    %s2472 = scalar_lea.sflag [#allocation4], 1
    %2473 = vsyncpa %s2472, 1

</llo_original>
